<compile_context>
chip_gen: v7x
topology: tpu7x:2x2x1
jax: 0.10.0
libtpu: 0.0.40
codegen_flags: <defaults>
</compile_context>

<pallas_src>
import jax
import jax.numpy as jnp
from jax import lax
from jax.experimental import pallas as pl
from jax.experimental.pallas import tpu as pltpu

VOCAB = 5000
EMBED = 64
HIDDEN = 128
CLASSES = 10
LANE_PAD = 128          # lane-dense classifier output width (classes padded to 128)


def _round_up(a, m):
    return (a + m - 1) // m * m


def _vmem_limit_bytes(seq, bb):
    x_b = seq * bb * EMBED * 2                       # bf16 input slab
    gx_b = seq * bb * 8 * HIDDEN * 4                 # f32 precomputed gates (scratch)
    w_b = (EMBED * 8 * HIDDEN * 2 + 8 * HIDDEN * 4   # wih_all + b_all
           + 2 * HIDDEN * 4 * HIDDEN * 2             # whh_f + whh_b
           + 2 * HIDDEN * LANE_PAD * 2 + LANE_PAD * 4)  # wfc + bfc
    out_b = bb * LANE_PAD * 4
    need = 2 * (x_b + w_b + out_b) + gx_b            # inputs/outputs double-buffered
    return int(min(max(2 * need, 32 << 20), 100 << 20))


def textrnn_kernel(x_ref,                       # (S*Bb, EMBED)   bf16, time-major slab
                   wih_ref, b_ref,              # (EMBED, 8H) bf16, (1, 8H) f32
                   whh_f_ref, whh_b_ref,        # (H, 4H) bf16 each
                   wfc_ref, bfc_ref,            # (2H, 128) bf16, (1, 128) f32
                   out_ref,                     # (Bb, 128) f32
                   gx_ref):                     # VMEM scratch (S*Bb, 8H) f32
    bb = out_ref.shape[0]
    seq = x_ref.shape[0] // bb

    # --- Hoisted input projection: both directions + folded biases, one MXU matmul.
    gx_ref[...] = (jnp.dot(x_ref[...], wih_ref[...],
                           preferred_element_type=jnp.float32)
                   + b_ref[...])

    # Load recurrent weights once (loop-invariant).
    whh_f = whh_f_ref[...]
    whh_b = whh_b_ref[...]

    def cell(gates, c):
        # Gate column order is [i, f, o | g]: one sigmoid region + one tanh region.
        sg = jax.nn.sigmoid(gates[:, 0:3 * HIDDEN])
        i = sg[:, 0:HIDDEN]
        f = sg[:, HIDDEN:2 * HIDDEN]
        o = sg[:, 2 * HIDDEN:3 * HIDDEN]
        g = jnp.tanh(gates[:, 3 * HIDDEN:4 * HIDDEN])
        c_new = f * c + i * g
        h_new = o * jnp.tanh(c_new)
        return h_new, c_new

    def body(t, carry):
        hf, cf, hb, cb = carry
        # forward direction walks t = 0..S-1
        rf = pl.multiple_of(t * bb, bb)
        gates_f = (gx_ref[pl.ds(rf, bb), 0:4 * HIDDEN]
                   + jnp.dot(hf.astype(jnp.bfloat16), whh_f,
                             preferred_element_type=jnp.float32))
        hf, cf = cell(gates_f, cf)
        # backward direction walks t = S-1..0
        rb = pl.multiple_of((seq - 1 - t) * bb, bb)
        gates_b = (gx_ref[pl.ds(rb, bb), 4 * HIDDEN:8 * HIDDEN]
                   + jnp.dot(hb.astype(jnp.bfloat16), whh_b,
                             preferred_element_type=jnp.float32))
        hb, cb = cell(gates_b, cb)
        return hf, cf, hb, cb

    z = jnp.zeros((bb, HIDDEN), jnp.float32)
    hf, _, hb, _ = lax.fori_loop(0, seq, body, (z, z, z, z), unroll=True)

    # feature_map = cat([h_n[0], h_n[1]], dim=1) @ Wfc + bfc, via split-weight matmuls
    # (avoids an in-kernel lane-axis concat).  Output lanes padded to 128.
    logits = (jnp.dot(hf.astype(jnp.bfloat16), wfc_ref[0:HIDDEN, :],
                      preferred_element_type=jnp.float32)
              + jnp.dot(hb.astype(jnp.bfloat16), wfc_ref[HIDDEN:2 * HIDDEN, :],
                        preferred_element_type=jnp.float32)
              + bfc_ref[...])                                  # (Bb, 128)

    # Row-wise softmax; padded lanes have bias -1e30 -> exp underflows to 0.
    m = jnp.max(logits, axis=1, keepdims=True)
    e = jnp.exp(logits - m)
    s = jnp.sum(e, axis=1, keepdims=True)
    out_ref[...] = e * pl.reciprocal(s, approx=True)


def textrnn_forward(tokens, params, *, block_b=128):
    B, S = tokens.shape
    emb = params["embedding"][tokens]                  # (B, S, E) bf16
    x = jnp.transpose(emb, (1, 0, 2))                  # (S, B, E) bf16, time-major

    # Pad batch to >= 8 rows (sublane fill), and to a multiple of the batch block.
    Bp = _round_up(max(B, 8), 8)
    bb = min(block_b, Bp)
    Bp = _round_up(Bp, bb)
    nb = Bp // bb
    if Bp != B:
        x = jnp.pad(x, ((0, 0), (0, Bp - B), (0, 0)))

    # (S, Bp, E) -> (nb, S*bb, E): each grid step owns one contiguous batch block
    # presented as a 2-D slab so the input projection is a single MXU matmul.
    x_blk = x.reshape(S, nb, bb, EMBED).transpose(1, 0, 2, 3).reshape(nb, S * bb, EMBED)

    grid_spec = pltpu.PrefetchScalarGridSpec(
        num_scalar_prefetch=0,
        grid=(nb,),
        in_specs=[
            pl.BlockSpec((None, S * bb, EMBED), lambda i: (i, 0, 0)),
            pl.BlockSpec((EMBED, 8 * HIDDEN), lambda i: (0, 0)),
            pl.BlockSpec((1, 8 * HIDDEN), lambda i: (0, 0)),
            pl.BlockSpec((HIDDEN, 4 * HIDDEN), lambda i: (0, 0)),
            pl.BlockSpec((HIDDEN, 4 * HIDDEN), lambda i: (0, 0)),
            pl.BlockSpec((2 * HIDDEN, LANE_PAD), lambda i: (0, 0)),
            pl.BlockSpec((1, LANE_PAD), lambda i: (0, 0)),
        ],
        out_specs=pl.BlockSpec((None, bb, LANE_PAD), lambda i: (i, 0, 0)),
        scratch_shapes=[pltpu.VMEM((S * bb, 8 * HIDDEN), jnp.float32)],
    )

    out = pl.pallas_call(
        textrnn_kernel,
        out_shape=jax.ShapeDtypeStruct((nb, bb, LANE_PAD), jnp.float32),
        grid_spec=grid_spec,
        compiler_params=pltpu.CompilerParams(
            dimension_semantics=("parallel",),          # batch blocks -> 2nd TC on v7x
            vmem_limit_bytes=_vmem_limit_bytes(S, bb),
        ),
    )(x_blk, params["wih_all"], params["b_all"],
      params["whh_f"], params["whh_b"], params["wfc"], params["bfc"])

    # Drop padded batch rows and padded class lanes.
    return out.reshape(Bp, LANE_PAD)[:B, :CLASSES]


def make_params(key):
    """Deterministic synthetic parameters with the shapes nn.LSTM / nn.Linear imply.

    Stored pre-transposed for right-multiplication; gate columns reordered to
    [i, f, o | g] per direction; b = b_ih + b_hh folded into a single bias.
    """
    ks = jax.random.split(key, 9)
    kb = 1.0 / jnp.sqrt(HIDDEN)
    kc = 1.0 / jnp.sqrt(2 * HIDDEN)
    u = lambda kk, shape, bound: jax.random.uniform(kk, shape, jnp.float32, -bound, bound)

    wih_all = jnp.concatenate([u(ks[1], (EMBED, 4 * HIDDEN), kb),
                               u(ks[2], (EMBED, 4 * HIDDEN), kb)], axis=1)
    b_all = jnp.concatenate([u(ks[3], (1, 4 * HIDDEN), kb),
                             u(ks[4], (1, 4 * HIDDEN), kb)], axis=1)

    wfc = u(ks[7], (2 * HIDDEN, CLASSES), kc)
    bfc = u(ks[8], (1, CLASSES), kc)
    # Lane-pad the classifier: zero weights and -1e30 bias on padded columns so the
    # in-kernel 128-wide softmax assigns them zero probability.
    wfc_pad = jnp.zeros((2 * HIDDEN, LANE_PAD), jnp.float32).at[:, :CLASSES].set(wfc)
    bfc_pad = jnp.full((1, LANE_PAD), -1e30, jnp.float32).at[:, :CLASSES].set(bfc)

    return {
        "embedding": jax.random.normal(ks[0], (VOCAB, EMBED), jnp.float32).astype(jnp.bfloat16),
        "wih_all": wih_all.astype(jnp.bfloat16),        # (EMBED, 8H)  fwd||bwd
        "b_all":   b_all,                               # (1, 8H)      f32
        "whh_f":   u(ks[5], (HIDDEN, 4 * HIDDEN), kb).astype(jnp.bfloat16),
        "whh_b":   u(ks[6], (HIDDEN, 4 * HIDDEN), kb).astype(jnp.bfloat16),
        "wfc":     wfc_pad.astype(jnp.bfloat16),        # (2H, 128)
        "bfc":     bfc_pad,                             # (1, 128)     f32
    }


def textrnn_reference(tokens, params):
    """Pure-JAX reference of the same forward pass (same bf16 operand strategy)."""
    emb = params["embedding"][tokens]                   # (B, S, E) bf16
    x = jnp.transpose(emb, (1, 0, 2))                   # (S, B, E)
    S, B, _ = x.shape

    gx = (jnp.dot(x.reshape(S * B, EMBED), params["wih_all"],
                  preferred_element_type=jnp.float32)
          .reshape(S, B, 8 * HIDDEN) + params["b_all"])

    def cell(gates, c):
        sg = jax.nn.sigmoid(gates[:, 0:3 * HIDDEN])
        i, f, o = sg[:, :HIDDEN], sg[:, HIDDEN:2 * HIDDEN], sg[:, 2 * HIDDEN:]
        g = jnp.tanh(gates[:, 3 * HIDDEN:])
        c_new = f * c + i * g
        return o * jnp.tanh(c_new), c_new

    def run_dir(gx_dir, whh):
        def step(carry, g_t):
            h, c = carry
            gates = g_t + jnp.dot(h.astype(jnp.bfloat16), whh,
                                  preferred_element_type=jnp.float32)
            return cell(gates, c), None
        init = (jnp.zeros((B, HIDDEN), jnp.float32),
                jnp.zeros((B, HIDDEN), jnp.float32))
        (h, _), _ = lax.scan(step, init, gx_dir)
        return h

    h_f = run_dir(gx[:, :, 0:4 * HIDDEN], params["whh_f"])
    h_b = run_dir(gx[::-1, :, 4 * HIDDEN:8 * HIDDEN], params["whh_b"])
    logits = (jnp.dot(h_f.astype(jnp.bfloat16), params["wfc"][:HIDDEN, :CLASSES],
                      preferred_element_type=jnp.float32)
              + jnp.dot(h_b.astype(jnp.bfloat16), params["wfc"][HIDDEN:, :CLASSES],
                        preferred_element_type=jnp.float32)
              + params["bfc"][:, :CLASSES])
    return jax.nn.softmax(logits, axis=1)


if __name__ == "__main__":
    key = jax.random.PRNGKey(0)
    pkey, tkey = jax.random.split(key)
    params = make_params(pkey)

    BATCH, SEQ = 2, 8
    tokens = jax.random.randint(tkey, (BATCH, SEQ), 0, VOCAB, dtype=jnp.int32)

    out = jax.block_until_ready(textrnn_forward(tokens, params))
    ref = jax.block_until_ready(textrnn_reference(tokens, params))

    assert out.shape == (BATCH, CLASSES)
    assert jnp.allclose(jnp.sum(out, axis=1), 1.0, atol=5e-3), "softmax rows must sum to 1"
    assert jnp.allclose(out, ref, atol=5e-3, rtol=5e-3), "mismatch vs pure-JAX reference"

    print("KERNEL_OK")
</pallas_src>

<mosaic_0001>
module attributes {stable_mosaic.version = 11 : i64} {
  func.func @textrnn_kernel(%arg0: i32, %arg1: memref<1x64x64xbf16, #tpu.memory_space<vmem>>, %arg2: memref<64x1024xbf16, #tpu.memory_space<vmem>>, %arg3: memref<1x1024xf32, #tpu.memory_space<vmem>>, %arg4: memref<128x512xbf16, #tpu.memory_space<vmem>>, %arg5: memref<128x512xbf16, #tpu.memory_space<vmem>>, %arg6: memref<256x128xbf16, #tpu.memory_space<vmem>>, %arg7: memref<1x128xf32, #tpu.memory_space<vmem>>, %arg8: memref<1x8x128xf32, #tpu.memory_space<vmem>>, %arg9: memref<64x1024xf32, #tpu.memory_space<vmem>>) attributes {dimension_semantics = [#tpu.dimension_semantics<parallel>], iteration_bounds = array<i64: 1>, scalar_prefetch = 0 : i64, scratch_operands = 1 : i64, tpu.core_type = #tpu.core_type<tc>, window_params = [{transform_indices = @transform_0, window_bounds = array<i64: 1, 64, 64>}, {pipeline_mode = #tpu.pipeline_mode<synchronous>, transform_indices = @transform_1, window_bounds = array<i64: 64, 1024>}, {pipeline_mode = #tpu.pipeline_mode<synchronous>, transform_indices = @transform_2, window_bounds = array<i64: 1, 1024>}, {pipeline_mode = #tpu.pipeline_mode<synchronous>, transform_indices = @transform_3, window_bounds = array<i64: 128, 512>}, {pipeline_mode = #tpu.pipeline_mode<synchronous>, transform_indices = @transform_4, window_bounds = array<i64: 128, 512>}, {pipeline_mode = #tpu.pipeline_mode<synchronous>, transform_indices = @transform_5, window_bounds = array<i64: 256, 128>}, {pipeline_mode = #tpu.pipeline_mode<synchronous>, transform_indices = @transform_6, window_bounds = array<i64: 1, 128>}, {transform_indices = @transform_7, window_bounds = array<i64: 1, 8, 128>}]} {
    %c0 = arith.constant 0 : index
    %c0_0 = arith.constant 0 : index
    %c0_1 = arith.constant 0 : index
    %0 = vector.load %arg1[%c0, %c0_0, %c0_1] : memref<1x64x64xbf16, #tpu.memory_space<vmem>>, vector<1x64x64xbf16>
    %1 = vector.shape_cast %0 : vector<1x64x64xbf16> to vector<64x64xbf16>
    %c0_2 = arith.constant 0 : index
    %c0_3 = arith.constant 0 : index
    %2 = vector.load %arg2[%c0_2, %c0_3] : memref<64x1024xbf16, #tpu.memory_space<vmem>>, vector<64x1024xbf16>
    %cst = arith.constant dense<0.000000e+00> : vector<64x1024xf32>
    %3 = tpu.matmul %1, %2, %cst {dimension_numbers = #tpu.dot_dimension_numbers<[1], [0], [0], [1], [0, 0, 1, 1], [], []>} : vector<64x64xbf16>, vector<64x1024xbf16>, vector<64x1024xf32> -> vector<64x1024xf32>
    %c0_4 = arith.constant 0 : index
    %c0_5 = arith.constant 0 : index
    %4 = vector.load %arg3[%c0_4, %c0_5] : memref<1x1024xf32, #tpu.memory_space<vmem>>, vector<1x1024xf32>
    %5 = vector.broadcast %4 : vector<1x1024xf32> to vector<64x1024xf32>
    %6 = arith.addf %3, %5 : vector<64x1024xf32>
    %c0_6 = arith.constant 0 : index
    %c0_7 = arith.constant 0 : index
    %7 = vector.load %arg9[%c0_6, %c0_7] : memref<64x1024xf32, #tpu.memory_space<vmem>>, vector<64x1024xf32>
    tpu.vector_store %arg9[%c0_6, %c0_7], %6 {strides = array<i32>} : memref<64x1024xf32, #tpu.memory_space<vmem>>, vector<64x1024xf32>,
    %c0_8 = arith.constant 0 : index
    %c0_9 = arith.constant 0 : index
    %8 = vector.load %arg4[%c0_8, %c0_9] : memref<128x512xbf16, #tpu.memory_space<vmem>>, vector<128x512xbf16>
    %c0_10 = arith.constant 0 : index
    %c0_11 = arith.constant 0 : index
    %9 = vector.load %arg5[%c0_10, %c0_11] : memref<128x512xbf16, #tpu.memory_space<vmem>>, vector<128x512xbf16>
    %cst_12 = arith.constant 0.000000e+00 : f32
    %10 = vector.broadcast %cst_12 : f32 to vector<8x128xf32>
    %c0_i32 = arith.constant 0 : i32
    %c8_i32 = arith.constant 8 : i32
    %11 = arith.muli %c0_i32, %c8_i32 : i32
    %12 = tpu.assume_multiple %11, 8 : i32
    %13 = arith.index_cast %12 : i32 to index
    %c0_13 = arith.constant 0 : index
    %14 = vector.load %arg9[%13, %c0_13] : memref<64x1024xf32, #tpu.memory_space<vmem>>, vector<8x512xf32>
    %15 = arith.truncf %10 : vector<8x128xf32> to vector<8x128xbf16>
    %cst_14 = arith.constant dense<0.000000e+00> : vector<8x512xf32>
    %16 = tpu.matmul %15, %8, %cst_14 {dimension_numbers = #tpu.dot_dimension_numbers<[1], [0], [0], [1], [0, 0, 1, 1], [], []>} : vector<8x128xbf16>, vector<128x512xbf16>, vector<8x512xf32> -> vector<8x512xf32>
    %17 = arith.addf %14, %16 : vector<8x512xf32>
    %18 = vector.extract_strided_slice %17 {offsets = [0, 0], sizes = [8, 384], strides = [1, 1]} : vector<8x512xf32> to vector<8x384xf32>
    %19 = arith.negf %18 : vector<8x384xf32>
    %20 = math.exp %19 : vector<8x384xf32>
    %cst_15 = arith.constant 1.000000e+00 : f32
    %21 = vector.broadcast %cst_15 : f32 to vector<8x384xf32>
    %22 = arith.addf %21, %20 : vector<8x384xf32>
    %23 = arith.divf %21, %22 : vector<8x384xf32>
    %24 = vector.extract_strided_slice %23 {offsets = [0, 0], sizes = [8, 128], strides = [1, 1]} : vector<8x384xf32> to vector<8x128xf32>
    %25 = vector.extract_strided_slice %23 {offsets = [0, 128], sizes = [8, 128], strides = [1, 1]} : vector<8x384xf32> to vector<8x128xf32>
    %26 = vector.extract_strided_slice %23 {offsets = [0, 256], sizes = [8, 128], strides = [1, 1]} : vector<8x384xf32> to vector<8x128xf32>
    %27 = vector.extract_strided_slice %17 {offsets = [0, 384], sizes = [8, 128], strides = [1, 1]} : vector<8x512xf32> to vector<8x128xf32>
    %28 = math.tanh %27 : vector<8x128xf32>
    %29 = arith.mulf %25, %10 : vector<8x128xf32>
    %30 = arith.mulf %24, %28 : vector<8x128xf32>
    %31 = arith.addf %29, %30 : vector<8x128xf32>
    %32 = math.tanh %31 : vector<8x128xf32>
    %33 = arith.mulf %26, %32 : vector<8x128xf32>
    %c7_i32 = arith.constant 7 : i32
    %34 = arith.subi %c7_i32, %c0_i32 : i32
    %c8_i32_16 = arith.constant 8 : i32
    %35 = arith.muli %34, %c8_i32_16 : i32
    %36 = tpu.assume_multiple %35, 8 : i32
    %37 = arith.index_cast %36 : i32 to index
    %c512 = arith.constant 512 : index
    %38 = vector.load %arg9[%37, %c512] : memref<64x1024xf32, #tpu.memory_space<vmem>>, vector<8x512xf32>
    %39 = arith.truncf %10 : vector<8x128xf32> to vector<8x128xbf16>
    %cst_17 = arith.constant dense<0.000000e+00> : vector<8x512xf32>
    %40 = tpu.matmul %39, %9, %cst_17 {dimension_numbers = #tpu.dot_dimension_numbers<[1], [0], [0], [1], [0, 0, 1, 1], [], []>} : vector<8x128xbf16>, vector<128x512xbf16>, vector<8x512xf32> -> vector<8x512xf32>
    %41 = arith.addf %38, %40 : vector<8x512xf32>
    %42 = vector.extract_strided_slice %41 {offsets = [0, 0], sizes = [8, 384], strides = [1, 1]} : vector<8x512xf32> to vector<8x384xf32>
    %43 = arith.negf %42 : vector<8x384xf32>
    %44 = math.exp %43 : vector<8x384xf32>
    %cst_18 = arith.constant 1.000000e+00 : f32
    %45 = vector.broadcast %cst_18 : f32 to vector<8x384xf32>
    %46 = arith.addf %45, %44 : vector<8x384xf32>
    %47 = arith.divf %45, %46 : vector<8x384xf32>
    %48 = vector.extract_strided_slice %47 {offsets = [0, 0], sizes = [8, 128], strides = [1, 1]} : vector<8x384xf32> to vector<8x128xf32>
    %49 = vector.extract_strided_slice %47 {offsets = [0, 128], sizes = [8, 128], strides = [1, 1]} : vector<8x384xf32> to vector<8x128xf32>
    %50 = vector.extract_strided_slice %47 {offsets = [0, 256], sizes = [8, 128], strides = [1, 1]} : vector<8x384xf32> to vector<8x128xf32>
    %51 = vector.extract_strided_slice %41 {offsets = [0, 384], sizes = [8, 128], strides = [1, 1]} : vector<8x512xf32> to vector<8x128xf32>
    %52 = math.tanh %51 : vector<8x128xf32>
    %53 = arith.mulf %49, %10 : vector<8x128xf32>
    %54 = arith.mulf %48, %52 : vector<8x128xf32>
    %55 = arith.addf %53, %54 : vector<8x128xf32>
    %56 = math.tanh %55 : vector<8x128xf32>
    %57 = arith.mulf %50, %56 : vector<8x128xf32>
    %c1_i32 = arith.constant 1 : i32
    %c8_i32_19 = arith.constant 8 : i32
    %58 = arith.muli %c1_i32, %c8_i32_19 : i32
    %59 = tpu.assume_multiple %58, 8 : i32
    %60 = arith.index_cast %59 : i32 to index
    %c0_20 = arith.constant 0 : index
    %61 = vector.load %arg9[%60, %c0_20] : memref<64x1024xf32, #tpu.memory_space<vmem>>, vector<8x512xf32>
    %62 = arith.truncf %33 : vector<8x128xf32> to vector<8x128xbf16>
    %cst_21 = arith.constant dense<0.000000e+00> : vector<8x512xf32>
    %63 = tpu.matmul %62, %8, %cst_21 {dimension_numbers = #tpu.dot_dimension_numbers<[1], [0], [0], [1], [0, 0, 1, 1], [], []>} : vector<8x128xbf16>, vector<128x512xbf16>, vector<8x512xf32> -> vector<8x512xf32>
    %64 = arith.addf %61, %63 : vector<8x512xf32>
    %65 = vector.extract_strided_slice %64 {offsets = [0, 0], sizes = [8, 384], strides = [1, 1]} : vector<8x512xf32> to vector<8x384xf32>
    %66 = arith.negf %65 : vector<8x384xf32>
    %67 = math.exp %66 : vector<8x384xf32>
    %cst_22 = arith.constant 1.000000e+00 : f32
    %68 = vector.broadcast %cst_22 : f32 to vector<8x384xf32>
    %69 = arith.addf %68, %67 : vector<8x384xf32>
    %70 = arith.divf %68, %69 : vector<8x384xf32>
    %71 = vector.extract_strided_slice %70 {offsets = [0, 0], sizes = [8, 128], strides = [1, 1]} : vector<8x384xf32> to vector<8x128xf32>
    %72 = vector.extract_strided_slice %70 {offsets = [0, 128], sizes = [8, 128], strides = [1, 1]} : vector<8x384xf32> to vector<8x128xf32>
    %73 = vector.extract_strided_slice %70 {offsets = [0, 256], sizes = [8, 128], strides = [1, 1]} : vector<8x384xf32> to vector<8x128xf32>
    %74 = vector.extract_strided_slice %64 {offsets = [0, 384], sizes = [8, 128], strides = [1, 1]} : vector<8x512xf32> to vector<8x128xf32>
    %75 = math.tanh %74 : vector<8x128xf32>
    %76 = arith.mulf %72, %31 : vector<8x128xf32>
    %77 = arith.mulf %71, %75 : vector<8x128xf32>
    %78 = arith.addf %76, %77 : vector<8x128xf32>
    %79 = math.tanh %78 : vector<8x128xf32>
    %80 = arith.mulf %73, %79 : vector<8x128xf32>
    %c7_i32_23 = arith.constant 7 : i32
    %81 = arith.subi %c7_i32_23, %c1_i32 : i32
    %c8_i32_24 = arith.constant 8 : i32
    %82 = arith.muli %81, %c8_i32_24 : i32
    %83 = tpu.assume_multiple %82, 8 : i32
    %84 = arith.index_cast %83 : i32 to index
    %c512_25 = arith.constant 512 : index
    %85 = vector.load %arg9[%84, %c512_25] : memref<64x1024xf32, #tpu.memory_space<vmem>>, vector<8x512xf32>
    %86 = arith.truncf %57 : vector<8x128xf32> to vector<8x128xbf16>
    %cst_26 = arith.constant dense<0.000000e+00> : vector<8x512xf32>
    %87 = tpu.matmul %86, %9, %cst_26 {dimension_numbers = #tpu.dot_dimension_numbers<[1], [0], [0], [1], [0, 0, 1, 1], [], []>} : vector<8x128xbf16>, vector<128x512xbf16>, vector<8x512xf32> -> vector<8x512xf32>
    %88 = arith.addf %85, %87 : vector<8x512xf32>
    %89 = vector.extract_strided_slice %88 {offsets = [0, 0], sizes = [8, 384], strides = [1, 1]} : vector<8x512xf32> to vector<8x384xf32>
    %90 = arith.negf %89 : vector<8x384xf32>
    %91 = math.exp %90 : vector<8x384xf32>
    %cst_27 = arith.constant 1.000000e+00 : f32
    %92 = vector.broadcast %cst_27 : f32 to vector<8x384xf32>
    %93 = arith.addf %92, %91 : vector<8x384xf32>
    %94 = arith.divf %92, %93 : vector<8x384xf32>
    %95 = vector.extract_strided_slice %94 {offsets = [0, 0], sizes = [8, 128], strides = [1, 1]} : vector<8x384xf32> to vector<8x128xf32>
    %96 = vector.extract_strided_slice %94 {offsets = [0, 128], sizes = [8, 128], strides = [1, 1]} : vector<8x384xf32> to vector<8x128xf32>
    %97 = vector.extract_strided_slice %94 {offsets = [0, 256], sizes = [8, 128], strides = [1, 1]} : vector<8x384xf32> to vector<8x128xf32>
    %98 = vector.extract_strided_slice %88 {offsets = [0, 384], sizes = [8, 128], strides = [1, 1]} : vector<8x512xf32> to vector<8x128xf32>
    %99 = math.tanh %98 : vector<8x128xf32>
    %100 = arith.mulf %96, %55 : vector<8x128xf32>
    %101 = arith.mulf %95, %99 : vector<8x128xf32>
    %102 = arith.addf %100, %101 : vector<8x128xf32>
    %103 = math.tanh %102 : vector<8x128xf32>
    %104 = arith.mulf %97, %103 : vector<8x128xf32>
    %c2_i32 = arith.constant 2 : i32
    %c8_i32_28 = arith.constant 8 : i32
    %105 = arith.muli %c2_i32, %c8_i32_28 : i32
    %106 = tpu.assume_multiple %105, 8 : i32
    %107 = arith.index_cast %106 : i32 to index
    %c0_29 = arith.constant 0 : index
    %108 = vector.load %arg9[%107, %c0_29] : memref<64x1024xf32, #tpu.memory_space<vmem>>, vector<8x512xf32>
    %109 = arith.truncf %80 : vector<8x128xf32> to vector<8x128xbf16>
    %cst_30 = arith.constant dense<0.000000e+00> : vector<8x512xf32>
    %110 = tpu.matmul %109, %8, %cst_30 {dimension_numbers = #tpu.dot_dimension_numbers<[1], [0], [0], [1], [0, 0, 1, 1], [], []>} : vector<8x128xbf16>, vector<128x512xbf16>, vector<8x512xf32> -> vector<8x512xf32>
    %111 = arith.addf %108, %110 : vector<8x512xf32>
    %112 = vector.extract_strided_slice %111 {offsets = [0, 0], sizes = [8, 384], strides = [1, 1]} : vector<8x512xf32> to vector<8x384xf32>
    %113 = arith.negf %112 : vector<8x384xf32>
    %114 = math.exp %113 : vector<8x384xf32>
    %cst_31 = arith.constant 1.000000e+00 : f32
    %115 = vector.broadcast %cst_31 : f32 to vector<8x384xf32>
    %116 = arith.addf %115, %114 : vector<8x384xf32>
    %117 = arith.divf %115, %116 : vector<8x384xf32>
    %118 = vector.extract_strided_slice %117 {offsets = [0, 0], sizes = [8, 128], strides = [1, 1]} : vector<8x384xf32> to vector<8x128xf32>
    %119 = vector.extract_strided_slice %117 {offsets = [0, 128], sizes = [8, 128], strides = [1, 1]} : vector<8x384xf32> to vector<8x128xf32>
    %120 = vector.extract_strided_slice %117 {offsets = [0, 256], sizes = [8, 128], strides = [1, 1]} : vector<8x384xf32> to vector<8x128xf32>
    %121 = vector.extract_strided_slice %111 {offsets = [0, 384], sizes = [8, 128], strides = [1, 1]} : vector<8x512xf32> to vector<8x128xf32>
    %122 = math.tanh %121 : vector<8x128xf32>
    %123 = arith.mulf %119, %78 : vector<8x128xf32>
    %124 = arith.mulf %118, %122 : vector<8x128xf32>
    %125 = arith.addf %123, %124 : vector<8x128xf32>
    %126 = math.tanh %125 : vector<8x128xf32>
    %127 = arith.mulf %120, %126 : vector<8x128xf32>
    %c7_i32_32 = arith.constant 7 : i32
    %128 = arith.subi %c7_i32_32, %c2_i32 : i32
    %c8_i32_33 = arith.constant 8 : i32
    %129 = arith.muli %128, %c8_i32_33 : i32
    %130 = tpu.assume_multiple %129, 8 : i32
    %131 = arith.index_cast %130 : i32 to index
    %c512_34 = arith.constant 512 : index
    %132 = vector.load %arg9[%131, %c512_34] : memref<64x1024xf32, #tpu.memory_space<vmem>>, vector<8x512xf32>
    %133 = arith.truncf %104 : vector<8x128xf32> to vector<8x128xbf16>
    %cst_35 = arith.constant dense<0.000000e+00> : vector<8x512xf32>
    %134 = tpu.matmul %133, %9, %cst_35 {dimension_numbers = #tpu.dot_dimension_numbers<[1], [0], [0], [1], [0, 0, 1, 1], [], []>} : vector<8x128xbf16>, vector<128x512xbf16>, vector<8x512xf32> -> vector<8x512xf32>
    %135 = arith.addf %132, %134 : vector<8x512xf32>
    %136 = vector.extract_strided_slice %135 {offsets = [0, 0], sizes = [8, 384], strides = [1, 1]} : vector<8x512xf32> to vector<8x384xf32>
    %137 = arith.negf %136 : vector<8x384xf32>
    %138 = math.exp %137 : vector<8x384xf32>
    %cst_36 = arith.constant 1.000000e+00 : f32
    %139 = vector.broadcast %cst_36 : f32 to vector<8x384xf32>
    %140 = arith.addf %139, %138 : vector<8x384xf32>
    %141 = arith.divf %139, %140 : vector<8x384xf32>
    %142 = vector.extract_strided_slice %141 {offsets = [0, 0], sizes = [8, 128], strides = [1, 1]} : vector<8x384xf32> to vector<8x128xf32>
    %143 = vector.extract_strided_slice %141 {offsets = [0, 128], sizes = [8, 128], strides = [1, 1]} : vector<8x384xf32> to vector<8x128xf32>
    %144 = vector.extract_strided_slice %141 {offsets = [0, 256], sizes = [8, 128], strides = [1, 1]} : vector<8x384xf32> to vector<8x128xf32>
    %145 = vector.extract_strided_slice %135 {offsets = [0, 384], sizes = [8, 128], strides = [1, 1]} : vector<8x512xf32> to vector<8x128xf32>
    %146 = math.tanh %145 : vector<8x128xf32>
    %147 = arith.mulf %143, %102 : vector<8x128xf32>
    %148 = arith.mulf %142, %146 : vector<8x128xf32>
    %149 = arith.addf %147, %148 : vector<8x128xf32>
    %150 = math.tanh %149 : vector<8x128xf32>
    %151 = arith.mulf %144, %150 : vector<8x128xf32>
    %c3_i32 = arith.constant 3 : i32
    %c8_i32_37 = arith.constant 8 : i32
    %152 = arith.muli %c3_i32, %c8_i32_37 : i32
    %153 = tpu.assume_multiple %152, 8 : i32
    %154 = arith.index_cast %153 : i32 to index
    %c0_38 = arith.constant 0 : index
    %155 = vector.load %arg9[%154, %c0_38] : memref<64x1024xf32, #tpu.memory_space<vmem>>, vector<8x512xf32>
    %156 = arith.truncf %127 : vector<8x128xf32> to vector<8x128xbf16>
    %cst_39 = arith.constant dense<0.000000e+00> : vector<8x512xf32>
    %157 = tpu.matmul %156, %8, %cst_39 {dimension_numbers = #tpu.dot_dimension_numbers<[1], [0], [0], [1], [0, 0, 1, 1], [], []>} : vector<8x128xbf16>, vector<128x512xbf16>, vector<8x512xf32> -> vector<8x512xf32>
    %158 = arith.addf %155, %157 : vector<8x512xf32>
    %159 = vector.extract_strided_slice %158 {offsets = [0, 0], sizes = [8, 384], strides = [1, 1]} : vector<8x512xf32> to vector<8x384xf32>
    %160 = arith.negf %159 : vector<8x384xf32>
    %161 = math.exp %160 : vector<8x384xf32>
    %cst_40 = arith.constant 1.000000e+00 : f32
    %162 = vector.broadcast %cst_40 : f32 to vector<8x384xf32>
    %163 = arith.addf %162, %161 : vector<8x384xf32>
    %164 = arith.divf %162, %163 : vector<8x384xf32>
    %165 = vector.extract_strided_slice %164 {offsets = [0, 0], sizes = [8, 128], strides = [1, 1]} : vector<8x384xf32> to vector<8x128xf32>
    %166 = vector.extract_strided_slice %164 {offsets = [0, 128], sizes = [8, 128], strides = [1, 1]} : vector<8x384xf32> to vector<8x128xf32>
    %167 = vector.extract_strided_slice %164 {offsets = [0, 256], sizes = [8, 128], strides = [1, 1]} : vector<8x384xf32> to vector<8x128xf32>
    %168 = vector.extract_strided_slice %158 {offsets = [0, 384], sizes = [8, 128], strides = [1, 1]} : vector<8x512xf32> to vector<8x128xf32>
    %169 = math.tanh %168 : vector<8x128xf32>
    %170 = arith.mulf %166, %125 : vector<8x128xf32>
    %171 = arith.mulf %165, %169 : vector<8x128xf32>
    %172 = arith.addf %170, %171 : vector<8x128xf32>
    %173 = math.tanh %172 : vector<8x128xf32>
    %174 = arith.mulf %167, %173 : vector<8x128xf32>
    %c7_i32_41 = arith.constant 7 : i32
    %175 = arith.subi %c7_i32_41, %c3_i32 : i32
    %c8_i32_42 = arith.constant 8 : i32
    %176 = arith.muli %175, %c8_i32_42 : i32
    %177 = tpu.assume_multiple %176, 8 : i32
    %178 = arith.index_cast %177 : i32 to index
    %c512_43 = arith.constant 512 : index
    %179 = vector.load %arg9[%178, %c512_43] : memref<64x1024xf32, #tpu.memory_space<vmem>>, vector<8x512xf32>
    %180 = arith.truncf %151 : vector<8x128xf32> to vector<8x128xbf16>
    %cst_44 = arith.constant dense<0.000000e+00> : vector<8x512xf32>
    %181 = tpu.matmul %180, %9, %cst_44 {dimension_numbers = #tpu.dot_dimension_numbers<[1], [0], [0], [1], [0, 0, 1, 1], [], []>} : vector<8x128xbf16>, vector<128x512xbf16>, vector<8x512xf32> -> vector<8x512xf32>
    %182 = arith.addf %179, %181 : vector<8x512xf32>
    %183 = vector.extract_strided_slice %182 {offsets = [0, 0], sizes = [8, 384], strides = [1, 1]} : vector<8x512xf32> to vector<8x384xf32>
    %184 = arith.negf %183 : vector<8x384xf32>
    %185 = math.exp %184 : vector<8x384xf32>
    %cst_45 = arith.constant 1.000000e+00 : f32
    %186 = vector.broadcast %cst_45 : f32 to vector<8x384xf32>
    %187 = arith.addf %186, %185 : vector<8x384xf32>
    %188 = arith.divf %186, %187 : vector<8x384xf32>
    %189 = vector.extract_strided_slice %188 {offsets = [0, 0], sizes = [8, 128], strides = [1, 1]} : vector<8x384xf32> to vector<8x128xf32>
    %190 = vector.extract_strided_slice %188 {offsets = [0, 128], sizes = [8, 128], strides = [1, 1]} : vector<8x384xf32> to vector<8x128xf32>
    %191 = vector.extract_strided_slice %188 {offsets = [0, 256], sizes = [8, 128], strides = [1, 1]} : vector<8x384xf32> to vector<8x128xf32>
    %192 = vector.extract_strided_slice %182 {offsets = [0, 384], sizes = [8, 128], strides = [1, 1]} : vector<8x512xf32> to vector<8x128xf32>
    %193 = math.tanh %192 : vector<8x128xf32>
    %194 = arith.mulf %190, %149 : vector<8x128xf32>
    %195 = arith.mulf %189, %193 : vector<8x128xf32>
    %196 = arith.addf %194, %195 : vector<8x128xf32>
    %197 = math.tanh %196 : vector<8x128xf32>
    %198 = arith.mulf %191, %197 : vector<8x128xf32>
    %c4_i32 = arith.constant 4 : i32
    %c8_i32_46 = arith.constant 8 : i32
    %199 = arith.muli %c4_i32, %c8_i32_46 : i32
    %200 = tpu.assume_multiple %199, 8 : i32
    %201 = arith.index_cast %200 : i32 to index
    %c0_47 = arith.constant 0 : index
    %202 = vector.load %arg9[%201, %c0_47] : memref<64x1024xf32, #tpu.memory_space<vmem>>, vector<8x512xf32>
    %203 = arith.truncf %174 : vector<8x128xf32> to vector<8x128xbf16>
    %cst_48 = arith.constant dense<0.000000e+00> : vector<8x512xf32>
    %204 = tpu.matmul %203, %8, %cst_48 {dimension_numbers = #tpu.dot_dimension_numbers<[1], [0], [0], [1], [0, 0, 1, 1], [], []>} : vector<8x128xbf16>, vector<128x512xbf16>, vector<8x512xf32> -> vector<8x512xf32>
    %205 = arith.addf %202, %204 : vector<8x512xf32>
    %206 = vector.extract_strided_slice %205 {offsets = [0, 0], sizes = [8, 384], strides = [1, 1]} : vector<8x512xf32> to vector<8x384xf32>
    %207 = arith.negf %206 : vector<8x384xf32>
    %208 = math.exp %207 : vector<8x384xf32>
    %cst_49 = arith.constant 1.000000e+00 : f32
    %209 = vector.broadcast %cst_49 : f32 to vector<8x384xf32>
    %210 = arith.addf %209, %208 : vector<8x384xf32>
    %211 = arith.divf %209, %210 : vector<8x384xf32>
    %212 = vector.extract_strided_slice %211 {offsets = [0, 0], sizes = [8, 128], strides = [1, 1]} : vector<8x384xf32> to vector<8x128xf32>
    %213 = vector.extract_strided_slice %211 {offsets = [0, 128], sizes = [8, 128], strides = [1, 1]} : vector<8x384xf32> to vector<8x128xf32>
    %214 = vector.extract_strided_slice %211 {offsets = [0, 256], sizes = [8, 128], strides = [1, 1]} : vector<8x384xf32> to vector<8x128xf32>
    %215 = vector.extract_strided_slice %205 {offsets = [0, 384], sizes = [8, 128], strides = [1, 1]} : vector<8x512xf32> to vector<8x128xf32>
    %216 = math.tanh %215 : vector<8x128xf32>
    %217 = arith.mulf %213, %172 : vector<8x128xf32>
    %218 = arith.mulf %212, %216 : vector<8x128xf32>
    %219 = arith.addf %217, %218 : vector<8x128xf32>
    %220 = math.tanh %219 : vector<8x128xf32>
    %221 = arith.mulf %214, %220 : vector<8x128xf32>
    %c7_i32_50 = arith.constant 7 : i32
    %222 = arith.subi %c7_i32_50, %c4_i32 : i32
    %c8_i32_51 = arith.constant 8 : i32
    %223 = arith.muli %222, %c8_i32_51 : i32
    %224 = tpu.assume_multiple %223, 8 : i32
    %225 = arith.index_cast %224 : i32 to index
    %c512_52 = arith.constant 512 : index
    %226 = vector.load %arg9[%225, %c512_52] : memref<64x1024xf32, #tpu.memory_space<vmem>>, vector<8x512xf32>
    %227 = arith.truncf %198 : vector<8x128xf32> to vector<8x128xbf16>
    %cst_53 = arith.constant dense<0.000000e+00> : vector<8x512xf32>
    %228 = tpu.matmul %227, %9, %cst_53 {dimension_numbers = #tpu.dot_dimension_numbers<[1], [0], [0], [1], [0, 0, 1, 1], [], []>} : vector<8x128xbf16>, vector<128x512xbf16>, vector<8x512xf32> -> vector<8x512xf32>
    %229 = arith.addf %226, %228 : vector<8x512xf32>
    %230 = vector.extract_strided_slice %229 {offsets = [0, 0], sizes = [8, 384], strides = [1, 1]} : vector<8x512xf32> to vector<8x384xf32>
    %231 = arith.negf %230 : vector<8x384xf32>
    %232 = math.exp %231 : vector<8x384xf32>
    %cst_54 = arith.constant 1.000000e+00 : f32
    %233 = vector.broadcast %cst_54 : f32 to vector<8x384xf32>
    %234 = arith.addf %233, %232 : vector<8x384xf32>
    %235 = arith.divf %233, %234 : vector<8x384xf32>
    %236 = vector.extract_strided_slice %235 {offsets = [0, 0], sizes = [8, 128], strides = [1, 1]} : vector<8x384xf32> to vector<8x128xf32>
    %237 = vector.extract_strided_slice %235 {offsets = [0, 128], sizes = [8, 128], strides = [1, 1]} : vector<8x384xf32> to vector<8x128xf32>
    %238 = vector.extract_strided_slice %235 {offsets = [0, 256], sizes = [8, 128], strides = [1, 1]} : vector<8x384xf32> to vector<8x128xf32>
    %239 = vector.extract_strided_slice %229 {offsets = [0, 384], sizes = [8, 128], strides = [1, 1]} : vector<8x512xf32> to vector<8x128xf32>
    %240 = math.tanh %239 : vector<8x128xf32>
    %241 = arith.mulf %237, %196 : vector<8x128xf32>
    %242 = arith.mulf %236, %240 : vector<8x128xf32>
    %243 = arith.addf %241, %242 : vector<8x128xf32>
    %244 = math.tanh %243 : vector<8x128xf32>
    %245 = arith.mulf %238, %244 : vector<8x128xf32>
    %c5_i32 = arith.constant 5 : i32
    %c8_i32_55 = arith.constant 8 : i32
    %246 = arith.muli %c5_i32, %c8_i32_55 : i32
    %247 = tpu.assume_multiple %246, 8 : i32
    %248 = arith.index_cast %247 : i32 to index
    %c0_56 = arith.constant 0 : index
    %249 = vector.load %arg9[%248, %c0_56] : memref<64x1024xf32, #tpu.memory_space<vmem>>, vector<8x512xf32>
    %250 = arith.truncf %221 : vector<8x128xf32> to vector<8x128xbf16>
    %cst_57 = arith.constant dense<0.000000e+00> : vector<8x512xf32>
    %251 = tpu.matmul %250, %8, %cst_57 {dimension_numbers = #tpu.dot_dimension_numbers<[1], [0], [0], [1], [0, 0, 1, 1], [], []>} : vector<8x128xbf16>, vector<128x512xbf16>, vector<8x512xf32> -> vector<8x512xf32>
    %252 = arith.addf %249, %251 : vector<8x512xf32>
    %253 = vector.extract_strided_slice %252 {offsets = [0, 0], sizes = [8, 384], strides = [1, 1]} : vector<8x512xf32> to vector<8x384xf32>
    %254 = arith.negf %253 : vector<8x384xf32>
    %255 = math.exp %254 : vector<8x384xf32>
    %cst_58 = arith.constant 1.000000e+00 : f32
    %256 = vector.broadcast %cst_58 : f32 to vector<8x384xf32>
    %257 = arith.addf %256, %255 : vector<8x384xf32>
    %258 = arith.divf %256, %257 : vector<8x384xf32>
    %259 = vector.extract_strided_slice %258 {offsets = [0, 0], sizes = [8, 128], strides = [1, 1]} : vector<8x384xf32> to vector<8x128xf32>
    %260 = vector.extract_strided_slice %258 {offsets = [0, 128], sizes = [8, 128], strides = [1, 1]} : vector<8x384xf32> to vector<8x128xf32>
    %261 = vector.extract_strided_slice %258 {offsets = [0, 256], sizes = [8, 128], strides = [1, 1]} : vector<8x384xf32> to vector<8x128xf32>
    %262 = vector.extract_strided_slice %252 {offsets = [0, 384], sizes = [8, 128], strides = [1, 1]} : vector<8x512xf32> to vector<8x128xf32>
    %263 = math.tanh %262 : vector<8x128xf32>
    %264 = arith.mulf %260, %219 : vector<8x128xf32>
    %265 = arith.mulf %259, %263 : vector<8x128xf32>
    %266 = arith.addf %264, %265 : vector<8x128xf32>
    %267 = math.tanh %266 : vector<8x128xf32>
    %268 = arith.mulf %261, %267 : vector<8x128xf32>
    %c7_i32_59 = arith.constant 7 : i32
    %269 = arith.subi %c7_i32_59, %c5_i32 : i32
    %c8_i32_60 = arith.constant 8 : i32
    %270 = arith.muli %269, %c8_i32_60 : i32
    %271 = tpu.assume_multiple %270, 8 : i32
    %272 = arith.index_cast %271 : i32 to index
    %c512_61 = arith.constant 512 : index
    %273 = vector.load %arg9[%272, %c512_61] : memref<64x1024xf32, #tpu.memory_space<vmem>>, vector<8x512xf32>
    %274 = arith.truncf %245 : vector<8x128xf32> to vector<8x128xbf16>
    %cst_62 = arith.constant dense<0.000000e+00> : vector<8x512xf32>
    %275 = tpu.matmul %274, %9, %cst_62 {dimension_numbers = #tpu.dot_dimension_numbers<[1], [0], [0], [1], [0, 0, 1, 1], [], []>} : vector<8x128xbf16>, vector<128x512xbf16>, vector<8x512xf32> -> vector<8x512xf32>
    %276 = arith.addf %273, %275 : vector<8x512xf32>
    %277 = vector.extract_strided_slice %276 {offsets = [0, 0], sizes = [8, 384], strides = [1, 1]} : vector<8x512xf32> to vector<8x384xf32>
    %278 = arith.negf %277 : vector<8x384xf32>
    %279 = math.exp %278 : vector<8x384xf32>
    %cst_63 = arith.constant 1.000000e+00 : f32
    %280 = vector.broadcast %cst_63 : f32 to vector<8x384xf32>
    %281 = arith.addf %280, %279 : vector<8x384xf32>
    %282 = arith.divf %280, %281 : vector<8x384xf32>
    %283 = vector.extract_strided_slice %282 {offsets = [0, 0], sizes = [8, 128], strides = [1, 1]} : vector<8x384xf32> to vector<8x128xf32>
    %284 = vector.extract_strided_slice %282 {offsets = [0, 128], sizes = [8, 128], strides = [1, 1]} : vector<8x384xf32> to vector<8x128xf32>
    %285 = vector.extract_strided_slice %282 {offsets = [0, 256], sizes = [8, 128], strides = [1, 1]} : vector<8x384xf32> to vector<8x128xf32>
    %286 = vector.extract_strided_slice %276 {offsets = [0, 384], sizes = [8, 128], strides = [1, 1]} : vector<8x512xf32> to vector<8x128xf32>
    %287 = math.tanh %286 : vector<8x128xf32>
    %288 = arith.mulf %284, %243 : vector<8x128xf32>
    %289 = arith.mulf %283, %287 : vector<8x128xf32>
    %290 = arith.addf %288, %289 : vector<8x128xf32>
    %291 = math.tanh %290 : vector<8x128xf32>
    %292 = arith.mulf %285, %291 : vector<8x128xf32>
    %c6_i32 = arith.constant 6 : i32
    %c8_i32_64 = arith.constant 8 : i32
    %293 = arith.muli %c6_i32, %c8_i32_64 : i32
    %294 = tpu.assume_multiple %293, 8 : i32
    %295 = arith.index_cast %294 : i32 to index
    %c0_65 = arith.constant 0 : index
    %296 = vector.load %arg9[%295, %c0_65] : memref<64x1024xf32, #tpu.memory_space<vmem>>, vector<8x512xf32>
    %297 = arith.truncf %268 : vector<8x128xf32> to vector<8x128xbf16>
    %cst_66 = arith.constant dense<0.000000e+00> : vector<8x512xf32>
    %298 = tpu.matmul %297, %8, %cst_66 {dimension_numbers = #tpu.dot_dimension_numbers<[1], [0], [0], [1], [0, 0, 1, 1], [], []>} : vector<8x128xbf16>, vector<128x512xbf16>, vector<8x512xf32> -> vector<8x512xf32>
    %299 = arith.addf %296, %298 : vector<8x512xf32>
    %300 = vector.extract_strided_slice %299 {offsets = [0, 0], sizes = [8, 384], strides = [1, 1]} : vector<8x512xf32> to vector<8x384xf32>
    %301 = arith.negf %300 : vector<8x384xf32>
    %302 = math.exp %301 : vector<8x384xf32>
    %cst_67 = arith.constant 1.000000e+00 : f32
    %303 = vector.broadcast %cst_67 : f32 to vector<8x384xf32>
    %304 = arith.addf %303, %302 : vector<8x384xf32>
    %305 = arith.divf %303, %304 : vector<8x384xf32>
    %306 = vector.extract_strided_slice %305 {offsets = [0, 0], sizes = [8, 128], strides = [1, 1]} : vector<8x384xf32> to vector<8x128xf32>
    %307 = vector.extract_strided_slice %305 {offsets = [0, 128], sizes = [8, 128], strides = [1, 1]} : vector<8x384xf32> to vector<8x128xf32>
    %308 = vector.extract_strided_slice %305 {offsets = [0, 256], sizes = [8, 128], strides = [1, 1]} : vector<8x384xf32> to vector<8x128xf32>
    %309 = vector.extract_strided_slice %299 {offsets = [0, 384], sizes = [8, 128], strides = [1, 1]} : vector<8x512xf32> to vector<8x128xf32>
    %310 = math.tanh %309 : vector<8x128xf32>
    %311 = arith.mulf %307, %266 : vector<8x128xf32>
    %312 = arith.mulf %306, %310 : vector<8x128xf32>
    %313 = arith.addf %311, %312 : vector<8x128xf32>
    %314 = math.tanh %313 : vector<8x128xf32>
    %315 = arith.mulf %308, %314 : vector<8x128xf32>
    %c7_i32_68 = arith.constant 7 : i32
    %316 = arith.subi %c7_i32_68, %c6_i32 : i32
    %c8_i32_69 = arith.constant 8 : i32
    %317 = arith.muli %316, %c8_i32_69 : i32
    %318 = tpu.assume_multiple %317, 8 : i32
    %319 = arith.index_cast %318 : i32 to index
    %c512_70 = arith.constant 512 : index
    %320 = vector.load %arg9[%319, %c512_70] : memref<64x1024xf32, #tpu.memory_space<vmem>>, vector<8x512xf32>
    %321 = arith.truncf %292 : vector<8x128xf32> to vector<8x128xbf16>
    %cst_71 = arith.constant dense<0.000000e+00> : vector<8x512xf32>
    %322 = tpu.matmul %321, %9, %cst_71 {dimension_numbers = #tpu.dot_dimension_numbers<[1], [0], [0], [1], [0, 0, 1, 1], [], []>} : vector<8x128xbf16>, vector<128x512xbf16>, vector<8x512xf32> -> vector<8x512xf32>
    %323 = arith.addf %320, %322 : vector<8x512xf32>
    %324 = vector.extract_strided_slice %323 {offsets = [0, 0], sizes = [8, 384], strides = [1, 1]} : vector<8x512xf32> to vector<8x384xf32>
    %325 = arith.negf %324 : vector<8x384xf32>
    %326 = math.exp %325 : vector<8x384xf32>
    %cst_72 = arith.constant 1.000000e+00 : f32
    %327 = vector.broadcast %cst_72 : f32 to vector<8x384xf32>
    %328 = arith.addf %327, %326 : vector<8x384xf32>
    %329 = arith.divf %327, %328 : vector<8x384xf32>
    %330 = vector.extract_strided_slice %329 {offsets = [0, 0], sizes = [8, 128], strides = [1, 1]} : vector<8x384xf32> to vector<8x128xf32>
    %331 = vector.extract_strided_slice %329 {offsets = [0, 128], sizes = [8, 128], strides = [1, 1]} : vector<8x384xf32> to vector<8x128xf32>
    %332 = vector.extract_strided_slice %329 {offsets = [0, 256], sizes = [8, 128], strides = [1, 1]} : vector<8x384xf32> to vector<8x128xf32>
    %333 = vector.extract_strided_slice %323 {offsets = [0, 384], sizes = [8, 128], strides = [1, 1]} : vector<8x512xf32> to vector<8x128xf32>
    %334 = math.tanh %333 : vector<8x128xf32>
    %335 = arith.mulf %331, %290 : vector<8x128xf32>
    %336 = arith.mulf %330, %334 : vector<8x128xf32>
    %337 = arith.addf %335, %336 : vector<8x128xf32>
    %338 = math.tanh %337 : vector<8x128xf32>
    %339 = arith.mulf %332, %338 : vector<8x128xf32>
    %c7_i32_73 = arith.constant 7 : i32
    %c8_i32_74 = arith.constant 8 : i32
    %340 = arith.muli %c7_i32_73, %c8_i32_74 : i32
    %341 = tpu.assume_multiple %340, 8 : i32
    %342 = arith.index_cast %341 : i32 to index
    %c0_75 = arith.constant 0 : index
    %343 = vector.load %arg9[%342, %c0_75] : memref<64x1024xf32, #tpu.memory_space<vmem>>, vector<8x512xf32>
    %344 = arith.truncf %315 : vector<8x128xf32> to vector<8x128xbf16>
    %cst_76 = arith.constant dense<0.000000e+00> : vector<8x512xf32>
    %345 = tpu.matmul %344, %8, %cst_76 {dimension_numbers = #tpu.dot_dimension_numbers<[1], [0], [0], [1], [0, 0, 1, 1], [], []>} : vector<8x128xbf16>, vector<128x512xbf16>, vector<8x512xf32> -> vector<8x512xf32>
    %346 = arith.addf %343, %345 : vector<8x512xf32>
    %347 = vector.extract_strided_slice %346 {offsets = [0, 0], sizes = [8, 384], strides = [1, 1]} : vector<8x512xf32> to vector<8x384xf32>
    %348 = arith.negf %347 : vector<8x384xf32>
    %349 = math.exp %348 : vector<8x384xf32>
    %cst_77 = arith.constant 1.000000e+00 : f32
    %350 = vector.broadcast %cst_77 : f32 to vector<8x384xf32>
    %351 = arith.addf %350, %349 : vector<8x384xf32>
    %352 = arith.divf %350, %351 : vector<8x384xf32>
    %353 = vector.extract_strided_slice %352 {offsets = [0, 0], sizes = [8, 128], strides = [1, 1]} : vector<8x384xf32> to vector<8x128xf32>
    %354 = vector.extract_strided_slice %352 {offsets = [0, 128], sizes = [8, 128], strides = [1, 1]} : vector<8x384xf32> to vector<8x128xf32>
    %355 = vector.extract_strided_slice %352 {offsets = [0, 256], sizes = [8, 128], strides = [1, 1]} : vector<8x384xf32> to vector<8x128xf32>
    %356 = vector.extract_strided_slice %346 {offsets = [0, 384], sizes = [8, 128], strides = [1, 1]} : vector<8x512xf32> to vector<8x128xf32>
    %357 = math.tanh %356 : vector<8x128xf32>
    %358 = arith.mulf %354, %313 : vector<8x128xf32>
    %359 = arith.mulf %353, %357 : vector<8x128xf32>
    %360 = arith.addf %358, %359 : vector<8x128xf32>
    %361 = math.tanh %360 : vector<8x128xf32>
    %362 = arith.mulf %355, %361 : vector<8x128xf32>
    %c7_i32_78 = arith.constant 7 : i32
    %363 = arith.subi %c7_i32_78, %c7_i32_73 : i32
    %c8_i32_79 = arith.constant 8 : i32
    %364 = arith.muli %363, %c8_i32_79 : i32
    %365 = tpu.assume_multiple %364, 8 : i32
    %366 = arith.index_cast %365 : i32 to index
    %c512_80 = arith.constant 512 : index
    %367 = vector.load %arg9[%366, %c512_80] : memref<64x1024xf32, #tpu.memory_space<vmem>>, vector<8x512xf32>
    %368 = arith.truncf %339 : vector<8x128xf32> to vector<8x128xbf16>
    %cst_81 = arith.constant dense<0.000000e+00> : vector<8x512xf32>
    %369 = tpu.matmul %368, %9, %cst_81 {dimension_numbers = #tpu.dot_dimension_numbers<[1], [0], [0], [1], [0, 0, 1, 1], [], []>} : vector<8x128xbf16>, vector<128x512xbf16>, vector<8x512xf32> -> vector<8x512xf32>
    %370 = arith.addf %367, %369 : vector<8x512xf32>
    %371 = vector.extract_strided_slice %370 {offsets = [0, 0], sizes = [8, 384], strides = [1, 1]} : vector<8x512xf32> to vector<8x384xf32>
    %372 = arith.negf %371 : vector<8x384xf32>
    %373 = math.exp %372 : vector<8x384xf32>
    %cst_82 = arith.constant 1.000000e+00 : f32
    %374 = vector.broadcast %cst_82 : f32 to vector<8x384xf32>
    %375 = arith.addf %374, %373 : vector<8x384xf32>
    %376 = arith.divf %374, %375 : vector<8x384xf32>
    %377 = vector.extract_strided_slice %376 {offsets = [0, 0], sizes = [8, 128], strides = [1, 1]} : vector<8x384xf32> to vector<8x128xf32>
    %378 = vector.extract_strided_slice %376 {offsets = [0, 128], sizes = [8, 128], strides = [1, 1]} : vector<8x384xf32> to vector<8x128xf32>
    %379 = vector.extract_strided_slice %376 {offsets = [0, 256], sizes = [8, 128], strides = [1, 1]} : vector<8x384xf32> to vector<8x128xf32>
    %380 = vector.extract_strided_slice %370 {offsets = [0, 384], sizes = [8, 128], strides = [1, 1]} : vector<8x512xf32> to vector<8x128xf32>
    %381 = math.tanh %380 : vector<8x128xf32>
    %382 = arith.mulf %378, %337 : vector<8x128xf32>
    %383 = arith.mulf %377, %381 : vector<8x128xf32>
    %384 = arith.addf %382, %383 : vector<8x128xf32>
    %385 = math.tanh %384 : vector<8x128xf32>
    %386 = arith.mulf %379, %385 : vector<8x128xf32>
    %c8_i32_83 = arith.constant 8 : i32
    %387 = arith.truncf %362 : vector<8x128xf32> to vector<8x128xbf16>
    %c0_84 = arith.constant 0 : index
    %c0_85 = arith.constant 0 : index
    %388 = vector.load %arg6[%c0_84, %c0_85] : memref<256x128xbf16, #tpu.memory_space<vmem>>, vector<128x128xbf16>
    %cst_86 = arith.constant dense<0.000000e+00> : vector<8x128xf32>
    %389 = tpu.matmul %387, %388, %cst_86 {dimension_numbers = #tpu.dot_dimension_numbers<[1], [0], [0], [1], [0, 0, 1, 1], [], []>} : vector<8x128xbf16>, vector<128x128xbf16>, vector<8x128xf32> -> vector<8x128xf32>
    %390 = arith.truncf %386 : vector<8x128xf32> to vector<8x128xbf16>
    %c128 = arith.constant 128 : index
    %c0_87 = arith.constant 0 : index
    %391 = vector.load %arg6[%c128, %c0_87] : memref<256x128xbf16, #tpu.memory_space<vmem>>, vector<128x128xbf16>
    %cst_88 = arith.constant dense<0.000000e+00> : vector<8x128xf32>
    %392 = tpu.matmul %390, %391, %cst_88 {dimension_numbers = #tpu.dot_dimension_numbers<[1], [0], [0], [1], [0, 0, 1, 1], [], []>} : vector<8x128xbf16>, vector<128x128xbf16>, vector<8x128xf32> -> vector<8x128xf32>
    %393 = arith.addf %389, %392 : vector<8x128xf32>
    %c0_89 = arith.constant 0 : index
    %c0_90 = arith.constant 0 : index
    %394 = vector.load %arg7[%c0_89, %c0_90] : memref<1x128xf32, #tpu.memory_space<vmem>>, vector<1x128xf32>
    %395 = vector.broadcast %394 : vector<1x128xf32> to vector<8x128xf32>
    %396 = arith.addf %393, %395 : vector<8x128xf32>
    %cst_91 = arith.constant dense<0xFF800000> : vector<8xf32>
    %397 = vector.multi_reduction <maximumf>, %396, %cst_91 [1] : vector<8x128xf32> to vector<8xf32>
    %398 = vector.shape_cast %397 : vector<8xf32> to vector<8x1xf32>
    %399 = vector.broadcast %398 : vector<8x1xf32> to vector<8x128xf32>
    %400 = arith.subf %396, %399 : vector<8x128xf32>
    %401 = math.exp %400 : vector<8x128xf32>
    %cst_92 = arith.constant dense<0.000000e+00> : vector<8xf32>
    %402 = vector.multi_reduction <add>, %401, %cst_92 [1] : vector<8x128xf32> to vector<8xf32>
    %403 = vector.shape_cast %402 : vector<8xf32> to vector<8x1xf32>
    %404 = tpu.reciprocal %403 {approx = true} : vector<8x1xf32> -> vector<8x1xf32>
    %405 = vector.broadcast %404 : vector<8x1xf32> to vector<8x128xf32>
    %406 = arith.mulf %401, %405 : vector<8x128xf32>
    %c0_93 = arith.constant 0 : index
    %c0_94 = arith.constant 0 : index
    %c0_95 = arith.constant 0 : index
    %407 = vector.load %arg8[%c0_93, %c0_94, %c0_95] : memref<1x8x128xf32, #tpu.memory_space<vmem>>, vector<1x8x128xf32>
    %408 = vector.shape_cast %407 : vector<1x8x128xf32> to vector<8x128xf32>
    %409 = vector.shape_cast %406 : vector<8x128xf32> to vector<1x8x128xf32>
    tpu.vector_store %arg8[%c0_93, %c0_94, %c0_95], %409 {strides = array<i32>} : memref<1x8x128xf32, #tpu.memory_space<vmem>>, vector<1x8x128xf32>,
    return
  }
  func.func @transform_0(%arg0: i32) -> (i32, i32, i32) {
    %c0_i32 = arith.constant 0 : i32
    %c0_i32_0 = arith.constant 0 : i32
    %c0_i32_1 = arith.constant 0 : i32
    return %arg0, %c0_i32, %c0_i32_0 : i32, i32, i32
  }
  func.func @transform_1(%arg0: i32) -> (i32, i32) {
    %c0_i32 = arith.constant 0 : i32
    %c0_i32_0 = arith.constant 0 : i32
    %c0_i32_1 = arith.constant 0 : i32
    return %c0_i32, %c0_i32_0 : i32, i32
  }
  func.func @transform_2(%arg0: i32) -> (i32, i32) {
    %c0_i32 = arith.constant 0 : i32
    %c0_i32_0 = arith.constant 0 : i32
    %c0_i32_1 = arith.constant 0 : i32
    return %c0_i32, %c0_i32_0 : i32, i32
  }
  func.func @transform_3(%arg0: i32) -> (i32, i32) {
    %c0_i32 = arith.constant 0 : i32
    %c0_i32_0 = arith.constant 0 : i32
    %c0_i32_1 = arith.constant 0 : i32
    return %c0_i32, %c0_i32_0 : i32, i32
  }
  func.func @transform_4(%arg0: i32) -> (i32, i32) {
    %c0_i32 = arith.constant 0 : i32
    %c0_i32_0 = arith.constant 0 : i32
    %c0_i32_1 = arith.constant 0 : i32
    return %c0_i32, %c0_i32_0 : i32, i32
  }
  func.func @transform_5(%arg0: i32) -> (i32, i32) {
    %c0_i32 = arith.constant 0 : i32
    %c0_i32_0 = arith.constant 0 : i32
    %c0_i32_1 = arith.constant 0 : i32
    return %c0_i32, %c0_i32_0 : i32, i32
  }
  func.func @transform_6(%arg0: i32) -> (i32, i32) {
    %c0_i32 = arith.constant 0 : i32
    %c0_i32_0 = arith.constant 0 : i32
    %c0_i32_1 = arith.constant 0 : i32
    return %c0_i32, %c0_i32_0 : i32, i32
  }
  func.func @transform_7(%arg0: i32) -> (i32, i32, i32) {
    %c0_i32 = arith.constant 0 : i32
    %c0_i32_0 = arith.constant 0 : i32
    %c0_i32_1 = arith.constant 0 : i32
    return %arg0, %c0_i32, %c0_i32_0 : i32, i32, i32
  }
}

</mosaic_0001>

<llo_original>
// kernel: tpu_custom_call.1
$region0: #{tpu_custom_call.1}
  #allocation0 [shape = 'u32[]', space=smem, size = 0x4, offset = 0x4, fixed_abs, tag = 'smem constant byte address 0x4 - core index']
  #allocation1 [shape = 'u32[144,128]{1,0:T(1,128)}', space=vmem, size = 0x12000, scoped, tag = 'internal scratch']
  #allocation2 [shape = 'f32[64,1024]{1,0:T(8,128)}', space=vmem, size = 0x40000, scoped, tag = 'scratch operand']
  %s0 = inlined_call_operand.hbm [shape: bf16[1,64,64], index: 0, kind: input, shape index: {}]
  %s1 = inlined_call_operand.hbm [shape: bf16[64,1024], index: 1, kind: input, shape index: {}]
  %s2 = inlined_call_operand.hbm [shape: f32[1,1024], index: 2, kind: input, shape index: {}]
  %s3 = inlined_call_operand.hbm [shape: bf16[128,512], index: 3, kind: input, shape index: {}]
  %s4 = inlined_call_operand.hbm [shape: bf16[128,512], index: 4, kind: input, shape index: {}]
  %s5 = inlined_call_operand.hbm [shape: bf16[256,128], index: 5, kind: input, shape index: {}]
  %s6 = inlined_call_operand.vmem [shape: f32[1,128], index: 6, kind: input, shape index: {}]
  %s7 = inlined_call_operand.hbm [shape: f32[1,8,128], index: 7, kind: output, shape index: {}]
  %s8 = sld [smem:[#allocation0]]
  $region62: #{tpu_custom_call.1} parent=0
    _
  %s10 = ssub.s32 1, %s8
  %s11 = scalar_select 0, %s10, %s8
  $region1: #{tpu_custom_call.1} parent=0
    #allocation3 [shape = 'u8[16384]{0}', space=vmem, size = 0x4000, scoped, tag = 'input window, operand 0, single buffered']
    #allocation4 [shape = 's32[1]{0}', space=sflag, size = 0x4, scoped, tag = 'scoped memory for tpu_custom_call.1']
    #allocation5 [shape = 's32[1]{0}', space=sflag, size = 0x4, scoped, tag = 'scoped memory for tpu_custom_call.1']
    #allocation6 [shape = 'u8[131072]{0}', space=vmem, size = 0x20000, scoped, tag = 'input window, operand 1, single buffered']
    #allocation7 [shape = 's32[1]{0}', space=sflag, size = 0x4, scoped, tag = 'scoped memory for tpu_custom_call.1']
    #allocation8 [shape = 'u8[4096]{0}', space=vmem, size = 0x1000, scoped, tag = 'input window, operand 2, single buffered']
    #allocation9 [shape = 'u8[131072]{0}', space=vmem, size = 0x20000, scoped, tag = 'input window, operand 3, single buffered']
    #allocation10 [shape = 's32[1]{0}', space=sflag, size = 0x4, scoped, tag = 'scoped memory for tpu_custom_call.1']
    #allocation11 [shape = 'u8[131072]{0}', space=vmem, size = 0x20000, scoped, tag = 'input window, operand 4, single buffered']
    #allocation12 [shape = 'u8[65536]{0}', space=vmem, size = 0x10000, scoped, tag = 'input window, operand 5, single buffered']
    #allocation13 [shape = 's32[1]{0}', space=sflag, size = 0x4, scoped, tag = 'scoped memory for tpu_custom_call.1']
    #allocation14 [shape = 'u8[4096]{0}', space=vmem, size = 0x1000, scoped, tag = 'output window, operand 0, single buffered']
    %12 = vsyncpa [#allocation4], 0
    %13 = vsyncpa [#allocation7], 0
    %14 = vsyncpa [#allocation10], 0
    %15 = vsyncpa [#allocation13], 0
    %16 = vsyncpa [#allocation5], 0
    // Predicated region
    $region2: #{tpu_custom_call.1} parent=1 // pred_check
      _
    $region3: #{tpu_custom_call.1} parent=1 // pred_check_branch
      %18 = sbr.rel (0) target = $region5
    $region4: #{tpu_custom_call.1} parent=1 // pred_region
      %s20 = ssub.s32 512, 512
      %21 = vsyncadd [#allocation4], %s20
      %s22 = sshll.u32 [#allocation3], 4
      %s23 = int_to_ptr.vmem [resolvable:$true] %s22
      %28 = dma.hbm_to_vmem [thread:$0]  %s0, 512, %s23, [#allocation4], 64, 64, 4
    $region5: #{tpu_custom_call.1} parent=1 // pred_fallthru
      _
    // Predicated region
    $region6: #{tpu_custom_call.1} parent=1 // pred_check
      _
    $region7: #{tpu_custom_call.1} parent=1 // pred_check_branch
      %30 = sbr.rel (0) target = $region9
    $region8: #{tpu_custom_call.1} parent=1 // pred_region
      %s32 = ssub.s32 4096, 4096
      %33 = vsyncadd [#allocation7], %s32
      %s34 = sshll.u32 [#allocation6], 4
      %s35 = int_to_ptr.vmem [resolvable:$true] %s34
      %40 = dma.hbm_to_vmem [thread:$0]  %s1, 4096, %s35, [#allocation7], 512, 512, 32
    $region9: #{tpu_custom_call.1} parent=1 // pred_fallthru
      _
    // Predicated region
    $region10: #{tpu_custom_call.1} parent=1 // pred_check
      _
    $region11: #{tpu_custom_call.1} parent=1 // pred_check_branch
      %42 = sbr.rel (0) target = $region13
    $region12: #{tpu_custom_call.1} parent=1 // pred_region
      %s44 = ssub.s32 128, 128
      %45 = vsyncadd [#allocation7], %s44
      %s47 = sshll.u32 [#allocation8], 4
      %s48 = int_to_ptr.vmem [resolvable:$true] %s47
      %50 = dma.hbm_to_vmem [thread:$0]  %s2, 128, %s48, [#allocation7]
    $region13: #{tpu_custom_call.1} parent=1 // pred_fallthru
      _
    // Predicated region
    $region14: #{tpu_custom_call.1} parent=1 // pred_check
      _
    $region15: #{tpu_custom_call.1} parent=1 // pred_check_branch
      %52 = sbr.rel (0) target = $region17
    $region16: #{tpu_custom_call.1} parent=1 // pred_region
      %s54 = ssub.s32 4096, 4096
      %55 = vsyncadd [#allocation10], %s54
      %s56 = sshll.u32 [#allocation9], 4
      %s57 = int_to_ptr.vmem [resolvable:$true] %s56
      %62 = dma.hbm_to_vmem [thread:$0]  %s3, 4096, %s57, [#allocation10], 256, 256, 16
    $region17: #{tpu_custom_call.1} parent=1 // pred_fallthru
      _
    // Predicated region
    $region18: #{tpu_custom_call.1} parent=1 // pred_check
      _
    $region19: #{tpu_custom_call.1} parent=1 // pred_check_branch
      %64 = sbr.rel (0) target = $region21
    $region20: #{tpu_custom_call.1} parent=1 // pred_region
      %s66 = ssub.s32 4096, 4096
      %67 = vsyncadd [#allocation10], %s66
      %s68 = sshll.u32 [#allocation11], 4
      %s69 = int_to_ptr.vmem [resolvable:$true] %s68
      %74 = dma.hbm_to_vmem [thread:$0]  %s4, 4096, %s69, [#allocation10], 256, 256, 16
    $region21: #{tpu_custom_call.1} parent=1 // pred_fallthru
      _
    // Predicated region
    $region22: #{tpu_custom_call.1} parent=1 // pred_check
      _
    $region23: #{tpu_custom_call.1} parent=1 // pred_check_branch
      %76 = sbr.rel (0) target = $region25
    $region24: #{tpu_custom_call.1} parent=1 // pred_region
      %s78 = ssub.s32 2048, 2048
      %79 = vsyncadd [#allocation13], %s78
      %s80 = sshll.u32 [#allocation12], 4
      %s81 = int_to_ptr.vmem [resolvable:$true] %s80
      %86 = dma.hbm_to_vmem [thread:$0]  %s5, 2048, %s81, [#allocation13], 64, 64, 4
    $region25: #{tpu_custom_call.1} parent=1 // pred_fallthru
      _
    // Predicated region
    $region26: #{tpu_custom_call.1} parent=1 // pred_check
      _
    $region27: #{tpu_custom_call.1} parent=1 // pred_check_branch
      %88 = sbr.rel (0) target = $region29
    $region28: #{tpu_custom_call.1} parent=1 // pred_region
      _
    $region29: #{tpu_custom_call.1} parent=1 // pred_fallthru
      _
    // Predicated region
    $region30: #{tpu_custom_call.1} parent=1 // pred_check
      _
    $region31: #{tpu_custom_call.1} parent=1 // pred_check_branch
      %90 = sbr.rel (0) target = $region33
    $region32: #{tpu_custom_call.1} parent=1 // pred_region
      %91 = dma.done [#allocation4], 512
    $region33: #{tpu_custom_call.1} parent=1 // pred_fallthru
      _
    // Predicated region
    $region34: #{tpu_custom_call.1} parent=1 // pred_check
      _
    $region35: #{tpu_custom_call.1} parent=1 // pred_check_branch
      %93 = sbr.rel (0) target = $region37
    $region36: #{tpu_custom_call.1} parent=1 // pred_region
      %94 = dma.done [#allocation7], 4096
    $region37: #{tpu_custom_call.1} parent=1 // pred_fallthru
      _
    // Predicated region
    $region38: #{tpu_custom_call.1} parent=1 // pred_check
      _
    $region39: #{tpu_custom_call.1} parent=1 // pred_check_branch
      %96 = sbr.rel (0) target = $region41
    $region40: #{tpu_custom_call.1} parent=1 // pred_region
      %97 = dma.done [#allocation7], 128
    $region41: #{tpu_custom_call.1} parent=1 // pred_fallthru
      _
    // Predicated region
    $region42: #{tpu_custom_call.1} parent=1 // pred_check
      _
    $region43: #{tpu_custom_call.1} parent=1 // pred_check_branch
      %99 = sbr.rel (0) target = $region45
    $region44: #{tpu_custom_call.1} parent=1 // pred_region
      %100 = dma.done [#allocation10], 4096
    $region45: #{tpu_custom_call.1} parent=1 // pred_fallthru
      _
    // Predicated region
    $region46: #{tpu_custom_call.1} parent=1 // pred_check
      _
    $region47: #{tpu_custom_call.1} parent=1 // pred_check_branch
      %102 = sbr.rel (0) target = $region49
    $region48: #{tpu_custom_call.1} parent=1 // pred_region
      %103 = dma.done [#allocation10], 4096
    $region49: #{tpu_custom_call.1} parent=1 // pred_fallthru
      _
    // Predicated region
    $region50: #{tpu_custom_call.1} parent=1 // pred_check
      _
    $region51: #{tpu_custom_call.1} parent=1 // pred_check_branch
      %105 = sbr.rel (0) target = $region53
    $region52: #{tpu_custom_call.1} parent=1 // pred_region
      %106 = dma.done [#allocation13], 2048
    $region53: #{tpu_custom_call.1} parent=1 // pred_fallthru
      _
    %v108 = vld [vmem:[#allocation3] sm:$0xf]
    %v109 = vld [vmem:[#allocation3 + $0x4] sm:$0xf]
    %v110 = vld [vmem:[#allocation3 + $0x8] sm:$0xf]
    %v111 = vld [vmem:[#allocation3 + $0xc] sm:$0xf]
    %v112 = vld [vmem:[#allocation3 + $0x10] sm:$0xf]
    %v113 = vld [vmem:[#allocation3 + $0x14] sm:$0xf]
    %v114 = vld [vmem:[#allocation3 + $0x18] sm:$0xf]
    %v115 = vld [vmem:[#allocation3 + $0x1c] sm:$0xf]
    %v116 = vld [vmem:[#allocation6] sm:$0xff]
    %v117 = vld [vmem:[#allocation6 + $0x8] sm:$0xff]
    %v118 = vld [vmem:[#allocation6 + $0x10] sm:$0xff]
    %v119 = vld [vmem:[#allocation6 + $0x18] sm:$0xff]
    %v120 = vld [vmem:[#allocation6 + $0x20] sm:$0xff]
    %v121 = vld [vmem:[#allocation6 + $0x28] sm:$0xff]
    %v122 = vld [vmem:[#allocation6 + $0x30] sm:$0xff]
    %v123 = vld [vmem:[#allocation6 + $0x38] sm:$0xff]
    %v124 = vld [vmem:[#allocation6 + $0x40] sm:$0xff]
    %v125 = vld [vmem:[#allocation6 + $0x48] sm:$0xff]
    %v126 = vld [vmem:[#allocation6 + $0x50] sm:$0xff]
    %v127 = vld [vmem:[#allocation6 + $0x58] sm:$0xff]
    %v128 = vld [vmem:[#allocation6 + $0x60] sm:$0xff]
    %v129 = vld [vmem:[#allocation6 + $0x68] sm:$0xff]
    %v130 = vld [vmem:[#allocation6 + $0x70] sm:$0xff]
    %v131 = vld [vmem:[#allocation6 + $0x78] sm:$0xff]
    %v132 = vld [vmem:[#allocation6 + $0x80] sm:$0xff]
    %v133 = vld [vmem:[#allocation6 + $0x88] sm:$0xff]
    %v134 = vld [vmem:[#allocation6 + $0x90] sm:$0xff]
    %v135 = vld [vmem:[#allocation6 + $0x98] sm:$0xff]
    %v136 = vld [vmem:[#allocation6 + $0xa0] sm:$0xff]
    %v137 = vld [vmem:[#allocation6 + $0xa8] sm:$0xff]
    %v138 = vld [vmem:[#allocation6 + $0xb0] sm:$0xff]
    %v139 = vld [vmem:[#allocation6 + $0xb8] sm:$0xff]
    %v140 = vld [vmem:[#allocation6 + $0xc0] sm:$0xff]
    %v141 = vld [vmem:[#allocation6 + $0xc8] sm:$0xff]
    %v142 = vld [vmem:[#allocation6 + $0xd0] sm:$0xff]
    %v143 = vld [vmem:[#allocation6 + $0xd8] sm:$0xff]
    %v144 = vld [vmem:[#allocation6 + $0xe0] sm:$0xff]
    %v145 = vld [vmem:[#allocation6 + $0xe8] sm:$0xff]
    %v146 = vld [vmem:[#allocation6 + $0xf0] sm:$0xff]
    %v147 = vld [vmem:[#allocation6 + $0xf8] sm:$0xff]
    %v148 = vld [vmem:[#allocation8] sm:$0xff]
    %v150 = vlaneseq
    %v151 = vshrl.u32 %v150, 7
    %v152 = vsub.s32 0, %v151
    %v153 = vrot.slane %v148, %v152
    %v154 = vlaneseq
    %v155 = vshrl.u32 %v154, 7
    %v156 = vsub.s32 1, %v155
    %v157 = vrot.slane %v148, %v156
    %v158 = vlaneseq
    %v159 = vshrl.u32 %v158, 7
    %v160 = vsub.s32 2, %v159
    %v161 = vrot.slane %v148, %v160
    %v162 = vlaneseq
    %v163 = vshrl.u32 %v162, 7
    %v164 = vsub.s32 3, %v163
    %v165 = vrot.slane %v148, %v164
    %v166 = vlaneseq
    %v167 = vshrl.u32 %v166, 7
    %v168 = vsub.s32 4, %v167
    %v169 = vrot.slane %v148, %v168
    %v170 = vlaneseq
    %v171 = vshrl.u32 %v170, 7
    %v172 = vsub.s32 5, %v171
    %v173 = vrot.slane %v148, %v172
    %v174 = vlaneseq
    %v175 = vshrl.u32 %v174, 7
    %v176 = vsub.s32 6, %v175
    %v177 = vrot.slane %v148, %v176
    %v178 = vlaneseq
    %v179 = vshrl.u32 %v178, 7
    %v180 = vsub.s32 7, %v179
    %v181 = vrot.slane %v148, %v180
    %v198 = vunpack.c.l.b16 %v108
    %v199 = vunpack.c.l.b16 %v109
    %v200 = vunpack.c.l.b16 %v110
    %v201 = vunpack.c.l.b16 %v111
    %v202 = vunpack.c.l.b16 %v112
    %v203 = vunpack.c.l.b16 %v113
    %v204 = vunpack.c.l.b16 %v114
    %v205 = vunpack.c.l.b16 %v115
    %v206 = vpack.c.b16 %v199, %v198
    %v207 = vpack.c.b16 %v201, %v200
    %v208 = vpack.c.b16 %v203, %v202
    %v209 = vpack.c.b16 %v205, %v204
    %v242 = vunpack.c.l.b16 %v116
    %v243 = vunpack.c.h.b16 %v116
    %v244 = vunpack.c.l.b16 %v117
    %v245 = vunpack.c.h.b16 %v117
    %v246 = vunpack.c.l.b16 %v118
    %v247 = vunpack.c.h.b16 %v118
    %v248 = vunpack.c.l.b16 %v119
    %v249 = vunpack.c.h.b16 %v119
    %v250 = vunpack.c.l.b16 %v120
    %v251 = vunpack.c.h.b16 %v120
    %v252 = vunpack.c.l.b16 %v121
    %v253 = vunpack.c.h.b16 %v121
    %v254 = vunpack.c.l.b16 %v122
    %v255 = vunpack.c.h.b16 %v122
    %v256 = vunpack.c.l.b16 %v123
    %v257 = vunpack.c.h.b16 %v123
    %v258 = vunpack.c.l.b16 %v124
    %v259 = vunpack.c.h.b16 %v124
    %v260 = vunpack.c.l.b16 %v125
    %v261 = vunpack.c.h.b16 %v125
    %v262 = vunpack.c.l.b16 %v126
    %v263 = vunpack.c.h.b16 %v126
    %v264 = vunpack.c.l.b16 %v127
    %v265 = vunpack.c.h.b16 %v127
    %v266 = vunpack.c.l.b16 %v128
    %v267 = vunpack.c.h.b16 %v128
    %v268 = vunpack.c.l.b16 %v129
    %v269 = vunpack.c.h.b16 %v129
    %v270 = vunpack.c.l.b16 %v130
    %v271 = vunpack.c.h.b16 %v130
    %v272 = vunpack.c.l.b16 %v131
    %v273 = vunpack.c.h.b16 %v131
    %v274 = vunpack.c.l.b16 %v132
    %v275 = vunpack.c.h.b16 %v132
    %v276 = vunpack.c.l.b16 %v133
    %v277 = vunpack.c.h.b16 %v133
    %v278 = vunpack.c.l.b16 %v134
    %v279 = vunpack.c.h.b16 %v134
    %v280 = vunpack.c.l.b16 %v135
    %v281 = vunpack.c.h.b16 %v135
    %v282 = vunpack.c.l.b16 %v136
    %v283 = vunpack.c.h.b16 %v136
    %v284 = vunpack.c.l.b16 %v137
    %v285 = vunpack.c.h.b16 %v137
    %v286 = vunpack.c.l.b16 %v138
    %v287 = vunpack.c.h.b16 %v138
    %v288 = vunpack.c.l.b16 %v139
    %v289 = vunpack.c.h.b16 %v139
    %v290 = vunpack.c.l.b16 %v140
    %v291 = vunpack.c.h.b16 %v140
    %v292 = vunpack.c.l.b16 %v141
    %v293 = vunpack.c.h.b16 %v141
    %v294 = vunpack.c.l.b16 %v142
    %v295 = vunpack.c.h.b16 %v142
    %v296 = vunpack.c.l.b16 %v143
    %v297 = vunpack.c.h.b16 %v143
    %v298 = vunpack.c.l.b16 %v144
    %v299 = vunpack.c.h.b16 %v144
    %v300 = vunpack.c.l.b16 %v145
    %v301 = vunpack.c.h.b16 %v145
    %v302 = vunpack.c.l.b16 %v146
    %v303 = vunpack.c.h.b16 %v146
    %v304 = vunpack.c.l.b16 %v147
    %v305 = vunpack.c.h.b16 %v147
    %v306 = vpack.c.b16 %v250, %v242
    %v307 = vpack.c.b16 %v251, %v243
    %v308 = vpack.c.b16 %v252, %v244
    %v309 = vpack.c.b16 %v253, %v245
    %v310 = vpack.c.b16 %v254, %v246
    %v311 = vpack.c.b16 %v255, %v247
    %v312 = vpack.c.b16 %v256, %v248
    %v313 = vpack.c.b16 %v257, %v249
    %v314 = vpack.c.b16 %v266, %v258
    %v315 = vpack.c.b16 %v267, %v259
    %v316 = vpack.c.b16 %v268, %v260
    %v317 = vpack.c.b16 %v269, %v261
    %v318 = vpack.c.b16 %v270, %v262
    %v319 = vpack.c.b16 %v271, %v263
    %v320 = vpack.c.b16 %v272, %v264
    %v321 = vpack.c.b16 %v273, %v265
    %v322 = vpack.c.b16 %v282, %v274
    %v323 = vpack.c.b16 %v283, %v275
    %v324 = vpack.c.b16 %v284, %v276
    %v325 = vpack.c.b16 %v285, %v277
    %v326 = vpack.c.b16 %v286, %v278
    %v327 = vpack.c.b16 %v287, %v279
    %v328 = vpack.c.b16 %v288, %v280
    %v329 = vpack.c.b16 %v289, %v281
    %v330 = vpack.c.b16 %v298, %v290
    %v331 = vpack.c.b16 %v299, %v291
    %v332 = vpack.c.b16 %v300, %v292
    %v333 = vpack.c.b16 %v301, %v293
    %v334 = vpack.c.b16 %v302, %v294
    %v335 = vpack.c.b16 %v303, %v295
    %v336 = vpack.c.b16 %v304, %v296
    %v337 = vpack.c.b16 %v305, %v297
    %vm370 = vcmask 523264
    %v372 = vsel %vm370, %v206, 0
    %v375 = vsel %vm370, %v207, 0
    %v378 = vsel %vm370, %v208, 0
    %v381 = vsel %vm370, %v209, 0
    %383 = vmatprep.subr.bf16.mxu0 %v307
    %384 = vmatpush1.bf16.msra.mxu0 %v306
    %385 = vmatprep.subr.bf16.mxu0 %v315
    %386 = vmatpush1.bf16.msra.mxu0 %v314
    %387 = vmatprep.subr.bf16.mxu0 %v323
    %388 = vmatpush1.bf16.msra.mxu0 %v322
    %389 = vmatprep.subr.bf16.mxu0 %v331
    %390 = vmatpush1.bf16.msra.mxu0 %v330
    %391 = vmatprep.subr.bf16.mxu0 0
    %392 = vmatpush1.bf16.msra.mxu0 0
    %393 = vmatprep.subr.bf16.mxu0 0
    %394 = vmatpush1.bf16.msra.mxu0 0
    %395 = vmatprep.subr.bf16.mxu0 0
    %396 = vmatpush1.bf16.msra.mxu0 0
    %397 = vmatprep.subr.bf16.mxu0 0
    %398 = vmatpush1.bf16.msra.mxu0 0
    %399 = vmatprep.subr.bf16.mxu0 0
    %400 = vmatpush1.bf16.msra.mxu0 0
    %401 = vmatprep.subr.bf16.mxu0 0
    %402 = vmatpush1.bf16.msra.mxu0 0
    %403 = vmatprep.subr.bf16.mxu0 0
    %404 = vmatpush1.bf16.msra.mxu0 0
    %405 = vmatprep.subr.bf16.mxu0 0
    %406 = vmatpush1.bf16.msra.mxu0 0
    %407 = vmatprep.subr.bf16.mxu0 0
    %408 = vmatpush1.bf16.msra.mxu0 0
    %409 = vmatprep.subr.bf16.mxu0 0
    %410 = vmatpush1.bf16.msra.mxu0 0
    %411 = vmatprep.subr.bf16.mxu0 0
    %412 = vmatpush1.bf16.msra.mxu0 0
    %413 = vmatprep.subr.bf16.mxu0 0
    %414 = vmatpush1.bf16.msra.mxu0 0
    %415 = vmatprep.mubr.bf16.mxu0 0
    %416 = vmatmul.mubr.bf16.gmra.mrb[0].mxu0 %v372
    %v417 = vpop.f32.mrb[0].mxu0
    %v418 = vadd.f32 %v153, %v417
    %v419 = vpop.f32.mrb[0].mxu0
    %v420 = vadd.f32 %v157, %v419
    %v421 = vpop.f32.mrb[0].mxu0
    %v422 = vadd.f32 %v153, %v421
    %v423 = vpop.f32.mrb[0].mxu0
    %v424 = vadd.f32 %v157, %v423
    %425 = vmatprep.mubr.bf16.mxu0 0
    %426 = vmatmul.mubr.bf16.gmra.mrb[0].mxu0 %v375
    %v427 = vpop.f32.mrb[0].mxu0
    %v428 = vadd.f32 %v153, %v427
    %v429 = vpop.f32.mrb[0].mxu0
    %v430 = vadd.f32 %v157, %v429
    %v431 = vpop.f32.mrb[0].mxu0
    %v432 = vadd.f32 %v153, %v431
    %v433 = vpop.f32.mrb[0].mxu0
    %v434 = vadd.f32 %v157, %v433
    %435 = vmatprep.mubr.bf16.mxu0 0
    %436 = vmatmul.mubr.bf16.gmra.mrb[0].mxu0 %v378
    %v437 = vpop.f32.mrb[0].mxu0
    %v438 = vadd.f32 %v153, %v437
    %v439 = vpop.f32.mrb[0].mxu0
    %v440 = vadd.f32 %v157, %v439
    %v441 = vpop.f32.mrb[0].mxu0
    %v442 = vadd.f32 %v153, %v441
    %v443 = vpop.f32.mrb[0].mxu0
    %v444 = vadd.f32 %v157, %v443
    %445 = vmatprep.mubr.bf16.mxu0 0
    %446 = vmatmul.mubr.bf16.gmra.mrb[0].mxu0 %v381
    %v447 = vpop.f32.mrb[0].mxu0
    %v448 = vadd.f32 %v153, %v447
    %v449 = vpop.f32.mrb[0].mxu0
    %v450 = vadd.f32 %v157, %v449
    %v451 = vpop.f32.mrb[0].mxu0
    %v452 = vadd.f32 %v153, %v451
    %v453 = vpop.f32.mrb[0].mxu0
    %v454 = vadd.f32 %v157, %v453
    %455 = vdwg.mxu0
    %456 = vmatprep.subr.bf16.mxu0 %v309
    %457 = vmatpush1.bf16.msra.mxu0 %v308
    %458 = vmatprep.subr.bf16.mxu0 %v317
    %459 = vmatpush1.bf16.msra.mxu0 %v316
    %460 = vmatprep.subr.bf16.mxu0 %v325
    %461 = vmatpush1.bf16.msra.mxu0 %v324
    %462 = vmatprep.subr.bf16.mxu0 %v333
    %463 = vmatpush1.bf16.msra.mxu0 %v332
    %464 = vmatprep.subr.bf16.mxu0 0
    %465 = vmatpush1.bf16.msra.mxu0 0
    %466 = vmatprep.subr.bf16.mxu0 0
    %467 = vmatpush1.bf16.msra.mxu0 0
    %468 = vmatprep.subr.bf16.mxu0 0
    %469 = vmatpush1.bf16.msra.mxu0 0
    %470 = vmatprep.subr.bf16.mxu0 0
    %471 = vmatpush1.bf16.msra.mxu0 0
    %472 = vmatprep.subr.bf16.mxu0 0
    %473 = vmatpush1.bf16.msra.mxu0 0
    %474 = vmatprep.subr.bf16.mxu0 0
    %475 = vmatpush1.bf16.msra.mxu0 0
    %476 = vmatprep.subr.bf16.mxu0 0
    %477 = vmatpush1.bf16.msra.mxu0 0
    %478 = vmatprep.subr.bf16.mxu0 0
    %479 = vmatpush1.bf16.msra.mxu0 0
    %480 = vmatprep.subr.bf16.mxu0 0
    %481 = vmatpush1.bf16.msra.mxu0 0
    %482 = vmatprep.subr.bf16.mxu0 0
    %483 = vmatpush1.bf16.msra.mxu0 0
    %484 = vmatprep.subr.bf16.mxu0 0
    %485 = vmatpush1.bf16.msra.mxu0 0
    %486 = vmatprep.subr.bf16.mxu0 0
    %487 = vmatpush1.bf16.msra.mxu0 0
    %488 = vmatprep.mubr.bf16.mxu0 0
    %489 = vmatmul.mubr.bf16.gmra.mrb[0].mxu0 %v372
    %v490 = vpop.f32.mrb[0].mxu0
    %v491 = vadd.f32 %v161, %v490
    %v492 = vpop.f32.mrb[0].mxu0
    %v493 = vadd.f32 %v165, %v492
    %v494 = vpop.f32.mrb[0].mxu0
    %v495 = vadd.f32 %v161, %v494
    %v496 = vpop.f32.mrb[0].mxu0
    %v497 = vadd.f32 %v165, %v496
    %498 = vmatprep.mubr.bf16.mxu0 0
    %499 = vmatmul.mubr.bf16.gmra.mrb[0].mxu0 %v375
    %v500 = vpop.f32.mrb[0].mxu0
    %v501 = vadd.f32 %v161, %v500
    %v502 = vpop.f32.mrb[0].mxu0
    %v503 = vadd.f32 %v165, %v502
    %v504 = vpop.f32.mrb[0].mxu0
    %v505 = vadd.f32 %v161, %v504
    %v506 = vpop.f32.mrb[0].mxu0
    %v507 = vadd.f32 %v165, %v506
    %508 = vmatprep.mubr.bf16.mxu0 0
    %509 = vmatmul.mubr.bf16.gmra.mrb[0].mxu0 %v378
    %v510 = vpop.f32.mrb[0].mxu0
    %v511 = vadd.f32 %v161, %v510
    %v512 = vpop.f32.mrb[0].mxu0
    %v513 = vadd.f32 %v165, %v512
    %v514 = vpop.f32.mrb[0].mxu0
    %v515 = vadd.f32 %v161, %v514
    %v516 = vpop.f32.mrb[0].mxu0
    %v517 = vadd.f32 %v165, %v516
    %518 = vmatprep.mubr.bf16.mxu0 0
    %519 = vmatmul.mubr.bf16.gmra.mrb[0].mxu0 %v381
    %v520 = vpop.f32.mrb[0].mxu0
    %v521 = vadd.f32 %v161, %v520
    %v522 = vpop.f32.mrb[0].mxu0
    %v523 = vadd.f32 %v165, %v522
    %v524 = vpop.f32.mrb[0].mxu0
    %v525 = vadd.f32 %v161, %v524
    %v526 = vpop.f32.mrb[0].mxu0
    %v527 = vadd.f32 %v165, %v526
    %528 = vdwg.mxu0
    %529 = vmatprep.subr.bf16.mxu0 %v311
    %530 = vmatpush1.bf16.msra.mxu0 %v310
    %531 = vmatprep.subr.bf16.mxu0 %v319
    %532 = vmatpush1.bf16.msra.mxu0 %v318
    %533 = vmatprep.subr.bf16.mxu0 %v327
    %534 = vmatpush1.bf16.msra.mxu0 %v326
    %535 = vmatprep.subr.bf16.mxu0 %v335
    %536 = vmatpush1.bf16.msra.mxu0 %v334
    %537 = vmatprep.subr.bf16.mxu0 0
    %538 = vmatpush1.bf16.msra.mxu0 0
    %539 = vmatprep.subr.bf16.mxu0 0
    %540 = vmatpush1.bf16.msra.mxu0 0
    %541 = vmatprep.subr.bf16.mxu0 0
    %542 = vmatpush1.bf16.msra.mxu0 0
    %543 = vmatprep.subr.bf16.mxu0 0
    %544 = vmatpush1.bf16.msra.mxu0 0
    %545 = vmatprep.subr.bf16.mxu0 0
    %546 = vmatpush1.bf16.msra.mxu0 0
    %547 = vmatprep.subr.bf16.mxu0 0
    %548 = vmatpush1.bf16.msra.mxu0 0
    %549 = vmatprep.subr.bf16.mxu0 0
    %550 = vmatpush1.bf16.msra.mxu0 0
    %551 = vmatprep.subr.bf16.mxu0 0
    %552 = vmatpush1.bf16.msra.mxu0 0
    %553 = vmatprep.subr.bf16.mxu0 0
    %554 = vmatpush1.bf16.msra.mxu0 0
    %555 = vmatprep.subr.bf16.mxu0 0
    %556 = vmatpush1.bf16.msra.mxu0 0
    %557 = vmatprep.subr.bf16.mxu0 0
    %558 = vmatpush1.bf16.msra.mxu0 0
    %559 = vmatprep.subr.bf16.mxu0 0
    %560 = vmatpush1.bf16.msra.mxu0 0
    %561 = vmatprep.mubr.bf16.mxu0 0
    %562 = vmatmul.mubr.bf16.gmra.mrb[0].mxu0 %v372
    %v563 = vpop.f32.mrb[0].mxu0
    %v564 = vadd.f32 %v169, %v563
    %v565 = vpop.f32.mrb[0].mxu0
    %v566 = vadd.f32 %v173, %v565
    %v567 = vpop.f32.mrb[0].mxu0
    %v568 = vadd.f32 %v169, %v567
    %v569 = vpop.f32.mrb[0].mxu0
    %v570 = vadd.f32 %v173, %v569
    %571 = vmatprep.mubr.bf16.mxu0 0
    %572 = vmatmul.mubr.bf16.gmra.mrb[0].mxu0 %v375
    %v573 = vpop.f32.mrb[0].mxu0
    %v574 = vadd.f32 %v169, %v573
    %v575 = vpop.f32.mrb[0].mxu0
    %v576 = vadd.f32 %v173, %v575
    %v577 = vpop.f32.mrb[0].mxu0
    %v578 = vadd.f32 %v169, %v577
    %v579 = vpop.f32.mrb[0].mxu0
    %v580 = vadd.f32 %v173, %v579
    %581 = vmatprep.mubr.bf16.mxu0 0
    %582 = vmatmul.mubr.bf16.gmra.mrb[0].mxu0 %v378
    %v583 = vpop.f32.mrb[0].mxu0
    %v584 = vadd.f32 %v169, %v583
    %v585 = vpop.f32.mrb[0].mxu0
    %v586 = vadd.f32 %v173, %v585
    %v587 = vpop.f32.mrb[0].mxu0
    %v588 = vadd.f32 %v169, %v587
    %v589 = vpop.f32.mrb[0].mxu0
    %v590 = vadd.f32 %v173, %v589
    %591 = vmatprep.mubr.bf16.mxu0 0
    %592 = vmatmul.mubr.bf16.gmra.mrb[0].mxu0 %v381
    %v593 = vpop.f32.mrb[0].mxu0
    %v594 = vadd.f32 %v169, %v593
    %v595 = vpop.f32.mrb[0].mxu0
    %v596 = vadd.f32 %v173, %v595
    %v597 = vpop.f32.mrb[0].mxu0
    %v598 = vadd.f32 %v169, %v597
    %v599 = vpop.f32.mrb[0].mxu0
    %v600 = vadd.f32 %v173, %v599
    %601 = vdwg.mxu0
    %602 = vmatprep.subr.bf16.mxu0 %v313
    %603 = vmatpush1.bf16.msra.mxu0 %v312
    %604 = vmatprep.subr.bf16.mxu0 %v321
    %605 = vmatpush1.bf16.msra.mxu0 %v320
    %606 = vmatprep.subr.bf16.mxu0 %v329
    %607 = vmatpush1.bf16.msra.mxu0 %v328
    %608 = vmatprep.subr.bf16.mxu0 %v337
    %609 = vmatpush1.bf16.msra.mxu0 %v336
    %610 = vmatprep.subr.bf16.mxu0 0
    %611 = vmatpush1.bf16.msra.mxu0 0
    %612 = vmatprep.subr.bf16.mxu0 0
    %613 = vmatpush1.bf16.msra.mxu0 0
    %614 = vmatprep.subr.bf16.mxu0 0
    %615 = vmatpush1.bf16.msra.mxu0 0
    %616 = vmatprep.subr.bf16.mxu0 0
    %617 = vmatpush1.bf16.msra.mxu0 0
    %618 = vmatprep.subr.bf16.mxu0 0
    %619 = vmatpush1.bf16.msra.mxu0 0
    %620 = vmatprep.subr.bf16.mxu0 0
    %621 = vmatpush1.bf16.msra.mxu0 0
    %622 = vmatprep.subr.bf16.mxu0 0
    %623 = vmatpush1.bf16.msra.mxu0 0
    %624 = vmatprep.subr.bf16.mxu0 0
    %625 = vmatpush1.bf16.msra.mxu0 0
    %626 = vmatprep.subr.bf16.mxu0 0
    %627 = vmatpush1.bf16.msra.mxu0 0
    %628 = vmatprep.subr.bf16.mxu0 0
    %629 = vmatpush1.bf16.msra.mxu0 0
    %630 = vmatprep.subr.bf16.mxu0 0
    %631 = vmatpush1.bf16.msra.mxu0 0
    %632 = vmatprep.subr.bf16.mxu0 0
    %633 = vmatpush1.bf16.msra.mxu0 0
    %634 = vmatprep.mubr.bf16.mxu0 0
    %635 = vmatmul.mubr.bf16.gmra.mrb[0].mxu0 %v372
    %v636 = vpop.f32.mrb[0].mxu0
    %v637 = vadd.f32 %v177, %v636
    %v638 = vpop.f32.mrb[0].mxu0
    %v639 = vadd.f32 %v181, %v638
    %v640 = vpop.f32.mrb[0].mxu0
    %v641 = vadd.f32 %v177, %v640
    %v642 = vpop.f32.mrb[0].mxu0
    %v643 = vadd.f32 %v181, %v642
    %644 = vmatprep.mubr.bf16.mxu0 0
    %645 = vmatmul.mubr.bf16.gmra.mrb[0].mxu0 %v375
    %v646 = vpop.f32.mrb[0].mxu0
    %v647 = vadd.f32 %v177, %v646
    %v648 = vpop.f32.mrb[0].mxu0
    %v649 = vadd.f32 %v181, %v648
    %v650 = vpop.f32.mrb[0].mxu0
    %v651 = vadd.f32 %v177, %v650
    %v652 = vpop.f32.mrb[0].mxu0
    %v653 = vadd.f32 %v181, %v652
    %654 = vmatprep.mubr.bf16.mxu0 0
    %655 = vmatmul.mubr.bf16.gmra.mrb[0].mxu0 %v378
    %v656 = vpop.f32.mrb[0].mxu0
    %v657 = vadd.f32 %v177, %v656
    %v658 = vpop.f32.mrb[0].mxu0
    %v659 = vadd.f32 %v181, %v658
    %v660 = vpop.f32.mrb[0].mxu0
    %v661 = vadd.f32 %v177, %v660
    %v662 = vpop.f32.mrb[0].mxu0
    %v663 = vadd.f32 %v181, %v662
    %664 = vmatprep.mubr.bf16.mxu0 0
    %665 = vmatmul.mubr.bf16.gmra.mrb[0].mxu0 %v381
    %v666 = vpop.f32.mrb[0].mxu0
    %v667 = vadd.f32 %v177, %v666
    %v668 = vpop.f32.mrb[0].mxu0
    %v669 = vadd.f32 %v181, %v668
    %v670 = vpop.f32.mrb[0].mxu0
    %v671 = vadd.f32 %v177, %v670
    %v672 = vpop.f32.mrb[0].mxu0
    %v673 = vadd.f32 %v181, %v672
    %674 = vdwg.mxu0
    %675 = vst [vmem:[#allocation2] sm:$0xff] %v418
    %676 = vst [vmem:[#allocation2 + $0x8] sm:$0xff] %v420
    %677 = vst [vmem:[#allocation2 + $0x10] sm:$0xff] %v491
    %678 = vst [vmem:[#allocation2 + $0x18] sm:$0xff] %v493
    %679 = vst [vmem:[#allocation2 + $0x20] sm:$0xff] %v564
    %680 = vst [vmem:[#allocation2 + $0x28] sm:$0xff] %v566
    %681 = vst [vmem:[#allocation2 + $0x30] sm:$0xff] %v637
    %682 = vst [vmem:[#allocation2 + $0x38] sm:$0xff] %v639
    %683 = vst [vmem:[#allocation2 + $0x40] sm:$0xff] %v422
    %684 = vst [vmem:[#allocation2 + $0x48] sm:$0xff] %v424
    %685 = vst [vmem:[#allocation2 + $0x50] sm:$0xff] %v495
    %686 = vst [vmem:[#allocation2 + $0x58] sm:$0xff] %v497
    %687 = vst [vmem:[#allocation2 + $0x60] sm:$0xff] %v568
    %688 = vst [vmem:[#allocation2 + $0x68] sm:$0xff] %v570
    %689 = vst [vmem:[#allocation2 + $0x70] sm:$0xff] %v641
    %690 = vst [vmem:[#allocation2 + $0x78] sm:$0xff] %v643
    %691 = vst [vmem:[#allocation2 + $0x80] sm:$0xff] %v428
    %692 = vst [vmem:[#allocation2 + $0x88] sm:$0xff] %v430
    %693 = vst [vmem:[#allocation2 + $0x90] sm:$0xff] %v501
    %694 = vst [vmem:[#allocation2 + $0x98] sm:$0xff] %v503
    %695 = vst [vmem:[#allocation2 + $0xa0] sm:$0xff] %v574
    %696 = vst [vmem:[#allocation2 + $0xa8] sm:$0xff] %v576
    %697 = vst [vmem:[#allocation2 + $0xb0] sm:$0xff] %v647
    %698 = vst [vmem:[#allocation2 + $0xb8] sm:$0xff] %v649
    %699 = vst [vmem:[#allocation2 + $0xc0] sm:$0xff] %v432
    %700 = vst [vmem:[#allocation2 + $0xc8] sm:$0xff] %v434
    %701 = vst [vmem:[#allocation2 + $0xd0] sm:$0xff] %v505
    %702 = vst [vmem:[#allocation2 + $0xd8] sm:$0xff] %v507
    %703 = vst [vmem:[#allocation2 + $0xe0] sm:$0xff] %v578
    %704 = vst [vmem:[#allocation2 + $0xe8] sm:$0xff] %v580
    %705 = vst [vmem:[#allocation2 + $0xf0] sm:$0xff] %v651
    %706 = vst [vmem:[#allocation2 + $0xf8] sm:$0xff] %v653
    %707 = vst [vmem:[#allocation2 + $0x100] sm:$0xff] %v438
    %708 = vst [vmem:[#allocation2 + $0x108] sm:$0xff] %v440
    %709 = vst [vmem:[#allocation2 + $0x110] sm:$0xff] %v511
    %710 = vst [vmem:[#allocation2 + $0x118] sm:$0xff] %v513
    %711 = vst [vmem:[#allocation2 + $0x120] sm:$0xff] %v584
    %712 = vst [vmem:[#allocation2 + $0x128] sm:$0xff] %v586
    %713 = vst [vmem:[#allocation2 + $0x130] sm:$0xff] %v657
    %714 = vst [vmem:[#allocation2 + $0x138] sm:$0xff] %v659
    %715 = vst [vmem:[#allocation2 + $0x140] sm:$0xff] %v442
    %716 = vst [vmem:[#allocation2 + $0x148] sm:$0xff] %v444
    %717 = vst [vmem:[#allocation2 + $0x150] sm:$0xff] %v515
    %718 = vst [vmem:[#allocation2 + $0x158] sm:$0xff] %v517
    %719 = vst [vmem:[#allocation2 + $0x160] sm:$0xff] %v588
    %720 = vst [vmem:[#allocation2 + $0x168] sm:$0xff] %v590
    %721 = vst [vmem:[#allocation2 + $0x170] sm:$0xff] %v661
    %722 = vst [vmem:[#allocation2 + $0x178] sm:$0xff] %v663
    %723 = vst [vmem:[#allocation2 + $0x180] sm:$0xff] %v448
    %724 = vst [vmem:[#allocation2 + $0x188] sm:$0xff] %v450
    %725 = vst [vmem:[#allocation2 + $0x190] sm:$0xff] %v521
    %726 = vst [vmem:[#allocation2 + $0x198] sm:$0xff] %v523
    %727 = vst [vmem:[#allocation2 + $0x1a0] sm:$0xff] %v594
    %728 = vst [vmem:[#allocation2 + $0x1a8] sm:$0xff] %v596
    %729 = vst [vmem:[#allocation2 + $0x1b0] sm:$0xff] %v667
    %730 = vst [vmem:[#allocation2 + $0x1b8] sm:$0xff] %v669
    %731 = vst [vmem:[#allocation2 + $0x1c0] sm:$0xff] %v452
    %732 = vst [vmem:[#allocation2 + $0x1c8] sm:$0xff] %v454
    %733 = vst [vmem:[#allocation2 + $0x1d0] sm:$0xff] %v525
    %734 = vst [vmem:[#allocation2 + $0x1d8] sm:$0xff] %v527
    %735 = vst [vmem:[#allocation2 + $0x1e0] sm:$0xff] %v598
    %736 = vst [vmem:[#allocation2 + $0x1e8] sm:$0xff] %v600
    %737 = vst [vmem:[#allocation2 + $0x1f0] sm:$0xff] %v671
    %738 = vst [vmem:[#allocation2 + $0x1f8] sm:$0xff] %v673
    %v739 = vld [vmem:[#allocation9] sm:$0xff]
    %v740 = vld [vmem:[#allocation9 + $0x8] sm:$0xff]
    %v741 = vld [vmem:[#allocation9 + $0x10] sm:$0xff]
    %v742 = vld [vmem:[#allocation9 + $0x18] sm:$0xff]
    %v743 = vld [vmem:[#allocation9 + $0x20] sm:$0xff]
    %v744 = vld [vmem:[#allocation9 + $0x28] sm:$0xff]
    %v745 = vld [vmem:[#allocation9 + $0x30] sm:$0xff]
    %v746 = vld [vmem:[#allocation9 + $0x38] sm:$0xff]
    %v747 = vld [vmem:[#allocation9 + $0x40] sm:$0xff]
    %v748 = vld [vmem:[#allocation9 + $0x48] sm:$0xff]
    %v749 = vld [vmem:[#allocation9 + $0x50] sm:$0xff]
    %v750 = vld [vmem:[#allocation9 + $0x58] sm:$0xff]
    %v751 = vld [vmem:[#allocation9 + $0x60] sm:$0xff]
    %v752 = vld [vmem:[#allocation9 + $0x68] sm:$0xff]
    %v753 = vld [vmem:[#allocation9 + $0x70] sm:$0xff]
    %v754 = vld [vmem:[#allocation9 + $0x78] sm:$0xff]
    %v755 = vld [vmem:[#allocation9 + $0x80] sm:$0xff]
    %v756 = vld [vmem:[#allocation9 + $0x88] sm:$0xff]
    %v757 = vld [vmem:[#allocation9 + $0x90] sm:$0xff]
    %v758 = vld [vmem:[#allocation9 + $0x98] sm:$0xff]
    %v759 = vld [vmem:[#allocation9 + $0xa0] sm:$0xff]
    %v760 = vld [vmem:[#allocation9 + $0xa8] sm:$0xff]
    %v761 = vld [vmem:[#allocation9 + $0xb0] sm:$0xff]
    %v762 = vld [vmem:[#allocation9 + $0xb8] sm:$0xff]
    %v763 = vld [vmem:[#allocation9 + $0xc0] sm:$0xff]
    %v764 = vld [vmem:[#allocation9 + $0xc8] sm:$0xff]
    %v765 = vld [vmem:[#allocation9 + $0xd0] sm:$0xff]
    %v766 = vld [vmem:[#allocation9 + $0xd8] sm:$0xff]
    %v767 = vld [vmem:[#allocation9 + $0xe0] sm:$0xff]
    %v768 = vld [vmem:[#allocation9 + $0xe8] sm:$0xff]
    %v769 = vld [vmem:[#allocation9 + $0xf0] sm:$0xff]
    %v770 = vld [vmem:[#allocation9 + $0xf8] sm:$0xff]
    %v771 = vld [vmem:[#allocation11] sm:$0xff]
    %v772 = vld [vmem:[#allocation11 + $0x8] sm:$0xff]
    %v773 = vld [vmem:[#allocation11 + $0x10] sm:$0xff]
    %v774 = vld [vmem:[#allocation11 + $0x18] sm:$0xff]
    %v775 = vld [vmem:[#allocation11 + $0x20] sm:$0xff]
    %v776 = vld [vmem:[#allocation11 + $0x28] sm:$0xff]
    %v777 = vld [vmem:[#allocation11 + $0x30] sm:$0xff]
    %v778 = vld [vmem:[#allocation11 + $0x38] sm:$0xff]
    %v779 = vld [vmem:[#allocation11 + $0x40] sm:$0xff]
    %v780 = vld [vmem:[#allocation11 + $0x48] sm:$0xff]
    %v781 = vld [vmem:[#allocation11 + $0x50] sm:$0xff]
    %v782 = vld [vmem:[#allocation11 + $0x58] sm:$0xff]
    %v783 = vld [vmem:[#allocation11 + $0x60] sm:$0xff]
    %v784 = vld [vmem:[#allocation11 + $0x68] sm:$0xff]
    %v785 = vld [vmem:[#allocation11 + $0x70] sm:$0xff]
    %v786 = vld [vmem:[#allocation11 + $0x78] sm:$0xff]
    %v787 = vld [vmem:[#allocation11 + $0x80] sm:$0xff]
    %v788 = vld [vmem:[#allocation11 + $0x88] sm:$0xff]
    %v789 = vld [vmem:[#allocation11 + $0x90] sm:$0xff]
    %v790 = vld [vmem:[#allocation11 + $0x98] sm:$0xff]
    %v791 = vld [vmem:[#allocation11 + $0xa0] sm:$0xff]
    %v792 = vld [vmem:[#allocation11 + $0xa8] sm:$0xff]
    %v793 = vld [vmem:[#allocation11 + $0xb0] sm:$0xff]
    %v794 = vld [vmem:[#allocation11 + $0xb8] sm:$0xff]
    %v795 = vld [vmem:[#allocation11 + $0xc0] sm:$0xff]
    %v796 = vld [vmem:[#allocation11 + $0xc8] sm:$0xff]
    %v797 = vld [vmem:[#allocation11 + $0xd0] sm:$0xff]
    %v798 = vld [vmem:[#allocation11 + $0xd8] sm:$0xff]
    %v799 = vld [vmem:[#allocation11 + $0xe0] sm:$0xff]
    %v800 = vld [vmem:[#allocation11 + $0xe8] sm:$0xff]
    %v801 = vld [vmem:[#allocation11 + $0xf0] sm:$0xff]
    %v802 = vld [vmem:[#allocation11 + $0xf8] sm:$0xff]
    %s803 = smul.u32 0, 8
    %s804 = smul.addr %s803, 8
    %s805 = scalar_lea.vmem [#allocation2], %s804
    %v806 = vld [vmem:[%s805] sm:$0xff]
    %v807 = vld [vmem:[%s805 + $0x8] sm:$0xff]
    %v808 = vld [vmem:[%s805 + $0x10] sm:$0xff]
    %v809 = vld [vmem:[%s805 + $0x18] sm:$0xff]
    %v842 = vunpack.c.l.b16 %v739
    %v843 = vunpack.c.h.b16 %v739
    %v844 = vunpack.c.l.b16 %v740
    %v845 = vunpack.c.h.b16 %v740
    %v846 = vunpack.c.l.b16 %v741
    %v847 = vunpack.c.h.b16 %v741
    %v848 = vunpack.c.l.b16 %v742
    %v849 = vunpack.c.h.b16 %v742
    %v850 = vunpack.c.l.b16 %v743
    %v851 = vunpack.c.h.b16 %v743
    %v852 = vunpack.c.l.b16 %v744
    %v853 = vunpack.c.h.b16 %v744
    %v854 = vunpack.c.l.b16 %v745
    %v855 = vunpack.c.h.b16 %v745
    %v856 = vunpack.c.l.b16 %v746
    %v857 = vunpack.c.h.b16 %v746
    %v858 = vunpack.c.l.b16 %v747
    %v859 = vunpack.c.h.b16 %v747
    %v860 = vunpack.c.l.b16 %v748
    %v861 = vunpack.c.h.b16 %v748
    %v862 = vunpack.c.l.b16 %v749
    %v863 = vunpack.c.h.b16 %v749
    %v864 = vunpack.c.l.b16 %v750
    %v865 = vunpack.c.h.b16 %v750
    %v866 = vunpack.c.l.b16 %v751
    %v867 = vunpack.c.h.b16 %v751
    %v868 = vunpack.c.l.b16 %v752
    %v869 = vunpack.c.h.b16 %v752
    %v870 = vunpack.c.l.b16 %v753
    %v871 = vunpack.c.h.b16 %v753
    %v872 = vunpack.c.l.b16 %v754
    %v873 = vunpack.c.h.b16 %v754
    %v874 = vunpack.c.l.b16 %v755
    %v875 = vunpack.c.h.b16 %v755
    %v876 = vunpack.c.l.b16 %v756
    %v877 = vunpack.c.h.b16 %v756
    %v878 = vunpack.c.l.b16 %v757
    %v879 = vunpack.c.h.b16 %v757
    %v880 = vunpack.c.l.b16 %v758
    %v881 = vunpack.c.h.b16 %v758
    %v882 = vunpack.c.l.b16 %v759
    %v883 = vunpack.c.h.b16 %v759
    %v884 = vunpack.c.l.b16 %v760
    %v885 = vunpack.c.h.b16 %v760
    %v886 = vunpack.c.l.b16 %v761
    %v887 = vunpack.c.h.b16 %v761
    %v888 = vunpack.c.l.b16 %v762
    %v889 = vunpack.c.h.b16 %v762
    %v890 = vunpack.c.l.b16 %v763
    %v891 = vunpack.c.h.b16 %v763
    %v892 = vunpack.c.l.b16 %v764
    %v893 = vunpack.c.h.b16 %v764
    %v894 = vunpack.c.l.b16 %v765
    %v895 = vunpack.c.h.b16 %v765
    %v896 = vunpack.c.l.b16 %v766
    %v897 = vunpack.c.h.b16 %v766
    %v898 = vunpack.c.l.b16 %v767
    %v899 = vunpack.c.h.b16 %v767
    %v900 = vunpack.c.l.b16 %v768
    %v901 = vunpack.c.h.b16 %v768
    %v902 = vunpack.c.l.b16 %v769
    %v903 = vunpack.c.h.b16 %v769
    %v904 = vunpack.c.l.b16 %v770
    %v905 = vunpack.c.h.b16 %v770
    %v906 = vpack.c.b16 %v846, %v842
    %v907 = vpack.c.b16 %v847, %v843
    %v908 = vpack.c.b16 %v848, %v844
    %v909 = vpack.c.b16 %v849, %v845
    %v910 = vpack.c.b16 %v854, %v850
    %v911 = vpack.c.b16 %v855, %v851
    %v912 = vpack.c.b16 %v856, %v852
    %v913 = vpack.c.b16 %v857, %v853
    %v914 = vpack.c.b16 %v862, %v858
    %v915 = vpack.c.b16 %v863, %v859
    %v916 = vpack.c.b16 %v864, %v860
    %v917 = vpack.c.b16 %v865, %v861
    %v918 = vpack.c.b16 %v870, %v866
    %v919 = vpack.c.b16 %v871, %v867
    %v920 = vpack.c.b16 %v872, %v868
    %v921 = vpack.c.b16 %v873, %v869
    %v922 = vpack.c.b16 %v878, %v874
    %v923 = vpack.c.b16 %v879, %v875
    %v924 = vpack.c.b16 %v880, %v876
    %v925 = vpack.c.b16 %v881, %v877
    %v926 = vpack.c.b16 %v886, %v882
    %v927 = vpack.c.b16 %v887, %v883
    %v928 = vpack.c.b16 %v888, %v884
    %v929 = vpack.c.b16 %v889, %v885
    %v930 = vpack.c.b16 %v894, %v890
    %v931 = vpack.c.b16 %v895, %v891
    %v932 = vpack.c.b16 %v896, %v892
    %v933 = vpack.c.b16 %v897, %v893
    %v934 = vpack.c.b16 %v902, %v898
    %v935 = vpack.c.b16 %v903, %v899
    %v936 = vpack.c.b16 %v904, %v900
    %v937 = vpack.c.b16 %v905, %v901
    %970 = vmatprep.subr.bf16.mxu0 %v907
    %971 = vmatpush1.bf16.msra.mxu0 %v906
    %972 = vmatprep.subr.bf16.mxu0 %v911
    %973 = vmatpush1.bf16.msra.mxu0 %v910
    %974 = vmatprep.subr.bf16.mxu0 %v915
    %975 = vmatpush1.bf16.msra.mxu0 %v914
    %976 = vmatprep.subr.bf16.mxu0 %v919
    %977 = vmatpush1.bf16.msra.mxu0 %v918
    %978 = vmatprep.subr.bf16.mxu0 %v923
    %979 = vmatpush1.bf16.msra.mxu0 %v922
    %980 = vmatprep.subr.bf16.mxu0 %v927
    %981 = vmatpush1.bf16.msra.mxu0 %v926
    %982 = vmatprep.subr.bf16.mxu0 %v931
    %983 = vmatpush1.bf16.msra.mxu0 %v930
    %984 = vmatprep.subr.bf16.mxu0 %v935
    %985 = vmatpush1.bf16.msra.mxu0 %v934
    %986 = vmatprep.subr.bf16.mxu0 0
    %987 = vmatpush1.bf16.msra.mxu0 0
    %988 = vmatprep.subr.bf16.mxu0 0
    %989 = vmatpush1.bf16.msra.mxu0 0
    %990 = vmatprep.subr.bf16.mxu0 0
    %991 = vmatpush1.bf16.msra.mxu0 0
    %992 = vmatprep.subr.bf16.mxu0 0
    %993 = vmatpush1.bf16.msra.mxu0 0
    %994 = vmatprep.subr.bf16.mxu0 0
    %995 = vmatpush1.bf16.msra.mxu0 0
    %996 = vmatprep.subr.bf16.mxu0 0
    %997 = vmatpush1.bf16.msra.mxu0 0
    %998 = vmatprep.subr.bf16.mxu0 0
    %999 = vmatpush1.bf16.msra.mxu0 0
    %1000 = vmatprep.subr.bf16.mxu0 0
    %1001 = vmatpush1.bf16.msra.mxu0 0
    %1002 = vmatprep.mubr.bf16.mxu0 0
    %1003 = vmatmul.mubr.bf16.gmra.mrb[0].mxu0 0
    %v1004 = vpop.f32.mrb[0].mxu0
    %v1005 = vadd.f32 0.0, %v1004
    %v1006 = vpop.f32.mrb[0].mxu0
    %v1007 = vadd.f32 0.0, %v1006
    %v1008 = vpop.f32.mrb[0].mxu0
    %v1009 = vpop.f32.mrb[0].mxu0
    %1010 = vdwg.mxu0
    %1011 = vmatprep.subr.bf16.mxu0 %v909
    %1012 = vmatpush1.bf16.msra.mxu0 %v908
    %1013 = vmatprep.subr.bf16.mxu0 %v913
    %1014 = vmatpush1.bf16.msra.mxu0 %v912
    %1015 = vmatprep.subr.bf16.mxu0 %v917
    %1016 = vmatpush1.bf16.msra.mxu0 %v916
    %1017 = vmatprep.subr.bf16.mxu0 %v921
    %1018 = vmatpush1.bf16.msra.mxu0 %v920
    %1019 = vmatprep.subr.bf16.mxu0 %v925
    %1020 = vmatpush1.bf16.msra.mxu0 %v924
    %1021 = vmatprep.subr.bf16.mxu0 %v929
    %1022 = vmatpush1.bf16.msra.mxu0 %v928
    %1023 = vmatprep.subr.bf16.mxu0 %v933
    %1024 = vmatpush1.bf16.msra.mxu0 %v932
    %1025 = vmatprep.subr.bf16.mxu0 %v937
    %1026 = vmatpush1.bf16.msra.mxu0 %v936
    %1027 = vmatprep.subr.bf16.mxu0 0
    %1028 = vmatpush1.bf16.msra.mxu0 0
    %1029 = vmatprep.subr.bf16.mxu0 0
    %1030 = vmatpush1.bf16.msra.mxu0 0
    %1031 = vmatprep.subr.bf16.mxu0 0
    %1032 = vmatpush1.bf16.msra.mxu0 0
    %1033 = vmatprep.subr.bf16.mxu0 0
    %1034 = vmatpush1.bf16.msra.mxu0 0
    %1035 = vmatprep.subr.bf16.mxu0 0
    %1036 = vmatpush1.bf16.msra.mxu0 0
    %1037 = vmatprep.subr.bf16.mxu0 0
    %1038 = vmatpush1.bf16.msra.mxu0 0
    %1039 = vmatprep.subr.bf16.mxu0 0
    %1040 = vmatpush1.bf16.msra.mxu0 0
    %1041 = vmatprep.subr.bf16.mxu0 0
    %1042 = vmatpush1.bf16.msra.mxu0 0
    %1043 = vmatprep.mubr.bf16.mxu0 0
    %1044 = vmatmul.mubr.bf16.gmra.mrb[0].mxu0 0
    %v1045 = vpop.f32.mrb[0].mxu0
    %v1046 = vadd.f32 0.0, %v1045
    %v1047 = vpop.f32.mrb[0].mxu0
    %v1048 = vadd.f32 0.0, %v1047
    %v1049 = vpop.f32.mrb[0].mxu0
    %v1050 = vpop.f32.mrb[0].mxu0
    %1051 = vdwg.mxu0
    %v1052 = vadd.f32 %v806, %v1005
    %v1053 = vadd.f32 %v807, %v1007
    %v1054 = vadd.f32 %v808, %v1046
    %v1055 = vadd.f32 %v809, %v1048
    %v1056 = vxor.u32 %v1052, 2147483648
    %v1057 = vxor.u32 %v1053, 2147483648
    %v1058 = vxor.u32 %v1054, 2147483648
    %v1059 = vmul.f32 %v1056, 1.442695
    %v1060 = vpow.pop %v1059
    %v1061 = vmul.f32 %v1057, 1.442695
    %v1062 = vpow.pop %v1061
    %v1063 = vmul.f32 %v1058, 1.442695
    %v1064 = vpow.pop %v1063
    %v1065 = vadd.f32 %v1060, 1.0
    %v1066 = vadd.f32 %v1062, 1.0
    %v1067 = vadd.f32 %v1064, 1.0
    %v1068 = vrcp.pop %v1065
    %v1069 = vmul.f32 1.0, %v1068
    %v1070 = vrcp.pop %v1066
    %v1071 = vmul.f32 1.0, %v1070
    %v1072 = vrcp.pop %v1067
    %v1073 = vmul.f32 1.0, %v1072
    %v1074 = vtanh.pop %v1055
    %v1075 = vmul.f32 %v1071, 0.0
    %v1076 = vmul.f32 %v1069, %v1074
    %v1077 = vadd.f32 %v1075, %v1076
    %v1078 = vtanh.pop %v1077
    %v1079 = vmul.f32 %v1073, %v1078
    %s1080 = smul.u32 7, 8
    %s1081 = smul.addr %s1080, 8
    %s1082 = scalar_lea.vmem [#allocation2], %s1081
    %v1083 = vld [vmem:[%s1082 + $0x20] sm:$0xff]
    %v1084 = vld [vmem:[%s1082 + $0x28] sm:$0xff]
    %v1085 = vld [vmem:[%s1082 + $0x30] sm:$0xff]
    %v1086 = vld [vmem:[%s1082 + $0x38] sm:$0xff]
    %v1119 = vunpack.c.l.b16 %v771
    %v1120 = vunpack.c.h.b16 %v771
    %v1121 = vunpack.c.l.b16 %v772
    %v1122 = vunpack.c.h.b16 %v772
    %v1123 = vunpack.c.l.b16 %v773
    %v1124 = vunpack.c.h.b16 %v773
    %v1125 = vunpack.c.l.b16 %v774
    %v1126 = vunpack.c.h.b16 %v774
    %v1127 = vunpack.c.l.b16 %v775
    %v1128 = vunpack.c.h.b16 %v775
    %v1129 = vunpack.c.l.b16 %v776
    %v1130 = vunpack.c.h.b16 %v776
    %v1131 = vunpack.c.l.b16 %v777
    %v1132 = vunpack.c.h.b16 %v777
    %v1133 = vunpack.c.l.b16 %v778
    %v1134 = vunpack.c.h.b16 %v778
    %v1135 = vunpack.c.l.b16 %v779
    %v1136 = vunpack.c.h.b16 %v779
    %v1137 = vunpack.c.l.b16 %v780
    %v1138 = vunpack.c.h.b16 %v780
    %v1139 = vunpack.c.l.b16 %v781
    %v1140 = vunpack.c.h.b16 %v781
    %v1141 = vunpack.c.l.b16 %v782
    %v1142 = vunpack.c.h.b16 %v782
    %v1143 = vunpack.c.l.b16 %v783
    %v1144 = vunpack.c.h.b16 %v783
    %v1145 = vunpack.c.l.b16 %v784
    %v1146 = vunpack.c.h.b16 %v784
    %v1147 = vunpack.c.l.b16 %v785
    %v1148 = vunpack.c.h.b16 %v785
    %v1149 = vunpack.c.l.b16 %v786
    %v1150 = vunpack.c.h.b16 %v786
    %v1151 = vunpack.c.l.b16 %v787
    %v1152 = vunpack.c.h.b16 %v787
    %v1153 = vunpack.c.l.b16 %v788
    %v1154 = vunpack.c.h.b16 %v788
    %v1155 = vunpack.c.l.b16 %v789
    %v1156 = vunpack.c.h.b16 %v789
    %v1157 = vunpack.c.l.b16 %v790
    %v1158 = vunpack.c.h.b16 %v790
    %v1159 = vunpack.c.l.b16 %v791
    %v1160 = vunpack.c.h.b16 %v791
    %v1161 = vunpack.c.l.b16 %v792
    %v1162 = vunpack.c.h.b16 %v792
    %v1163 = vunpack.c.l.b16 %v793
    %v1164 = vunpack.c.h.b16 %v793
    %v1165 = vunpack.c.l.b16 %v794
    %v1166 = vunpack.c.h.b16 %v794
    %v1167 = vunpack.c.l.b16 %v795
    %v1168 = vunpack.c.h.b16 %v795
    %v1169 = vunpack.c.l.b16 %v796
    %v1170 = vunpack.c.h.b16 %v796
    %v1171 = vunpack.c.l.b16 %v797
    %v1172 = vunpack.c.h.b16 %v797
    %v1173 = vunpack.c.l.b16 %v798
    %v1174 = vunpack.c.h.b16 %v798
    %v1175 = vunpack.c.l.b16 %v799
    %v1176 = vunpack.c.h.b16 %v799
    %v1177 = vunpack.c.l.b16 %v800
    %v1178 = vunpack.c.h.b16 %v800
    %v1179 = vunpack.c.l.b16 %v801
    %v1180 = vunpack.c.h.b16 %v801
    %v1181 = vunpack.c.l.b16 %v802
    %v1182 = vunpack.c.h.b16 %v802
    %v1183 = vpack.c.b16 %v1123, %v1119
    %v1184 = vpack.c.b16 %v1124, %v1120
    %v1185 = vpack.c.b16 %v1125, %v1121
    %v1186 = vpack.c.b16 %v1126, %v1122
    %v1187 = vpack.c.b16 %v1131, %v1127
    %v1188 = vpack.c.b16 %v1132, %v1128
    %v1189 = vpack.c.b16 %v1133, %v1129
    %v1190 = vpack.c.b16 %v1134, %v1130
    %v1191 = vpack.c.b16 %v1139, %v1135
    %v1192 = vpack.c.b16 %v1140, %v1136
    %v1193 = vpack.c.b16 %v1141, %v1137
    %v1194 = vpack.c.b16 %v1142, %v1138
    %v1195 = vpack.c.b16 %v1147, %v1143
    %v1196 = vpack.c.b16 %v1148, %v1144
    %v1197 = vpack.c.b16 %v1149, %v1145
    %v1198 = vpack.c.b16 %v1150, %v1146
    %v1199 = vpack.c.b16 %v1155, %v1151
    %v1200 = vpack.c.b16 %v1156, %v1152
    %v1201 = vpack.c.b16 %v1157, %v1153
    %v1202 = vpack.c.b16 %v1158, %v1154
    %v1203 = vpack.c.b16 %v1163, %v1159
    %v1204 = vpack.c.b16 %v1164, %v1160
    %v1205 = vpack.c.b16 %v1165, %v1161
    %v1206 = vpack.c.b16 %v1166, %v1162
    %v1207 = vpack.c.b16 %v1171, %v1167
    %v1208 = vpack.c.b16 %v1172, %v1168
    %v1209 = vpack.c.b16 %v1173, %v1169
    %v1210 = vpack.c.b16 %v1174, %v1170
    %v1211 = vpack.c.b16 %v1179, %v1175
    %v1212 = vpack.c.b16 %v1180, %v1176
    %v1213 = vpack.c.b16 %v1181, %v1177
    %v1214 = vpack.c.b16 %v1182, %v1178
    %1247 = vmatprep.subr.bf16.mxu0 %v1184
    %1248 = vmatpush1.bf16.msra.mxu0 %v1183
    %1249 = vmatprep.subr.bf16.mxu0 %v1188
    %1250 = vmatpush1.bf16.msra.mxu0 %v1187
    %1251 = vmatprep.subr.bf16.mxu0 %v1192
    %1252 = vmatpush1.bf16.msra.mxu0 %v1191
    %1253 = vmatprep.subr.bf16.mxu0 %v1196
    %1254 = vmatpush1.bf16.msra.mxu0 %v1195
    %1255 = vmatprep.subr.bf16.mxu0 %v1200
    %1256 = vmatpush1.bf16.msra.mxu0 %v1199
    %1257 = vmatprep.subr.bf16.mxu0 %v1204
    %1258 = vmatpush1.bf16.msra.mxu0 %v1203
    %1259 = vmatprep.subr.bf16.mxu0 %v1208
    %1260 = vmatpush1.bf16.msra.mxu0 %v1207
    %1261 = vmatprep.subr.bf16.mxu0 %v1212
    %1262 = vmatpush1.bf16.msra.mxu0 %v1211
    %1263 = vmatprep.subr.bf16.mxu0 0
    %1264 = vmatpush1.bf16.msra.mxu0 0
    %1265 = vmatprep.subr.bf16.mxu0 0
    %1266 = vmatpush1.bf16.msra.mxu0 0
    %1267 = vmatprep.subr.bf16.mxu0 0
    %1268 = vmatpush1.bf16.msra.mxu0 0
    %1269 = vmatprep.subr.bf16.mxu0 0
    %1270 = vmatpush1.bf16.msra.mxu0 0
    %1271 = vmatprep.subr.bf16.mxu0 0
    %1272 = vmatpush1.bf16.msra.mxu0 0
    %1273 = vmatprep.subr.bf16.mxu0 0
    %1274 = vmatpush1.bf16.msra.mxu0 0
    %1275 = vmatprep.subr.bf16.mxu0 0
    %1276 = vmatpush1.bf16.msra.mxu0 0
    %1277 = vmatprep.subr.bf16.mxu0 0
    %1278 = vmatpush1.bf16.msra.mxu0 0
    %1279 = vmatprep.mubr.bf16.mxu0 0
    %1280 = vmatmul.mubr.bf16.gmra.mrb[0].mxu0 0
    %v1281 = vpop.f32.mrb[0].mxu0
    %v1282 = vadd.f32 0.0, %v1281
    %v1283 = vpop.f32.mrb[0].mxu0
    %v1284 = vadd.f32 0.0, %v1283
    %v1285 = vpop.f32.mrb[0].mxu0
    %v1286 = vpop.f32.mrb[0].mxu0
    %1287 = vdwg.mxu0
    %1288 = vmatprep.subr.bf16.mxu0 %v1186
    %1289 = vmatpush1.bf16.msra.mxu0 %v1185
    %1290 = vmatprep.subr.bf16.mxu0 %v1190
    %1291 = vmatpush1.bf16.msra.mxu0 %v1189
    %1292 = vmatprep.subr.bf16.mxu0 %v1194
    %1293 = vmatpush1.bf16.msra.mxu0 %v1193
    %1294 = vmatprep.subr.bf16.mxu0 %v1198
    %1295 = vmatpush1.bf16.msra.mxu0 %v1197
    %1296 = vmatprep.subr.bf16.mxu0 %v1202
    %1297 = vmatpush1.bf16.msra.mxu0 %v1201
    %1298 = vmatprep.subr.bf16.mxu0 %v1206
    %1299 = vmatpush1.bf16.msra.mxu0 %v1205
    %1300 = vmatprep.subr.bf16.mxu0 %v1210
    %1301 = vmatpush1.bf16.msra.mxu0 %v1209
    %1302 = vmatprep.subr.bf16.mxu0 %v1214
    %1303 = vmatpush1.bf16.msra.mxu0 %v1213
    %1304 = vmatprep.subr.bf16.mxu0 0
    %1305 = vmatpush1.bf16.msra.mxu0 0
    %1306 = vmatprep.subr.bf16.mxu0 0
    %1307 = vmatpush1.bf16.msra.mxu0 0
    %1308 = vmatprep.subr.bf16.mxu0 0
    %1309 = vmatpush1.bf16.msra.mxu0 0
    %1310 = vmatprep.subr.bf16.mxu0 0
    %1311 = vmatpush1.bf16.msra.mxu0 0
    %1312 = vmatprep.subr.bf16.mxu0 0
    %1313 = vmatpush1.bf16.msra.mxu0 0
    %1314 = vmatprep.subr.bf16.mxu0 0
    %1315 = vmatpush1.bf16.msra.mxu0 0
    %1316 = vmatprep.subr.bf16.mxu0 0
    %1317 = vmatpush1.bf16.msra.mxu0 0
    %1318 = vmatprep.subr.bf16.mxu0 0
    %1319 = vmatpush1.bf16.msra.mxu0 0
    %1320 = vmatprep.mubr.bf16.mxu0 0
    %1321 = vmatmul.mubr.bf16.gmra.mrb[0].mxu0 0
    %v1322 = vpop.f32.mrb[0].mxu0
    %v1323 = vadd.f32 0.0, %v1322
    %v1324 = vpop.f32.mrb[0].mxu0
    %v1325 = vadd.f32 0.0, %v1324
    %v1326 = vpop.f32.mrb[0].mxu0
    %v1327 = vpop.f32.mrb[0].mxu0
    %1328 = vdwg.mxu0
    %v1329 = vadd.f32 %v1083, %v1282
    %v1330 = vadd.f32 %v1084, %v1284
    %v1331 = vadd.f32 %v1085, %v1323
    %v1332 = vadd.f32 %v1086, %v1325
    %v1333 = vxor.u32 %v1329, 2147483648
    %v1334 = vxor.u32 %v1330, 2147483648
    %v1335 = vxor.u32 %v1331, 2147483648
    %v1336 = vmul.f32 %v1333, 1.442695
    %v1337 = vpow.pop %v1336
    %v1338 = vmul.f32 %v1334, 1.442695
    %v1339 = vpow.pop %v1338
    %v1340 = vmul.f32 %v1335, 1.442695
    %v1341 = vpow.pop %v1340
    %v1342 = vadd.f32 %v1337, 1.0
    %v1343 = vadd.f32 %v1339, 1.0
    %v1344 = vadd.f32 %v1341, 1.0
    %v1345 = vrcp.pop %v1342
    %v1346 = vmul.f32 1.0, %v1345
    %v1347 = vrcp.pop %v1343
    %v1348 = vmul.f32 1.0, %v1347
    %v1349 = vrcp.pop %v1344
    %v1350 = vmul.f32 1.0, %v1349
    %v1351 = vtanh.pop %v1332
    %v1352 = vmul.f32 %v1348, 0.0
    %v1353 = vmul.f32 %v1346, %v1351
    %v1354 = vadd.f32 %v1352, %v1353
    %v1355 = vtanh.pop %v1354
    %v1356 = vmul.f32 %v1350, %v1355
    %s1357 = smul.u32 1, 8
    %s1358 = smul.addr %s1357, 8
    %s1359 = scalar_lea.vmem [#allocation2], %s1358
    %v1360 = vld [vmem:[%s1359] sm:$0xff]
    %v1361 = vld [vmem:[%s1359 + $0x8] sm:$0xff]
    %v1362 = vld [vmem:[%s1359 + $0x10] sm:$0xff]
    %v1363 = vld [vmem:[%s1359 + $0x18] sm:$0xff]
    %v1364 = vpack.c.bf16 %v1079, %v1079
    %1365 = vmatprep.subr.bf16.mxu0 %v907
    %1366 = vmatpush1.bf16.msra.mxu0 %v906
    %1367 = vmatprep.subr.bf16.mxu0 %v911
    %1368 = vmatpush1.bf16.msra.mxu0 %v910
    %1369 = vmatprep.subr.bf16.mxu0 %v915
    %1370 = vmatpush1.bf16.msra.mxu0 %v914
    %1371 = vmatprep.subr.bf16.mxu0 %v919
    %1372 = vmatpush1.bf16.msra.mxu0 %v918
    %1373 = vmatprep.subr.bf16.mxu0 %v923
    %1374 = vmatpush1.bf16.msra.mxu0 %v922
    %1375 = vmatprep.subr.bf16.mxu0 %v927
    %1376 = vmatpush1.bf16.msra.mxu0 %v926
    %1377 = vmatprep.subr.bf16.mxu0 %v931
    %1378 = vmatpush1.bf16.msra.mxu0 %v930
    %1379 = vmatprep.subr.bf16.mxu0 %v935
    %1380 = vmatpush1.bf16.msra.mxu0 %v934
    %1381 = vmatprep.subr.bf16.mxu0 0
    %1382 = vmatpush1.bf16.msra.mxu0 0
    %1383 = vmatprep.subr.bf16.mxu0 0
    %1384 = vmatpush1.bf16.msra.mxu0 0
    %1385 = vmatprep.subr.bf16.mxu0 0
    %1386 = vmatpush1.bf16.msra.mxu0 0
    %1387 = vmatprep.subr.bf16.mxu0 0
    %1388 = vmatpush1.bf16.msra.mxu0 0
    %1389 = vmatprep.subr.bf16.mxu0 0
    %1390 = vmatpush1.bf16.msra.mxu0 0
    %1391 = vmatprep.subr.bf16.mxu0 0
    %1392 = vmatpush1.bf16.msra.mxu0 0
    %1393 = vmatprep.subr.bf16.mxu0 0
    %1394 = vmatpush1.bf16.msra.mxu0 0
    %1395 = vmatprep.subr.bf16.mxu0 0
    %1396 = vmatpush1.bf16.msra.mxu0 0
    %1397 = vmatprep.mubr.bf16.mxu0 0
    %1398 = vmatmul.mubr.bf16.gmra.mrb[0].mxu0 %v1364
    %v1399 = vpop.f32.mrb[0].mxu0
    %v1400 = vadd.f32 0.0, %v1399
    %v1401 = vpop.f32.mrb[0].mxu0
    %v1402 = vadd.f32 0.0, %v1401
    %v1403 = vpop.f32.mrb[0].mxu0
    %v1404 = vpop.f32.mrb[0].mxu0
    %1405 = vdwg.mxu0
    %1406 = vmatprep.subr.bf16.mxu0 %v909
    %1407 = vmatpush1.bf16.msra.mxu0 %v908
    %1408 = vmatprep.subr.bf16.mxu0 %v913
    %1409 = vmatpush1.bf16.msra.mxu0 %v912
    %1410 = vmatprep.subr.bf16.mxu0 %v917
    %1411 = vmatpush1.bf16.msra.mxu0 %v916
    %1412 = vmatprep.subr.bf16.mxu0 %v921
    %1413 = vmatpush1.bf16.msra.mxu0 %v920
    %1414 = vmatprep.subr.bf16.mxu0 %v925
    %1415 = vmatpush1.bf16.msra.mxu0 %v924
    %1416 = vmatprep.subr.bf16.mxu0 %v929
    %1417 = vmatpush1.bf16.msra.mxu0 %v928
    %1418 = vmatprep.subr.bf16.mxu0 %v933
    %1419 = vmatpush1.bf16.msra.mxu0 %v932
    %1420 = vmatprep.subr.bf16.mxu0 %v937
    %1421 = vmatpush1.bf16.msra.mxu0 %v936
    %1422 = vmatprep.subr.bf16.mxu0 0
    %1423 = vmatpush1.bf16.msra.mxu0 0
    %1424 = vmatprep.subr.bf16.mxu0 0
    %1425 = vmatpush1.bf16.msra.mxu0 0
    %1426 = vmatprep.subr.bf16.mxu0 0
    %1427 = vmatpush1.bf16.msra.mxu0 0
    %1428 = vmatprep.subr.bf16.mxu0 0
    %1429 = vmatpush1.bf16.msra.mxu0 0
    %1430 = vmatprep.subr.bf16.mxu0 0
    %1431 = vmatpush1.bf16.msra.mxu0 0
    %1432 = vmatprep.subr.bf16.mxu0 0
    %1433 = vmatpush1.bf16.msra.mxu0 0
    %1434 = vmatprep.subr.bf16.mxu0 0
    %1435 = vmatpush1.bf16.msra.mxu0 0
    %1436 = vmatprep.subr.bf16.mxu0 0
    %1437 = vmatpush1.bf16.msra.mxu0 0
    %1438 = vmatprep.mubr.bf16.mxu0 0
    %1439 = vmatmul.mubr.bf16.gmra.mrb[0].mxu0 %v1364
    %v1440 = vpop.f32.mrb[0].mxu0
    %v1441 = vadd.f32 0.0, %v1440
    %v1442 = vpop.f32.mrb[0].mxu0
    %v1443 = vadd.f32 0.0, %v1442
    %v1444 = vpop.f32.mrb[0].mxu0
    %v1445 = vpop.f32.mrb[0].mxu0
    %1446 = vdwg.mxu0
    %v1447 = vadd.f32 %v1360, %v1400
    %v1448 = vadd.f32 %v1361, %v1402
    %v1449 = vadd.f32 %v1362, %v1441
    %v1450 = vadd.f32 %v1363, %v1443
    %v1451 = vxor.u32 %v1447, 2147483648
    %v1452 = vxor.u32 %v1448, 2147483648
    %v1453 = vxor.u32 %v1449, 2147483648
    %v1454 = vmul.f32 %v1451, 1.442695
    %v1455 = vpow.pop %v1454
    %v1456 = vmul.f32 %v1452, 1.442695
    %v1457 = vpow.pop %v1456
    %v1458 = vmul.f32 %v1453, 1.442695
    %v1459 = vpow.pop %v1458
    %v1460 = vadd.f32 %v1455, 1.0
    %v1461 = vadd.f32 %v1457, 1.0
    %v1462 = vadd.f32 %v1459, 1.0
    %v1463 = vrcp.pop %v1460
    %v1464 = vmul.f32 1.0, %v1463
    %v1465 = vrcp.pop %v1461
    %v1466 = vmul.f32 1.0, %v1465
    %v1467 = vrcp.pop %v1462
    %v1468 = vmul.f32 1.0, %v1467
    %v1469 = vtanh.pop %v1450
    %v1470 = vmul.f32 %v1466, %v1077
    %v1471 = vmul.f32 %v1464, %v1469
    %v1472 = vadd.f32 %v1470, %v1471
    %v1473 = vtanh.pop %v1472
    %v1474 = vmul.f32 %v1468, %v1473
    %s1475 = smul.u32 6, 8
    %s1476 = smul.addr %s1475, 8
    %s1477 = scalar_lea.vmem [#allocation2], %s1476
    %v1478 = vld [vmem:[%s1477 + $0x20] sm:$0xff]
    %v1479 = vld [vmem:[%s1477 + $0x28] sm:$0xff]
    %v1480 = vld [vmem:[%s1477 + $0x30] sm:$0xff]
    %v1481 = vld [vmem:[%s1477 + $0x38] sm:$0xff]
    %v1482 = vpack.c.bf16 %v1356, %v1356
    %1483 = vmatprep.subr.bf16.mxu0 %v1184
    %1484 = vmatpush1.bf16.msra.mxu0 %v1183
    %1485 = vmatprep.subr.bf16.mxu0 %v1188
    %1486 = vmatpush1.bf16.msra.mxu0 %v1187
    %1487 = vmatprep.subr.bf16.mxu0 %v1192
    %1488 = vmatpush1.bf16.msra.mxu0 %v1191
    %1489 = vmatprep.subr.bf16.mxu0 %v1196
    %1490 = vmatpush1.bf16.msra.mxu0 %v1195
    %1491 = vmatprep.subr.bf16.mxu0 %v1200
    %1492 = vmatpush1.bf16.msra.mxu0 %v1199
    %1493 = vmatprep.subr.bf16.mxu0 %v1204
    %1494 = vmatpush1.bf16.msra.mxu0 %v1203
    %1495 = vmatprep.subr.bf16.mxu0 %v1208
    %1496 = vmatpush1.bf16.msra.mxu0 %v1207
    %1497 = vmatprep.subr.bf16.mxu0 %v1212
    %1498 = vmatpush1.bf16.msra.mxu0 %v1211
    %1499 = vmatprep.subr.bf16.mxu0 0
    %1500 = vmatpush1.bf16.msra.mxu0 0
    %1501 = vmatprep.subr.bf16.mxu0 0
    %1502 = vmatpush1.bf16.msra.mxu0 0
    %1503 = vmatprep.subr.bf16.mxu0 0
    %1504 = vmatpush1.bf16.msra.mxu0 0
    %1505 = vmatprep.subr.bf16.mxu0 0
    %1506 = vmatpush1.bf16.msra.mxu0 0
    %1507 = vmatprep.subr.bf16.mxu0 0
    %1508 = vmatpush1.bf16.msra.mxu0 0
    %1509 = vmatprep.subr.bf16.mxu0 0
    %1510 = vmatpush1.bf16.msra.mxu0 0
    %1511 = vmatprep.subr.bf16.mxu0 0
    %1512 = vmatpush1.bf16.msra.mxu0 0
    %1513 = vmatprep.subr.bf16.mxu0 0
    %1514 = vmatpush1.bf16.msra.mxu0 0
    %1515 = vmatprep.mubr.bf16.mxu0 0
    %1516 = vmatmul.mubr.bf16.gmra.mrb[0].mxu0 %v1482
    %v1517 = vpop.f32.mrb[0].mxu0
    %v1518 = vadd.f32 0.0, %v1517
    %v1519 = vpop.f32.mrb[0].mxu0
    %v1520 = vadd.f32 0.0, %v1519
    %v1521 = vpop.f32.mrb[0].mxu0
    %v1522 = vpop.f32.mrb[0].mxu0
    %1523 = vdwg.mxu0
    %1524 = vmatprep.subr.bf16.mxu0 %v1186
    %1525 = vmatpush1.bf16.msra.mxu0 %v1185
    %1526 = vmatprep.subr.bf16.mxu0 %v1190
    %1527 = vmatpush1.bf16.msra.mxu0 %v1189
    %1528 = vmatprep.subr.bf16.mxu0 %v1194
    %1529 = vmatpush1.bf16.msra.mxu0 %v1193
    %1530 = vmatprep.subr.bf16.mxu0 %v1198
    %1531 = vmatpush1.bf16.msra.mxu0 %v1197
    %1532 = vmatprep.subr.bf16.mxu0 %v1202
    %1533 = vmatpush1.bf16.msra.mxu0 %v1201
    %1534 = vmatprep.subr.bf16.mxu0 %v1206
    %1535 = vmatpush1.bf16.msra.mxu0 %v1205
    %1536 = vmatprep.subr.bf16.mxu0 %v1210
    %1537 = vmatpush1.bf16.msra.mxu0 %v1209
    %1538 = vmatprep.subr.bf16.mxu0 %v1214
    %1539 = vmatpush1.bf16.msra.mxu0 %v1213
    %1540 = vmatprep.subr.bf16.mxu0 0
    %1541 = vmatpush1.bf16.msra.mxu0 0
    %1542 = vmatprep.subr.bf16.mxu0 0
    %1543 = vmatpush1.bf16.msra.mxu0 0
    %1544 = vmatprep.subr.bf16.mxu0 0
    %1545 = vmatpush1.bf16.msra.mxu0 0
    %1546 = vmatprep.subr.bf16.mxu0 0
    %1547 = vmatpush1.bf16.msra.mxu0 0
    %1548 = vmatprep.subr.bf16.mxu0 0
    %1549 = vmatpush1.bf16.msra.mxu0 0
    %1550 = vmatprep.subr.bf16.mxu0 0
    %1551 = vmatpush1.bf16.msra.mxu0 0
    %1552 = vmatprep.subr.bf16.mxu0 0
    %1553 = vmatpush1.bf16.msra.mxu0 0
    %1554 = vmatprep.subr.bf16.mxu0 0
    %1555 = vmatpush1.bf16.msra.mxu0 0
    %1556 = vmatprep.mubr.bf16.mxu0 0
    %1557 = vmatmul.mubr.bf16.gmra.mrb[0].mxu0 %v1482
    %v1558 = vpop.f32.mrb[0].mxu0
    %v1559 = vadd.f32 0.0, %v1558
    %v1560 = vpop.f32.mrb[0].mxu0
    %v1561 = vadd.f32 0.0, %v1560
    %v1562 = vpop.f32.mrb[0].mxu0
    %v1563 = vpop.f32.mrb[0].mxu0
    %1564 = vdwg.mxu0
    %v1565 = vadd.f32 %v1478, %v1518
    %v1566 = vadd.f32 %v1479, %v1520
    %v1567 = vadd.f32 %v1480, %v1559
    %v1568 = vadd.f32 %v1481, %v1561
    %v1569 = vxor.u32 %v1565, 2147483648
    %v1570 = vxor.u32 %v1566, 2147483648
    %v1571 = vxor.u32 %v1567, 2147483648
    %v1572 = vmul.f32 %v1569, 1.442695
    %v1573 = vpow.pop %v1572
    %v1574 = vmul.f32 %v1570, 1.442695
    %v1575 = vpow.pop %v1574
    %v1576 = vmul.f32 %v1571, 1.442695
    %v1577 = vpow.pop %v1576
    %v1578 = vadd.f32 %v1573, 1.0
    %v1579 = vadd.f32 %v1575, 1.0
    %v1580 = vadd.f32 %v1577, 1.0
    %v1581 = vrcp.pop %v1578
    %v1582 = vmul.f32 1.0, %v1581
    %v1583 = vrcp.pop %v1579
    %v1584 = vmul.f32 1.0, %v1583
    %v1585 = vrcp.pop %v1580
    %v1586 = vmul.f32 1.0, %v1585
    %v1587 = vtanh.pop %v1568
    %v1588 = vmul.f32 %v1584, %v1354
    %v1589 = vmul.f32 %v1582, %v1587
    %v1590 = vadd.f32 %v1588, %v1589
    %v1591 = vtanh.pop %v1590
    %v1592 = vmul.f32 %v1586, %v1591
    %s1593 = smul.u32 2, 8
    %s1594 = smul.addr %s1593, 8
    %s1595 = scalar_lea.vmem [#allocation2], %s1594
    %v1596 = vld [vmem:[%s1595] sm:$0xff]
    %v1597 = vld [vmem:[%s1595 + $0x8] sm:$0xff]
    %v1598 = vld [vmem:[%s1595 + $0x10] sm:$0xff]
    %v1599 = vld [vmem:[%s1595 + $0x18] sm:$0xff]
    %v1600 = vpack.c.bf16 %v1474, %v1474
    %1601 = vmatprep.subr.bf16.mxu0 %v907
    %1602 = vmatpush1.bf16.msra.mxu0 %v906
    %1603 = vmatprep.subr.bf16.mxu0 %v911
    %1604 = vmatpush1.bf16.msra.mxu0 %v910
    %1605 = vmatprep.subr.bf16.mxu0 %v915
    %1606 = vmatpush1.bf16.msra.mxu0 %v914
    %1607 = vmatprep.subr.bf16.mxu0 %v919
    %1608 = vmatpush1.bf16.msra.mxu0 %v918
    %1609 = vmatprep.subr.bf16.mxu0 %v923
    %1610 = vmatpush1.bf16.msra.mxu0 %v922
    %1611 = vmatprep.subr.bf16.mxu0 %v927
    %1612 = vmatpush1.bf16.msra.mxu0 %v926
    %1613 = vmatprep.subr.bf16.mxu0 %v931
    %1614 = vmatpush1.bf16.msra.mxu0 %v930
    %1615 = vmatprep.subr.bf16.mxu0 %v935
    %1616 = vmatpush1.bf16.msra.mxu0 %v934
    %1617 = vmatprep.subr.bf16.mxu0 0
    %1618 = vmatpush1.bf16.msra.mxu0 0
    %1619 = vmatprep.subr.bf16.mxu0 0
    %1620 = vmatpush1.bf16.msra.mxu0 0
    %1621 = vmatprep.subr.bf16.mxu0 0
    %1622 = vmatpush1.bf16.msra.mxu0 0
    %1623 = vmatprep.subr.bf16.mxu0 0
    %1624 = vmatpush1.bf16.msra.mxu0 0
    %1625 = vmatprep.subr.bf16.mxu0 0
    %1626 = vmatpush1.bf16.msra.mxu0 0
    %1627 = vmatprep.subr.bf16.mxu0 0
    %1628 = vmatpush1.bf16.msra.mxu0 0
    %1629 = vmatprep.subr.bf16.mxu0 0
    %1630 = vmatpush1.bf16.msra.mxu0 0
    %1631 = vmatprep.subr.bf16.mxu0 0
    %1632 = vmatpush1.bf16.msra.mxu0 0
    %1633 = vmatprep.mubr.bf16.mxu0 0
    %1634 = vmatmul.mubr.bf16.gmra.mrb[0].mxu0 %v1600
    %v1635 = vpop.f32.mrb[0].mxu0
    %v1636 = vadd.f32 0.0, %v1635
    %v1637 = vpop.f32.mrb[0].mxu0
    %v1638 = vadd.f32 0.0, %v1637
    %v1639 = vpop.f32.mrb[0].mxu0
    %v1640 = vpop.f32.mrb[0].mxu0
    %1641 = vdwg.mxu0
    %1642 = vmatprep.subr.bf16.mxu0 %v909
    %1643 = vmatpush1.bf16.msra.mxu0 %v908
    %1644 = vmatprep.subr.bf16.mxu0 %v913
    %1645 = vmatpush1.bf16.msra.mxu0 %v912
    %1646 = vmatprep.subr.bf16.mxu0 %v917
    %1647 = vmatpush1.bf16.msra.mxu0 %v916
    %1648 = vmatprep.subr.bf16.mxu0 %v921
    %1649 = vmatpush1.bf16.msra.mxu0 %v920
    %1650 = vmatprep.subr.bf16.mxu0 %v925
    %1651 = vmatpush1.bf16.msra.mxu0 %v924
    %1652 = vmatprep.subr.bf16.mxu0 %v929
    %1653 = vmatpush1.bf16.msra.mxu0 %v928
    %1654 = vmatprep.subr.bf16.mxu0 %v933
    %1655 = vmatpush1.bf16.msra.mxu0 %v932
    %1656 = vmatprep.subr.bf16.mxu0 %v937
    %1657 = vmatpush1.bf16.msra.mxu0 %v936
    %1658 = vmatprep.subr.bf16.mxu0 0
    %1659 = vmatpush1.bf16.msra.mxu0 0
    %1660 = vmatprep.subr.bf16.mxu0 0
    %1661 = vmatpush1.bf16.msra.mxu0 0
    %1662 = vmatprep.subr.bf16.mxu0 0
    %1663 = vmatpush1.bf16.msra.mxu0 0
    %1664 = vmatprep.subr.bf16.mxu0 0
    %1665 = vmatpush1.bf16.msra.mxu0 0
    %1666 = vmatprep.subr.bf16.mxu0 0
    %1667 = vmatpush1.bf16.msra.mxu0 0
    %1668 = vmatprep.subr.bf16.mxu0 0
    %1669 = vmatpush1.bf16.msra.mxu0 0
    %1670 = vmatprep.subr.bf16.mxu0 0
    %1671 = vmatpush1.bf16.msra.mxu0 0
    %1672 = vmatprep.subr.bf16.mxu0 0
    %1673 = vmatpush1.bf16.msra.mxu0 0
    %1674 = vmatprep.mubr.bf16.mxu0 0
    %1675 = vmatmul.mubr.bf16.gmra.mrb[0].mxu0 %v1600
    %v1676 = vpop.f32.mrb[0].mxu0
    %v1677 = vadd.f32 0.0, %v1676
    %v1678 = vpop.f32.mrb[0].mxu0
    %v1679 = vadd.f32 0.0, %v1678
    %v1680 = vpop.f32.mrb[0].mxu0
    %v1681 = vpop.f32.mrb[0].mxu0
    %1682 = vdwg.mxu0
    %v1683 = vadd.f32 %v1596, %v1636
    %v1684 = vadd.f32 %v1597, %v1638
    %v1685 = vadd.f32 %v1598, %v1677
    %v1686 = vadd.f32 %v1599, %v1679
    %v1687 = vxor.u32 %v1683, 2147483648
    %v1688 = vxor.u32 %v1684, 2147483648
    %v1689 = vxor.u32 %v1685, 2147483648
    %v1690 = vmul.f32 %v1687, 1.442695
    %v1691 = vpow.pop %v1690
    %v1692 = vmul.f32 %v1688, 1.442695
    %v1693 = vpow.pop %v1692
    %v1694 = vmul.f32 %v1689, 1.442695
    %v1695 = vpow.pop %v1694
    %v1696 = vadd.f32 %v1691, 1.0
    %v1697 = vadd.f32 %v1693, 1.0
    %v1698 = vadd.f32 %v1695, 1.0
    %v1699 = vrcp.pop %v1696
    %v1700 = vmul.f32 1.0, %v1699
    %v1701 = vrcp.pop %v1697
    %v1702 = vmul.f32 1.0, %v1701
    %v1703 = vrcp.pop %v1698
    %v1704 = vmul.f32 1.0, %v1703
    %v1705 = vtanh.pop %v1686
    %v1706 = vmul.f32 %v1702, %v1472
    %v1707 = vmul.f32 %v1700, %v1705
    %v1708 = vadd.f32 %v1706, %v1707
    %v1709 = vtanh.pop %v1708
    %v1710 = vmul.f32 %v1704, %v1709
    %s1711 = smul.u32 5, 8
    %s1712 = smul.addr %s1711, 8
    %s1713 = scalar_lea.vmem [#allocation2], %s1712
    %v1714 = vld [vmem:[%s1713 + $0x20] sm:$0xff]
    %v1715 = vld [vmem:[%s1713 + $0x28] sm:$0xff]
    %v1716 = vld [vmem:[%s1713 + $0x30] sm:$0xff]
    %v1717 = vld [vmem:[%s1713 + $0x38] sm:$0xff]
    %v1718 = vpack.c.bf16 %v1592, %v1592
    %1719 = vmatprep.subr.bf16.mxu0 %v1184
    %1720 = vmatpush1.bf16.msra.mxu0 %v1183
    %1721 = vmatprep.subr.bf16.mxu0 %v1188
    %1722 = vmatpush1.bf16.msra.mxu0 %v1187
    %1723 = vmatprep.subr.bf16.mxu0 %v1192
    %1724 = vmatpush1.bf16.msra.mxu0 %v1191
    %1725 = vmatprep.subr.bf16.mxu0 %v1196
    %1726 = vmatpush1.bf16.msra.mxu0 %v1195
    %1727 = vmatprep.subr.bf16.mxu0 %v1200
    %1728 = vmatpush1.bf16.msra.mxu0 %v1199
    %1729 = vmatprep.subr.bf16.mxu0 %v1204
    %1730 = vmatpush1.bf16.msra.mxu0 %v1203
    %1731 = vmatprep.subr.bf16.mxu0 %v1208
    %1732 = vmatpush1.bf16.msra.mxu0 %v1207
    %1733 = vmatprep.subr.bf16.mxu0 %v1212
    %1734 = vmatpush1.bf16.msra.mxu0 %v1211
    %1735 = vmatprep.subr.bf16.mxu0 0
    %1736 = vmatpush1.bf16.msra.mxu0 0
    %1737 = vmatprep.subr.bf16.mxu0 0
    %1738 = vmatpush1.bf16.msra.mxu0 0
    %1739 = vmatprep.subr.bf16.mxu0 0
    %1740 = vmatpush1.bf16.msra.mxu0 0
    %1741 = vmatprep.subr.bf16.mxu0 0
    %1742 = vmatpush1.bf16.msra.mxu0 0
    %1743 = vmatprep.subr.bf16.mxu0 0
    %1744 = vmatpush1.bf16.msra.mxu0 0
    %1745 = vmatprep.subr.bf16.mxu0 0
    %1746 = vmatpush1.bf16.msra.mxu0 0
    %1747 = vmatprep.subr.bf16.mxu0 0
    %1748 = vmatpush1.bf16.msra.mxu0 0
    %1749 = vmatprep.subr.bf16.mxu0 0
    %1750 = vmatpush1.bf16.msra.mxu0 0
    %1751 = vmatprep.mubr.bf16.mxu0 0
    %1752 = vmatmul.mubr.bf16.gmra.mrb[0].mxu0 %v1718
    %v1753 = vpop.f32.mrb[0].mxu0
    %v1754 = vadd.f32 0.0, %v1753
    %v1755 = vpop.f32.mrb[0].mxu0
    %v1756 = vadd.f32 0.0, %v1755
    %v1757 = vpop.f32.mrb[0].mxu0
    %v1758 = vpop.f32.mrb[0].mxu0
    %1759 = vdwg.mxu0
    %1760 = vmatprep.subr.bf16.mxu0 %v1186
    %1761 = vmatpush1.bf16.msra.mxu0 %v1185
    %1762 = vmatprep.subr.bf16.mxu0 %v1190
    %1763 = vmatpush1.bf16.msra.mxu0 %v1189
    %1764 = vmatprep.subr.bf16.mxu0 %v1194
    %1765 = vmatpush1.bf16.msra.mxu0 %v1193
    %1766 = vmatprep.subr.bf16.mxu0 %v1198
    %1767 = vmatpush1.bf16.msra.mxu0 %v1197
    %1768 = vmatprep.subr.bf16.mxu0 %v1202
    %1769 = vmatpush1.bf16.msra.mxu0 %v1201
    %1770 = vmatprep.subr.bf16.mxu0 %v1206
    %1771 = vmatpush1.bf16.msra.mxu0 %v1205
    %1772 = vmatprep.subr.bf16.mxu0 %v1210
    %1773 = vmatpush1.bf16.msra.mxu0 %v1209
    %1774 = vmatprep.subr.bf16.mxu0 %v1214
    %1775 = vmatpush1.bf16.msra.mxu0 %v1213
    %1776 = vmatprep.subr.bf16.mxu0 0
    %1777 = vmatpush1.bf16.msra.mxu0 0
    %1778 = vmatprep.subr.bf16.mxu0 0
    %1779 = vmatpush1.bf16.msra.mxu0 0
    %1780 = vmatprep.subr.bf16.mxu0 0
    %1781 = vmatpush1.bf16.msra.mxu0 0
    %1782 = vmatprep.subr.bf16.mxu0 0
    %1783 = vmatpush1.bf16.msra.mxu0 0
    %1784 = vmatprep.subr.bf16.mxu0 0
    %1785 = vmatpush1.bf16.msra.mxu0 0
    %1786 = vmatprep.subr.bf16.mxu0 0
    %1787 = vmatpush1.bf16.msra.mxu0 0
    %1788 = vmatprep.subr.bf16.mxu0 0
    %1789 = vmatpush1.bf16.msra.mxu0 0
    %1790 = vmatprep.subr.bf16.mxu0 0
    %1791 = vmatpush1.bf16.msra.mxu0 0
    %1792 = vmatprep.mubr.bf16.mxu0 0
    %1793 = vmatmul.mubr.bf16.gmra.mrb[0].mxu0 %v1718
    %v1794 = vpop.f32.mrb[0].mxu0
    %v1795 = vadd.f32 0.0, %v1794
    %v1796 = vpop.f32.mrb[0].mxu0
    %v1797 = vadd.f32 0.0, %v1796
    %v1798 = vpop.f32.mrb[0].mxu0
    %v1799 = vpop.f32.mrb[0].mxu0
    %1800 = vdwg.mxu0
    %v1801 = vadd.f32 %v1714, %v1754
    %v1802 = vadd.f32 %v1715, %v1756
    %v1803 = vadd.f32 %v1716, %v1795
    %v1804 = vadd.f32 %v1717, %v1797
    %v1805 = vxor.u32 %v1801, 2147483648
    %v1806 = vxor.u32 %v1802, 2147483648
    %v1807 = vxor.u32 %v1803, 2147483648
    %v1808 = vmul.f32 %v1805, 1.442695
    %v1809 = vpow.pop %v1808
    %v1810 = vmul.f32 %v1806, 1.442695
    %v1811 = vpow.pop %v1810
    %v1812 = vmul.f32 %v1807, 1.442695
    %v1813 = vpow.pop %v1812
    %v1814 = vadd.f32 %v1809, 1.0
    %v1815 = vadd.f32 %v1811, 1.0
    %v1816 = vadd.f32 %v1813, 1.0
    %v1817 = vrcp.pop %v1814
    %v1818 = vmul.f32 1.0, %v1817
    %v1819 = vrcp.pop %v1815
    %v1820 = vmul.f32 1.0, %v1819
    %v1821 = vrcp.pop %v1816
    %v1822 = vmul.f32 1.0, %v1821
    %v1823 = vtanh.pop %v1804
    %v1824 = vmul.f32 %v1820, %v1590
    %v1825 = vmul.f32 %v1818, %v1823
    %v1826 = vadd.f32 %v1824, %v1825
    %v1827 = vtanh.pop %v1826
    %v1828 = vmul.f32 %v1822, %v1827
    %s1829 = smul.u32 3, 8
    %s1830 = smul.addr %s1829, 8
    %s1831 = scalar_lea.vmem [#allocation2], %s1830
    %v1832 = vld [vmem:[%s1831] sm:$0xff]
    %v1833 = vld [vmem:[%s1831 + $0x8] sm:$0xff]
    %v1834 = vld [vmem:[%s1831 + $0x10] sm:$0xff]
    %v1835 = vld [vmem:[%s1831 + $0x18] sm:$0xff]
    %v1836 = vpack.c.bf16 %v1710, %v1710
    %1837 = vmatprep.subr.bf16.mxu0 %v907
    %1838 = vmatpush1.bf16.msra.mxu0 %v906
    %1839 = vmatprep.subr.bf16.mxu0 %v911
    %1840 = vmatpush1.bf16.msra.mxu0 %v910
    %1841 = vmatprep.subr.bf16.mxu0 %v915
    %1842 = vmatpush1.bf16.msra.mxu0 %v914
    %1843 = vmatprep.subr.bf16.mxu0 %v919
    %1844 = vmatpush1.bf16.msra.mxu0 %v918
    %1845 = vmatprep.subr.bf16.mxu0 %v923
    %1846 = vmatpush1.bf16.msra.mxu0 %v922
    %1847 = vmatprep.subr.bf16.mxu0 %v927
    %1848 = vmatpush1.bf16.msra.mxu0 %v926
    %1849 = vmatprep.subr.bf16.mxu0 %v931
    %1850 = vmatpush1.bf16.msra.mxu0 %v930
    %1851 = vmatprep.subr.bf16.mxu0 %v935
    %1852 = vmatpush1.bf16.msra.mxu0 %v934
    %1853 = vmatprep.subr.bf16.mxu0 0
    %1854 = vmatpush1.bf16.msra.mxu0 0
    %1855 = vmatprep.subr.bf16.mxu0 0
    %1856 = vmatpush1.bf16.msra.mxu0 0
    %1857 = vmatprep.subr.bf16.mxu0 0
    %1858 = vmatpush1.bf16.msra.mxu0 0
    %1859 = vmatprep.subr.bf16.mxu0 0
    %1860 = vmatpush1.bf16.msra.mxu0 0
    %1861 = vmatprep.subr.bf16.mxu0 0
    %1862 = vmatpush1.bf16.msra.mxu0 0
    %1863 = vmatprep.subr.bf16.mxu0 0
    %1864 = vmatpush1.bf16.msra.mxu0 0
    %1865 = vmatprep.subr.bf16.mxu0 0
    %1866 = vmatpush1.bf16.msra.mxu0 0
    %1867 = vmatprep.subr.bf16.mxu0 0
    %1868 = vmatpush1.bf16.msra.mxu0 0
    %1869 = vmatprep.mubr.bf16.mxu0 0
    %1870 = vmatmul.mubr.bf16.gmra.mrb[0].mxu0 %v1836
    %v1871 = vpop.f32.mrb[0].mxu0
    %v1872 = vadd.f32 0.0, %v1871
    %v1873 = vpop.f32.mrb[0].mxu0
    %v1874 = vadd.f32 0.0, %v1873
    %v1875 = vpop.f32.mrb[0].mxu0
    %v1876 = vpop.f32.mrb[0].mxu0
    %1877 = vdwg.mxu0
    %1878 = vmatprep.subr.bf16.mxu0 %v909
    %1879 = vmatpush1.bf16.msra.mxu0 %v908
    %1880 = vmatprep.subr.bf16.mxu0 %v913
    %1881 = vmatpush1.bf16.msra.mxu0 %v912
    %1882 = vmatprep.subr.bf16.mxu0 %v917
    %1883 = vmatpush1.bf16.msra.mxu0 %v916
    %1884 = vmatprep.subr.bf16.mxu0 %v921
    %1885 = vmatpush1.bf16.msra.mxu0 %v920
    %1886 = vmatprep.subr.bf16.mxu0 %v925
    %1887 = vmatpush1.bf16.msra.mxu0 %v924
    %1888 = vmatprep.subr.bf16.mxu0 %v929
    %1889 = vmatpush1.bf16.msra.mxu0 %v928
    %1890 = vmatprep.subr.bf16.mxu0 %v933
    %1891 = vmatpush1.bf16.msra.mxu0 %v932
    %1892 = vmatprep.subr.bf16.mxu0 %v937
    %1893 = vmatpush1.bf16.msra.mxu0 %v936
    %1894 = vmatprep.subr.bf16.mxu0 0
    %1895 = vmatpush1.bf16.msra.mxu0 0
    %1896 = vmatprep.subr.bf16.mxu0 0
    %1897 = vmatpush1.bf16.msra.mxu0 0
    %1898 = vmatprep.subr.bf16.mxu0 0
    %1899 = vmatpush1.bf16.msra.mxu0 0
    %1900 = vmatprep.subr.bf16.mxu0 0
    %1901 = vmatpush1.bf16.msra.mxu0 0
    %1902 = vmatprep.subr.bf16.mxu0 0
    %1903 = vmatpush1.bf16.msra.mxu0 0
    %1904 = vmatprep.subr.bf16.mxu0 0
    %1905 = vmatpush1.bf16.msra.mxu0 0
    %1906 = vmatprep.subr.bf16.mxu0 0
    %1907 = vmatpush1.bf16.msra.mxu0 0
    %1908 = vmatprep.subr.bf16.mxu0 0
    %1909 = vmatpush1.bf16.msra.mxu0 0
    %1910 = vmatprep.mubr.bf16.mxu0 0
    %1911 = vmatmul.mubr.bf16.gmra.mrb[0].mxu0 %v1836
    %v1912 = vpop.f32.mrb[0].mxu0
    %v1913 = vadd.f32 0.0, %v1912
    %v1914 = vpop.f32.mrb[0].mxu0
    %v1915 = vadd.f32 0.0, %v1914
    %v1916 = vpop.f32.mrb[0].mxu0
    %v1917 = vpop.f32.mrb[0].mxu0
    %1918 = vdwg.mxu0
    %v1919 = vadd.f32 %v1832, %v1872
    %v1920 = vadd.f32 %v1833, %v1874
    %v1921 = vadd.f32 %v1834, %v1913
    %v1922 = vadd.f32 %v1835, %v1915
    %v1923 = vxor.u32 %v1919, 2147483648
    %v1924 = vxor.u32 %v1920, 2147483648
    %v1925 = vxor.u32 %v1921, 2147483648
    %v1926 = vmul.f32 %v1923, 1.442695
    %v1927 = vpow.pop %v1926
    %v1928 = vmul.f32 %v1924, 1.442695
    %v1929 = vpow.pop %v1928
    %v1930 = vmul.f32 %v1925, 1.442695
    %v1931 = vpow.pop %v1930
    %v1932 = vadd.f32 %v1927, 1.0
    %v1933 = vadd.f32 %v1929, 1.0
    %v1934 = vadd.f32 %v1931, 1.0
    %v1935 = vrcp.pop %v1932
    %v1936 = vmul.f32 1.0, %v1935
    %v1937 = vrcp.pop %v1933
    %v1938 = vmul.f32 1.0, %v1937
    %v1939 = vrcp.pop %v1934
    %v1940 = vmul.f32 1.0, %v1939
    %v1941 = vtanh.pop %v1922
    %v1942 = vmul.f32 %v1938, %v1708
    %v1943 = vmul.f32 %v1936, %v1941
    %v1944 = vadd.f32 %v1942, %v1943
    %v1945 = vtanh.pop %v1944
    %v1946 = vmul.f32 %v1940, %v1945
    %s1947 = smul.u32 4, 8
    %s1948 = smul.addr %s1947, 8
    %s1949 = scalar_lea.vmem [#allocation2], %s1948
    %v1950 = vld [vmem:[%s1949 + $0x20] sm:$0xff]
    %v1951 = vld [vmem:[%s1949 + $0x28] sm:$0xff]
    %v1952 = vld [vmem:[%s1949 + $0x30] sm:$0xff]
    %v1953 = vld [vmem:[%s1949 + $0x38] sm:$0xff]
    %v1954 = vpack.c.bf16 %v1828, %v1828
    %1955 = vmatprep.subr.bf16.mxu0 %v1184
    %1956 = vmatpush1.bf16.msra.mxu0 %v1183
    %1957 = vmatprep.subr.bf16.mxu0 %v1188
    %1958 = vmatpush1.bf16.msra.mxu0 %v1187
    %1959 = vmatprep.subr.bf16.mxu0 %v1192
    %1960 = vmatpush1.bf16.msra.mxu0 %v1191
    %1961 = vmatprep.subr.bf16.mxu0 %v1196
    %1962 = vmatpush1.bf16.msra.mxu0 %v1195
    %1963 = vmatprep.subr.bf16.mxu0 %v1200
    %1964 = vmatpush1.bf16.msra.mxu0 %v1199
    %1965 = vmatprep.subr.bf16.mxu0 %v1204
    %1966 = vmatpush1.bf16.msra.mxu0 %v1203
    %1967 = vmatprep.subr.bf16.mxu0 %v1208
    %1968 = vmatpush1.bf16.msra.mxu0 %v1207
    %1969 = vmatprep.subr.bf16.mxu0 %v1212
    %1970 = vmatpush1.bf16.msra.mxu0 %v1211
    %1971 = vmatprep.subr.bf16.mxu0 0
    %1972 = vmatpush1.bf16.msra.mxu0 0
    %1973 = vmatprep.subr.bf16.mxu0 0
    %1974 = vmatpush1.bf16.msra.mxu0 0
    %1975 = vmatprep.subr.bf16.mxu0 0
    %1976 = vmatpush1.bf16.msra.mxu0 0
    %1977 = vmatprep.subr.bf16.mxu0 0
    %1978 = vmatpush1.bf16.msra.mxu0 0
    %1979 = vmatprep.subr.bf16.mxu0 0
    %1980 = vmatpush1.bf16.msra.mxu0 0
    %1981 = vmatprep.subr.bf16.mxu0 0
    %1982 = vmatpush1.bf16.msra.mxu0 0
    %1983 = vmatprep.subr.bf16.mxu0 0
    %1984 = vmatpush1.bf16.msra.mxu0 0
    %1985 = vmatprep.subr.bf16.mxu0 0
    %1986 = vmatpush1.bf16.msra.mxu0 0
    %1987 = vmatprep.mubr.bf16.mxu0 0
    %1988 = vmatmul.mubr.bf16.gmra.mrb[0].mxu0 %v1954
    %v1989 = vpop.f32.mrb[0].mxu0
    %v1990 = vadd.f32 0.0, %v1989
    %v1991 = vpop.f32.mrb[0].mxu0
    %v1992 = vadd.f32 0.0, %v1991
    %v1993 = vpop.f32.mrb[0].mxu0
    %v1994 = vpop.f32.mrb[0].mxu0
    %1995 = vdwg.mxu0
    %1996 = vmatprep.subr.bf16.mxu0 %v1186
    %1997 = vmatpush1.bf16.msra.mxu0 %v1185
    %1998 = vmatprep.subr.bf16.mxu0 %v1190
    %1999 = vmatpush1.bf16.msra.mxu0 %v1189
    %2000 = vmatprep.subr.bf16.mxu0 %v1194
    %2001 = vmatpush1.bf16.msra.mxu0 %v1193
    %2002 = vmatprep.subr.bf16.mxu0 %v1198
    %2003 = vmatpush1.bf16.msra.mxu0 %v1197
    %2004 = vmatprep.subr.bf16.mxu0 %v1202
    %2005 = vmatpush1.bf16.msra.mxu0 %v1201
    %2006 = vmatprep.subr.bf16.mxu0 %v1206
    %2007 = vmatpush1.bf16.msra.mxu0 %v1205
    %2008 = vmatprep.subr.bf16.mxu0 %v1210
    %2009 = vmatpush1.bf16.msra.mxu0 %v1209
    %2010 = vmatprep.subr.bf16.mxu0 %v1214
    %2011 = vmatpush1.bf16.msra.mxu0 %v1213
    %2012 = vmatprep.subr.bf16.mxu0 0
    %2013 = vmatpush1.bf16.msra.mxu0 0
    %2014 = vmatprep.subr.bf16.mxu0 0
    %2015 = vmatpush1.bf16.msra.mxu0 0
    %2016 = vmatprep.subr.bf16.mxu0 0
    %2017 = vmatpush1.bf16.msra.mxu0 0
    %2018 = vmatprep.subr.bf16.mxu0 0
    %2019 = vmatpush1.bf16.msra.mxu0 0
    %2020 = vmatprep.subr.bf16.mxu0 0
    %2021 = vmatpush1.bf16.msra.mxu0 0
    %2022 = vmatprep.subr.bf16.mxu0 0
    %2023 = vmatpush1.bf16.msra.mxu0 0
    %2024 = vmatprep.subr.bf16.mxu0 0
    %2025 = vmatpush1.bf16.msra.mxu0 0
    %2026 = vmatprep.subr.bf16.mxu0 0
    %2027 = vmatpush1.bf16.msra.mxu0 0
    %2028 = vmatprep.mubr.bf16.mxu0 0
    %2029 = vmatmul.mubr.bf16.gmra.mrb[0].mxu0 %v1954
    %v2030 = vpop.f32.mrb[0].mxu0
    %v2031 = vadd.f32 0.0, %v2030
    %v2032 = vpop.f32.mrb[0].mxu0
    %v2033 = vadd.f32 0.0, %v2032
    %v2034 = vpop.f32.mrb[0].mxu0
    %v2035 = vpop.f32.mrb[0].mxu0
    %2036 = vdwg.mxu0
    %v2037 = vadd.f32 %v1950, %v1990
    %v2038 = vadd.f32 %v1951, %v1992
    %v2039 = vadd.f32 %v1952, %v2031
    %v2040 = vadd.f32 %v1953, %v2033
    %v2041 = vxor.u32 %v2037, 2147483648
    %v2042 = vxor.u32 %v2038, 2147483648
    %v2043 = vxor.u32 %v2039, 2147483648
    %v2044 = vmul.f32 %v2041, 1.442695
    %v2045 = vpow.pop %v2044
    %v2046 = vmul.f32 %v2042, 1.442695
    %v2047 = vpow.pop %v2046
    %v2048 = vmul.f32 %v2043, 1.442695
    %v2049 = vpow.pop %v2048
    %v2050 = vadd.f32 %v2045, 1.0
    %v2051 = vadd.f32 %v2047, 1.0
    %v2052 = vadd.f32 %v2049, 1.0
    %v2053 = vrcp.pop %v2050
    %v2054 = vmul.f32 1.0, %v2053
    %v2055 = vrcp.pop %v2051
    %v2056 = vmul.f32 1.0, %v2055
    %v2057 = vrcp.pop %v2052
    %v2058 = vmul.f32 1.0, %v2057
    %v2059 = vtanh.pop %v2040
    %v2060 = vmul.f32 %v2056, %v1826
    %v2061 = vmul.f32 %v2054, %v2059
    %v2062 = vadd.f32 %v2060, %v2061
    %v2063 = vtanh.pop %v2062
    %v2064 = vmul.f32 %v2058, %v2063
    %v2065 = vld [vmem:[%s1949] sm:$0xff]
    %v2066 = vld [vmem:[%s1949 + $0x8] sm:$0xff]
    %v2067 = vld [vmem:[%s1949 + $0x10] sm:$0xff]
    %v2068 = vld [vmem:[%s1949 + $0x18] sm:$0xff]
    %v2069 = vpack.c.bf16 %v1946, %v1946
    %2070 = vmatprep.subr.bf16.mxu0 %v907
    %2071 = vmatpush1.bf16.msra.mxu0 %v906
    %2072 = vmatprep.subr.bf16.mxu0 %v911
    %2073 = vmatpush1.bf16.msra.mxu0 %v910
    %2074 = vmatprep.subr.bf16.mxu0 %v915
    %2075 = vmatpush1.bf16.msra.mxu0 %v914
    %2076 = vmatprep.subr.bf16.mxu0 %v919
    %2077 = vmatpush1.bf16.msra.mxu0 %v918
    %2078 = vmatprep.subr.bf16.mxu0 %v923
    %2079 = vmatpush1.bf16.msra.mxu0 %v922
    %2080 = vmatprep.subr.bf16.mxu0 %v927
    %2081 = vmatpush1.bf16.msra.mxu0 %v926
    %2082 = vmatprep.subr.bf16.mxu0 %v931
    %2083 = vmatpush1.bf16.msra.mxu0 %v930
    %2084 = vmatprep.subr.bf16.mxu0 %v935
    %2085 = vmatpush1.bf16.msra.mxu0 %v934
    %2086 = vmatprep.subr.bf16.mxu0 0
    %2087 = vmatpush1.bf16.msra.mxu0 0
    %2088 = vmatprep.subr.bf16.mxu0 0
    %2089 = vmatpush1.bf16.msra.mxu0 0
    %2090 = vmatprep.subr.bf16.mxu0 0
    %2091 = vmatpush1.bf16.msra.mxu0 0
    %2092 = vmatprep.subr.bf16.mxu0 0
    %2093 = vmatpush1.bf16.msra.mxu0 0
    %2094 = vmatprep.subr.bf16.mxu0 0
    %2095 = vmatpush1.bf16.msra.mxu0 0
    %2096 = vmatprep.subr.bf16.mxu0 0
    %2097 = vmatpush1.bf16.msra.mxu0 0
    %2098 = vmatprep.subr.bf16.mxu0 0
    %2099 = vmatpush1.bf16.msra.mxu0 0
    %2100 = vmatprep.subr.bf16.mxu0 0
    %2101 = vmatpush1.bf16.msra.mxu0 0
    %2102 = vmatprep.mubr.bf16.mxu0 0
    %2103 = vmatmul.mubr.bf16.gmra.mrb[0].mxu0 %v2069
    %v2104 = vpop.f32.mrb[0].mxu0
    %v2105 = vadd.f32 0.0, %v2104
    %v2106 = vpop.f32.mrb[0].mxu0
    %v2107 = vadd.f32 0.0, %v2106
    %v2108 = vpop.f32.mrb[0].mxu0
    %v2109 = vpop.f32.mrb[0].mxu0
    %2110 = vdwg.mxu0
    %2111 = vmatprep.subr.bf16.mxu0 %v909
    %2112 = vmatpush1.bf16.msra.mxu0 %v908
    %2113 = vmatprep.subr.bf16.mxu0 %v913
    %2114 = vmatpush1.bf16.msra.mxu0 %v912
    %2115 = vmatprep.subr.bf16.mxu0 %v917
    %2116 = vmatpush1.bf16.msra.mxu0 %v916
    %2117 = vmatprep.subr.bf16.mxu0 %v921
    %2118 = vmatpush1.bf16.msra.mxu0 %v920
    %2119 = vmatprep.subr.bf16.mxu0 %v925
    %2120 = vmatpush1.bf16.msra.mxu0 %v924
    %2121 = vmatprep.subr.bf16.mxu0 %v929
    %2122 = vmatpush1.bf16.msra.mxu0 %v928
    %2123 = vmatprep.subr.bf16.mxu0 %v933
    %2124 = vmatpush1.bf16.msra.mxu0 %v932
    %2125 = vmatprep.subr.bf16.mxu0 %v937
    %2126 = vmatpush1.bf16.msra.mxu0 %v936
    %2127 = vmatprep.subr.bf16.mxu0 0
    %2128 = vmatpush1.bf16.msra.mxu0 0
    %2129 = vmatprep.subr.bf16.mxu0 0
    %2130 = vmatpush1.bf16.msra.mxu0 0
    %2131 = vmatprep.subr.bf16.mxu0 0
    %2132 = vmatpush1.bf16.msra.mxu0 0
    %2133 = vmatprep.subr.bf16.mxu0 0
    %2134 = vmatpush1.bf16.msra.mxu0 0
    %2135 = vmatprep.subr.bf16.mxu0 0
    %2136 = vmatpush1.bf16.msra.mxu0 0
    %2137 = vmatprep.subr.bf16.mxu0 0
    %2138 = vmatpush1.bf16.msra.mxu0 0
    %2139 = vmatprep.subr.bf16.mxu0 0
    %2140 = vmatpush1.bf16.msra.mxu0 0
    %2141 = vmatprep.subr.bf16.mxu0 0
    %2142 = vmatpush1.bf16.msra.mxu0 0
    %2143 = vmatprep.mubr.bf16.mxu0 0
    %2144 = vmatmul.mubr.bf16.gmra.mrb[0].mxu0 %v2069
    %v2145 = vpop.f32.mrb[0].mxu0
    %v2146 = vadd.f32 0.0, %v2145
    %v2147 = vpop.f32.mrb[0].mxu0
    %v2148 = vadd.f32 0.0, %v2147
    %v2149 = vpop.f32.mrb[0].mxu0
    %v2150 = vpop.f32.mrb[0].mxu0
    %2151 = vdwg.mxu0
    %v2152 = vadd.f32 %v2065, %v2105
    %v2153 = vadd.f32 %v2066, %v2107
    %v2154 = vadd.f32 %v2067, %v2146
    %v2155 = vadd.f32 %v2068, %v2148
    %v2156 = vxor.u32 %v2152, 2147483648
    %v2157 = vxor.u32 %v2153, 2147483648
    %v2158 = vxor.u32 %v2154, 2147483648
    %v2159 = vmul.f32 %v2156, 1.442695
    %v2160 = vpow.pop %v2159
    %v2161 = vmul.f32 %v2157, 1.442695
    %v2162 = vpow.pop %v2161
    %v2163 = vmul.f32 %v2158, 1.442695
    %v2164 = vpow.pop %v2163
    %v2165 = vadd.f32 %v2160, 1.0
    %v2166 = vadd.f32 %v2162, 1.0
    %v2167 = vadd.f32 %v2164, 1.0
    %v2168 = vrcp.pop %v2165
    %v2169 = vmul.f32 1.0, %v2168
    %v2170 = vrcp.pop %v2166
    %v2171 = vmul.f32 1.0, %v2170
    %v2172 = vrcp.pop %v2167
    %v2173 = vmul.f32 1.0, %v2172
    %v2174 = vtanh.pop %v2155
    %v2175 = vmul.f32 %v2171, %v1944
    %v2176 = vmul.f32 %v2169, %v2174
    %v2177 = vadd.f32 %v2175, %v2176
    %v2178 = vtanh.pop %v2177
    %v2179 = vmul.f32 %v2173, %v2178
    %v2180 = vld [vmem:[%s1831 + $0x20] sm:$0xff]
    %v2181 = vld [vmem:[%s1831 + $0x28] sm:$0xff]
    %v2182 = vld [vmem:[%s1831 + $0x30] sm:$0xff]
    %v2183 = vld [vmem:[%s1831 + $0x38] sm:$0xff]
    %v2184 = vpack.c.bf16 %v2064, %v2064
    %2185 = vmatprep.subr.bf16.mxu0 %v1184
    %2186 = vmatpush1.bf16.msra.mxu0 %v1183
    %2187 = vmatprep.subr.bf16.mxu0 %v1188
    %2188 = vmatpush1.bf16.msra.mxu0 %v1187
    %2189 = vmatprep.subr.bf16.mxu0 %v1192
    %2190 = vmatpush1.bf16.msra.mxu0 %v1191
    %2191 = vmatprep.subr.bf16.mxu0 %v1196
    %2192 = vmatpush1.bf16.msra.mxu0 %v1195
    %2193 = vmatprep.subr.bf16.mxu0 %v1200
    %2194 = vmatpush1.bf16.msra.mxu0 %v1199
    %2195 = vmatprep.subr.bf16.mxu0 %v1204
    %2196 = vmatpush1.bf16.msra.mxu0 %v1203
    %2197 = vmatprep.subr.bf16.mxu0 %v1208
    %2198 = vmatpush1.bf16.msra.mxu0 %v1207
    %2199 = vmatprep.subr.bf16.mxu0 %v1212
    %2200 = vmatpush1.bf16.msra.mxu0 %v1211
    %2201 = vmatprep.subr.bf16.mxu0 0
    %2202 = vmatpush1.bf16.msra.mxu0 0
    %2203 = vmatprep.subr.bf16.mxu0 0
    %2204 = vmatpush1.bf16.msra.mxu0 0
    %2205 = vmatprep.subr.bf16.mxu0 0
    %2206 = vmatpush1.bf16.msra.mxu0 0
    %2207 = vmatprep.subr.bf16.mxu0 0
    %2208 = vmatpush1.bf16.msra.mxu0 0
    %2209 = vmatprep.subr.bf16.mxu0 0
    %2210 = vmatpush1.bf16.msra.mxu0 0
    %2211 = vmatprep.subr.bf16.mxu0 0
    %2212 = vmatpush1.bf16.msra.mxu0 0
    %2213 = vmatprep.subr.bf16.mxu0 0
    %2214 = vmatpush1.bf16.msra.mxu0 0
    %2215 = vmatprep.subr.bf16.mxu0 0
    %2216 = vmatpush1.bf16.msra.mxu0 0
    %2217 = vmatprep.mubr.bf16.mxu0 0
    %2218 = vmatmul.mubr.bf16.gmra.mrb[0].mxu0 %v2184
    %v2219 = vpop.f32.mrb[0].mxu0
    %v2220 = vadd.f32 0.0, %v2219
    %v2221 = vpop.f32.mrb[0].mxu0
    %v2222 = vadd.f32 0.0, %v2221
    %v2223 = vpop.f32.mrb[0].mxu0
    %v2224 = vpop.f32.mrb[0].mxu0
    %2225 = vdwg.mxu0
    %2226 = vmatprep.subr.bf16.mxu0 %v1186
    %2227 = vmatpush1.bf16.msra.mxu0 %v1185
    %2228 = vmatprep.subr.bf16.mxu0 %v1190
    %2229 = vmatpush1.bf16.msra.mxu0 %v1189
    %2230 = vmatprep.subr.bf16.mxu0 %v1194
    %2231 = vmatpush1.bf16.msra.mxu0 %v1193
    %2232 = vmatprep.subr.bf16.mxu0 %v1198
    %2233 = vmatpush1.bf16.msra.mxu0 %v1197
    %2234 = vmatprep.subr.bf16.mxu0 %v1202
    %2235 = vmatpush1.bf16.msra.mxu0 %v1201
    %2236 = vmatprep.subr.bf16.mxu0 %v1206
    %2237 = vmatpush1.bf16.msra.mxu0 %v1205
    %2238 = vmatprep.subr.bf16.mxu0 %v1210
    %2239 = vmatpush1.bf16.msra.mxu0 %v1209
    %2240 = vmatprep.subr.bf16.mxu0 %v1214
    %2241 = vmatpush1.bf16.msra.mxu0 %v1213
    %2242 = vmatprep.subr.bf16.mxu0 0
    %2243 = vmatpush1.bf16.msra.mxu0 0
    %2244 = vmatprep.subr.bf16.mxu0 0
    %2245 = vmatpush1.bf16.msra.mxu0 0
    %2246 = vmatprep.subr.bf16.mxu0 0
    %2247 = vmatpush1.bf16.msra.mxu0 0
    %2248 = vmatprep.subr.bf16.mxu0 0
    %2249 = vmatpush1.bf16.msra.mxu0 0
    %2250 = vmatprep.subr.bf16.mxu0 0
    %2251 = vmatpush1.bf16.msra.mxu0 0
    %2252 = vmatprep.subr.bf16.mxu0 0
    %2253 = vmatpush1.bf16.msra.mxu0 0
    %2254 = vmatprep.subr.bf16.mxu0 0
    %2255 = vmatpush1.bf16.msra.mxu0 0
    %2256 = vmatprep.subr.bf16.mxu0 0
    %2257 = vmatpush1.bf16.msra.mxu0 0
    %2258 = vmatprep.mubr.bf16.mxu0 0
    %2259 = vmatmul.mubr.bf16.gmra.mrb[0].mxu0 %v2184
    %v2260 = vpop.f32.mrb[0].mxu0
    %v2261 = vadd.f32 0.0, %v2260
    %v2262 = vpop.f32.mrb[0].mxu0
    %v2263 = vadd.f32 0.0, %v2262
    %v2264 = vpop.f32.mrb[0].mxu0
    %v2265 = vpop.f32.mrb[0].mxu0
    %2266 = vdwg.mxu0
    %v2267 = vadd.f32 %v2180, %v2220
    %v2268 = vadd.f32 %v2181, %v2222
    %v2269 = vadd.f32 %v2182, %v2261
    %v2270 = vadd.f32 %v2183, %v2263
    %v2271 = vxor.u32 %v2267, 2147483648
    %v2272 = vxor.u32 %v2268, 2147483648
    %v2273 = vxor.u32 %v2269, 2147483648
    %v2274 = vmul.f32 %v2271, 1.442695
    %v2275 = vpow.pop %v2274
    %v2276 = vmul.f32 %v2272, 1.442695
    %v2277 = vpow.pop %v2276
    %v2278 = vmul.f32 %v2273, 1.442695
    %v2279 = vpow.pop %v2278
    %v2280 = vadd.f32 %v2275, 1.0
    %v2281 = vadd.f32 %v2277, 1.0
    %v2282 = vadd.f32 %v2279, 1.0
    %v2283 = vrcp.pop %v2280
    %v2284 = vmul.f32 1.0, %v2283
    %v2285 = vrcp.pop %v2281
    %v2286 = vmul.f32 1.0, %v2285
    %v2287 = vrcp.pop %v2282
    %v2288 = vmul.f32 1.0, %v2287
    %v2289 = vtanh.pop %v2270
    %v2290 = vmul.f32 %v2286, %v2062
    %v2291 = vmul.f32 %v2284, %v2289
    %v2292 = vadd.f32 %v2290, %v2291
    %v2293 = vtanh.pop %v2292
    %v2294 = vmul.f32 %v2288, %v2293
    %v2295 = vld [vmem:[%s1713] sm:$0xff]
    %v2296 = vld [vmem:[%s1713 + $0x8] sm:$0xff]
    %v2297 = vld [vmem:[%s1713 + $0x10] sm:$0xff]
    %v2298 = vld [vmem:[%s1713 + $0x18] sm:$0xff]
    %v2299 = vpack.c.bf16 %v2179, %v2179
    %2300 = vmatprep.subr.bf16.mxu0 %v907
    %2301 = vmatpush1.bf16.msra.mxu0 %v906
    %2302 = vmatprep.subr.bf16.mxu0 %v911
    %2303 = vmatpush1.bf16.msra.mxu0 %v910
    %2304 = vmatprep.subr.bf16.mxu0 %v915
    %2305 = vmatpush1.bf16.msra.mxu0 %v914
    %2306 = vmatprep.subr.bf16.mxu0 %v919
    %2307 = vmatpush1.bf16.msra.mxu0 %v918
    %2308 = vmatprep.subr.bf16.mxu0 %v923
    %2309 = vmatpush1.bf16.msra.mxu0 %v922
    %2310 = vmatprep.subr.bf16.mxu0 %v927
    %2311 = vmatpush1.bf16.msra.mxu0 %v926
    %2312 = vmatprep.subr.bf16.mxu0 %v931
    %2313 = vmatpush1.bf16.msra.mxu0 %v930
    %2314 = vmatprep.subr.bf16.mxu0 %v935
    %2315 = vmatpush1.bf16.msra.mxu0 %v934
    %2316 = vmatprep.subr.bf16.mxu0 0
    %2317 = vmatpush1.bf16.msra.mxu0 0
    %2318 = vmatprep.subr.bf16.mxu0 0
    %2319 = vmatpush1.bf16.msra.mxu0 0
    %2320 = vmatprep.subr.bf16.mxu0 0
    %2321 = vmatpush1.bf16.msra.mxu0 0
    %2322 = vmatprep.subr.bf16.mxu0 0
    %2323 = vmatpush1.bf16.msra.mxu0 0
    %2324 = vmatprep.subr.bf16.mxu0 0
    %2325 = vmatpush1.bf16.msra.mxu0 0
    %2326 = vmatprep.subr.bf16.mxu0 0
    %2327 = vmatpush1.bf16.msra.mxu0 0
    %2328 = vmatprep.subr.bf16.mxu0 0
    %2329 = vmatpush1.bf16.msra.mxu0 0
    %2330 = vmatprep.subr.bf16.mxu0 0
    %2331 = vmatpush1.bf16.msra.mxu0 0
    %2332 = vmatprep.mubr.bf16.mxu0 0
    %2333 = vmatmul.mubr.bf16.gmra.mrb[0].mxu0 %v2299
    %v2334 = vpop.f32.mrb[0].mxu0
    %v2335 = vadd.f32 0.0, %v2334
    %v2336 = vpop.f32.mrb[0].mxu0
    %v2337 = vadd.f32 0.0, %v2336
    %v2338 = vpop.f32.mrb[0].mxu0
    %v2339 = vpop.f32.mrb[0].mxu0
    %2340 = vdwg.mxu0
    %2341 = vmatprep.subr.bf16.mxu0 %v909
    %2342 = vmatpush1.bf16.msra.mxu0 %v908
    %2343 = vmatprep.subr.bf16.mxu0 %v913
    %2344 = vmatpush1.bf16.msra.mxu0 %v912
    %2345 = vmatprep.subr.bf16.mxu0 %v917
    %2346 = vmatpush1.bf16.msra.mxu0 %v916
    %2347 = vmatprep.subr.bf16.mxu0 %v921
    %2348 = vmatpush1.bf16.msra.mxu0 %v920
    %2349 = vmatprep.subr.bf16.mxu0 %v925
    %2350 = vmatpush1.bf16.msra.mxu0 %v924
    %2351 = vmatprep.subr.bf16.mxu0 %v929
    %2352 = vmatpush1.bf16.msra.mxu0 %v928
    %2353 = vmatprep.subr.bf16.mxu0 %v933
    %2354 = vmatpush1.bf16.msra.mxu0 %v932
    %2355 = vmatprep.subr.bf16.mxu0 %v937
    %2356 = vmatpush1.bf16.msra.mxu0 %v936
    %2357 = vmatprep.subr.bf16.mxu0 0
    %2358 = vmatpush1.bf16.msra.mxu0 0
    %2359 = vmatprep.subr.bf16.mxu0 0
    %2360 = vmatpush1.bf16.msra.mxu0 0
    %2361 = vmatprep.subr.bf16.mxu0 0
    %2362 = vmatpush1.bf16.msra.mxu0 0
    %2363 = vmatprep.subr.bf16.mxu0 0
    %2364 = vmatpush1.bf16.msra.mxu0 0
    %2365 = vmatprep.subr.bf16.mxu0 0
    %2366 = vmatpush1.bf16.msra.mxu0 0
    %2367 = vmatprep.subr.bf16.mxu0 0
    %2368 = vmatpush1.bf16.msra.mxu0 0
    %2369 = vmatprep.subr.bf16.mxu0 0
    %2370 = vmatpush1.bf16.msra.mxu0 0
    %2371 = vmatprep.subr.bf16.mxu0 0
    %2372 = vmatpush1.bf16.msra.mxu0 0
    %2373 = vmatprep.mubr.bf16.mxu0 0
    %2374 = vmatmul.mubr.bf16.gmra.mrb[0].mxu0 %v2299
    %v2375 = vpop.f32.mrb[0].mxu0
    %v2376 = vadd.f32 0.0, %v2375
    %v2377 = vpop.f32.mrb[0].mxu0
    %v2378 = vadd.f32 0.0, %v2377
    %v2379 = vpop.f32.mrb[0].mxu0
    %v2380 = vpop.f32.mrb[0].mxu0
    %2381 = vdwg.mxu0
    %v2382 = vadd.f32 %v2295, %v2335
    %v2383 = vadd.f32 %v2296, %v2337
    %v2384 = vadd.f32 %v2297, %v2376
    %v2385 = vadd.f32 %v2298, %v2378
    %v2386 = vxor.u32 %v2382, 2147483648
    %v2387 = vxor.u32 %v2383, 2147483648
    %v2388 = vxor.u32 %v2384, 2147483648
    %v2389 = vmul.f32 %v2386, 1.442695
    %v2390 = vpow.pop %v2389
    %v2391 = vmul.f32 %v2387, 1.442695
    %v2392 = vpow.pop %v2391
    %v2393 = vmul.f32 %v2388, 1.442695
    %v2394 = vpow.pop %v2393
    %v2395 = vadd.f32 %v2390, 1.0
    %v2396 = vadd.f32 %v2392, 1.0
    %v2397 = vadd.f32 %v2394, 1.0
    %v2398 = vrcp.pop %v2395
    %v2399 = vmul.f32 1.0, %v2398
    %v2400 = vrcp.pop %v2396
    %v2401 = vmul.f32 1.0, %v2400
    %v2402 = vrcp.pop %v2397
    %v2403 = vmul.f32 1.0, %v2402
    %v2404 = vtanh.pop %v2385
    %v2405 = vmul.f32 %v2401, %v2177
    %v2406 = vmul.f32 %v2399, %v2404
    %v2407 = vadd.f32 %v2405, %v2406
    %v2408 = vtanh.pop %v2407
    %v2409 = vmul.f32 %v2403, %v2408
    %v2410 = vld [vmem:[%s1595 + $0x20] sm:$0xff]
    %v2411 = vld [vmem:[%s1595 + $0x28] sm:$0xff]
    %v2412 = vld [vmem:[%s1595 + $0x30] sm:$0xff]
    %v2413 = vld [vmem:[%s1595 + $0x38] sm:$0xff]
    %v2414 = vpack.c.bf16 %v2294, %v2294
    %2415 = vmatprep.subr.bf16.mxu0 %v1184
    %2416 = vmatpush1.bf16.msra.mxu0 %v1183
    %2417 = vmatprep.subr.bf16.mxu0 %v1188
    %2418 = vmatpush1.bf16.msra.mxu0 %v1187
    %2419 = vmatprep.subr.bf16.mxu0 %v1192
    %2420 = vmatpush1.bf16.msra.mxu0 %v1191
    %2421 = vmatprep.subr.bf16.mxu0 %v1196
    %2422 = vmatpush1.bf16.msra.mxu0 %v1195
    %2423 = vmatprep.subr.bf16.mxu0 %v1200
    %2424 = vmatpush1.bf16.msra.mxu0 %v1199
    %2425 = vmatprep.subr.bf16.mxu0 %v1204
    %2426 = vmatpush1.bf16.msra.mxu0 %v1203
    %2427 = vmatprep.subr.bf16.mxu0 %v1208
    %2428 = vmatpush1.bf16.msra.mxu0 %v1207
    %2429 = vmatprep.subr.bf16.mxu0 %v1212
    %2430 = vmatpush1.bf16.msra.mxu0 %v1211
    %2431 = vmatprep.subr.bf16.mxu0 0
    %2432 = vmatpush1.bf16.msra.mxu0 0
    %2433 = vmatprep.subr.bf16.mxu0 0
    %2434 = vmatpush1.bf16.msra.mxu0 0
    %2435 = vmatprep.subr.bf16.mxu0 0
    %2436 = vmatpush1.bf16.msra.mxu0 0
    %2437 = vmatprep.subr.bf16.mxu0 0
    %2438 = vmatpush1.bf16.msra.mxu0 0
    %2439 = vmatprep.subr.bf16.mxu0 0
    %2440 = vmatpush1.bf16.msra.mxu0 0
    %2441 = vmatprep.subr.bf16.mxu0 0
    %2442 = vmatpush1.bf16.msra.mxu0 0
    %2443 = vmatprep.subr.bf16.mxu0 0
    %2444 = vmatpush1.bf16.msra.mxu0 0
    %2445 = vmatprep.subr.bf16.mxu0 0
    %2446 = vmatpush1.bf16.msra.mxu0 0
    %2447 = vmatprep.mubr.bf16.mxu0 0
    %2448 = vmatmul.mubr.bf16.gmra.mrb[0].mxu0 %v2414
    %v2449 = vpop.f32.mrb[0].mxu0
    %v2450 = vadd.f32 0.0, %v2449
    %v2451 = vpop.f32.mrb[0].mxu0
    %v2452 = vadd.f32 0.0, %v2451
    %v2453 = vpop.f32.mrb[0].mxu0
    %v2454 = vpop.f32.mrb[0].mxu0
    %2455 = vdwg.mxu0
    %2456 = vmatprep.subr.bf16.mxu0 %v1186
    %2457 = vmatpush1.bf16.msra.mxu0 %v1185
    %2458 = vmatprep.subr.bf16.mxu0 %v1190
    %2459 = vmatpush1.bf16.msra.mxu0 %v1189
    %2460 = vmatprep.subr.bf16.mxu0 %v1194
    %2461 = vmatpush1.bf16.msra.mxu0 %v1193
    %2462 = vmatprep.subr.bf16.mxu0 %v1198
    %2463 = vmatpush1.bf16.msra.mxu0 %v1197
    %2464 = vmatprep.subr.bf16.mxu0 %v1202
    %2465 = vmatpush1.bf16.msra.mxu0 %v1201
    %2466 = vmatprep.subr.bf16.mxu0 %v1206
    %2467 = vmatpush1.bf16.msra.mxu0 %v1205
    %2468 = vmatprep.subr.bf16.mxu0 %v1210
    %2469 = vmatpush1.bf16.msra.mxu0 %v1209
    %2470 = vmatprep.subr.bf16.mxu0 %v1214
    %2471 = vmatpush1.bf16.msra.mxu0 %v1213
    %2472 = vmatprep.subr.bf16.mxu0 0
    %2473 = vmatpush1.bf16.msra.mxu0 0
    %2474 = vmatprep.subr.bf16.mxu0 0
    %2475 = vmatpush1.bf16.msra.mxu0 0
    %2476 = vmatprep.subr.bf16.mxu0 0
    %2477 = vmatpush1.bf16.msra.mxu0 0
    %2478 = vmatprep.subr.bf16.mxu0 0
    %2479 = vmatpush1.bf16.msra.mxu0 0
    %2480 = vmatprep.subr.bf16.mxu0 0
    %2481 = vmatpush1.bf16.msra.mxu0 0
    %2482 = vmatprep.subr.bf16.mxu0 0
    %2483 = vmatpush1.bf16.msra.mxu0 0
    %2484 = vmatprep.subr.bf16.mxu0 0
    %2485 = vmatpush1.bf16.msra.mxu0 0
    %2486 = vmatprep.subr.bf16.mxu0 0
    %2487 = vmatpush1.bf16.msra.mxu0 0
    %2488 = vmatprep.mubr.bf16.mxu0 0
    %2489 = vmatmul.mubr.bf16.gmra.mrb[0].mxu0 %v2414
    %v2490 = vpop.f32.mrb[0].mxu0
    %v2491 = vadd.f32 0.0, %v2490
    %v2492 = vpop.f32.mrb[0].mxu0
    %v2493 = vadd.f32 0.0, %v2492
    %v2494 = vpop.f32.mrb[0].mxu0
    %v2495 = vpop.f32.mrb[0].mxu0
    %2496 = vdwg.mxu0
    %v2497 = vadd.f32 %v2410, %v2450
    %v2498 = vadd.f32 %v2411, %v2452
    %v2499 = vadd.f32 %v2412, %v2491
    %v2500 = vadd.f32 %v2413, %v2493
    %v2501 = vxor.u32 %v2497, 2147483648
    %v2502 = vxor.u32 %v2498, 2147483648
    %v2503 = vxor.u32 %v2499, 2147483648
    %v2504 = vmul.f32 %v2501, 1.442695
    %v2505 = vpow.pop %v2504
    %v2506 = vmul.f32 %v2502, 1.442695
    %v2507 = vpow.pop %v2506
    %v2508 = vmul.f32 %v2503, 1.442695
    %v2509 = vpow.pop %v2508
    %v2510 = vadd.f32 %v2505, 1.0
    %v2511 = vadd.f32 %v2507, 1.0
    %v2512 = vadd.f32 %v2509, 1.0
    %v2513 = vrcp.pop %v2510
    %v2514 = vmul.f32 1.0, %v2513
    %v2515 = vrcp.pop %v2511
    %v2516 = vmul.f32 1.0, %v2515
    %v2517 = vrcp.pop %v2512
    %v2518 = vmul.f32 1.0, %v2517
    %v2519 = vtanh.pop %v2500
    %v2520 = vmul.f32 %v2516, %v2292
    %v2521 = vmul.f32 %v2514, %v2519
    %v2522 = vadd.f32 %v2520, %v2521
    %v2523 = vtanh.pop %v2522
    %v2524 = vmul.f32 %v2518, %v2523
    %v2525 = vld [vmem:[%s1477] sm:$0xff]
    %v2526 = vld [vmem:[%s1477 + $0x8] sm:$0xff]
    %v2527 = vld [vmem:[%s1477 + $0x10] sm:$0xff]
    %v2528 = vld [vmem:[%s1477 + $0x18] sm:$0xff]
    %v2529 = vpack.c.bf16 %v2409, %v2409
    %2530 = vmatprep.subr.bf16.mxu0 %v907
    %2531 = vmatpush1.bf16.msra.mxu0 %v906
    %2532 = vmatprep.subr.bf16.mxu0 %v911
    %2533 = vmatpush1.bf16.msra.mxu0 %v910
    %2534 = vmatprep.subr.bf16.mxu0 %v915
    %2535 = vmatpush1.bf16.msra.mxu0 %v914
    %2536 = vmatprep.subr.bf16.mxu0 %v919
    %2537 = vmatpush1.bf16.msra.mxu0 %v918
    %2538 = vmatprep.subr.bf16.mxu0 %v923
    %2539 = vmatpush1.bf16.msra.mxu0 %v922
    %2540 = vmatprep.subr.bf16.mxu0 %v927
    %2541 = vmatpush1.bf16.msra.mxu0 %v926
    %2542 = vmatprep.subr.bf16.mxu0 %v931
    %2543 = vmatpush1.bf16.msra.mxu0 %v930
    %2544 = vmatprep.subr.bf16.mxu0 %v935
    %2545 = vmatpush1.bf16.msra.mxu0 %v934
    %2546 = vmatprep.subr.bf16.mxu0 0
    %2547 = vmatpush1.bf16.msra.mxu0 0
    %2548 = vmatprep.subr.bf16.mxu0 0
    %2549 = vmatpush1.bf16.msra.mxu0 0
    %2550 = vmatprep.subr.bf16.mxu0 0
    %2551 = vmatpush1.bf16.msra.mxu0 0
    %2552 = vmatprep.subr.bf16.mxu0 0
    %2553 = vmatpush1.bf16.msra.mxu0 0
    %2554 = vmatprep.subr.bf16.mxu0 0
    %2555 = vmatpush1.bf16.msra.mxu0 0
    %2556 = vmatprep.subr.bf16.mxu0 0
    %2557 = vmatpush1.bf16.msra.mxu0 0
    %2558 = vmatprep.subr.bf16.mxu0 0
    %2559 = vmatpush1.bf16.msra.mxu0 0
    %2560 = vmatprep.subr.bf16.mxu0 0
    %2561 = vmatpush1.bf16.msra.mxu0 0
    %2562 = vmatprep.mubr.bf16.mxu0 0
    %2563 = vmatmul.mubr.bf16.gmra.mrb[0].mxu0 %v2529
    %v2564 = vpop.f32.mrb[0].mxu0
    %v2565 = vadd.f32 0.0, %v2564
    %v2566 = vpop.f32.mrb[0].mxu0
    %v2567 = vadd.f32 0.0, %v2566
    %v2568 = vpop.f32.mrb[0].mxu0
    %v2569 = vpop.f32.mrb[0].mxu0
    %2570 = vdwg.mxu0
    %2571 = vmatprep.subr.bf16.mxu0 %v909
    %2572 = vmatpush1.bf16.msra.mxu0 %v908
    %2573 = vmatprep.subr.bf16.mxu0 %v913
    %2574 = vmatpush1.bf16.msra.mxu0 %v912
    %2575 = vmatprep.subr.bf16.mxu0 %v917
    %2576 = vmatpush1.bf16.msra.mxu0 %v916
    %2577 = vmatprep.subr.bf16.mxu0 %v921
    %2578 = vmatpush1.bf16.msra.mxu0 %v920
    %2579 = vmatprep.subr.bf16.mxu0 %v925
    %2580 = vmatpush1.bf16.msra.mxu0 %v924
    %2581 = vmatprep.subr.bf16.mxu0 %v929
    %2582 = vmatpush1.bf16.msra.mxu0 %v928
    %2583 = vmatprep.subr.bf16.mxu0 %v933
    %2584 = vmatpush1.bf16.msra.mxu0 %v932
    %2585 = vmatprep.subr.bf16.mxu0 %v937
    %2586 = vmatpush1.bf16.msra.mxu0 %v936
    %2587 = vmatprep.subr.bf16.mxu0 0
    %2588 = vmatpush1.bf16.msra.mxu0 0
    %2589 = vmatprep.subr.bf16.mxu0 0
    %2590 = vmatpush1.bf16.msra.mxu0 0
    %2591 = vmatprep.subr.bf16.mxu0 0
    %2592 = vmatpush1.bf16.msra.mxu0 0
    %2593 = vmatprep.subr.bf16.mxu0 0
    %2594 = vmatpush1.bf16.msra.mxu0 0
    %2595 = vmatprep.subr.bf16.mxu0 0
    %2596 = vmatpush1.bf16.msra.mxu0 0
    %2597 = vmatprep.subr.bf16.mxu0 0
    %2598 = vmatpush1.bf16.msra.mxu0 0
    %2599 = vmatprep.subr.bf16.mxu0 0
    %2600 = vmatpush1.bf16.msra.mxu0 0
    %2601 = vmatprep.subr.bf16.mxu0 0
    %2602 = vmatpush1.bf16.msra.mxu0 0
    %2603 = vmatprep.mubr.bf16.mxu0 0
    %2604 = vmatmul.mubr.bf16.gmra.mrb[0].mxu0 %v2529
    %v2605 = vpop.f32.mrb[0].mxu0
    %v2606 = vadd.f32 0.0, %v2605
    %v2607 = vpop.f32.mrb[0].mxu0
    %v2608 = vadd.f32 0.0, %v2607
    %v2609 = vpop.f32.mrb[0].mxu0
    %v2610 = vpop.f32.mrb[0].mxu0
    %2611 = vdwg.mxu0
    %v2612 = vadd.f32 %v2525, %v2565
    %v2613 = vadd.f32 %v2526, %v2567
    %v2614 = vadd.f32 %v2527, %v2606
    %v2615 = vadd.f32 %v2528, %v2608
    %v2616 = vxor.u32 %v2612, 2147483648
    %v2617 = vxor.u32 %v2613, 2147483648
    %v2618 = vxor.u32 %v2614, 2147483648
    %v2619 = vmul.f32 %v2616, 1.442695
    %v2620 = vpow.pop %v2619
    %v2621 = vmul.f32 %v2617, 1.442695
    %v2622 = vpow.pop %v2621
    %v2623 = vmul.f32 %v2618, 1.442695
    %v2624 = vpow.pop %v2623
    %v2625 = vadd.f32 %v2620, 1.0
    %v2626 = vadd.f32 %v2622, 1.0
    %v2627 = vadd.f32 %v2624, 1.0
    %v2628 = vrcp.pop %v2625
    %v2629 = vmul.f32 1.0, %v2628
    %v2630 = vrcp.pop %v2626
    %v2631 = vmul.f32 1.0, %v2630
    %v2632 = vrcp.pop %v2627
    %v2633 = vmul.f32 1.0, %v2632
    %v2634 = vtanh.pop %v2615
    %v2635 = vmul.f32 %v2631, %v2407
    %v2636 = vmul.f32 %v2629, %v2634
    %v2637 = vadd.f32 %v2635, %v2636
    %v2638 = vtanh.pop %v2637
    %v2639 = vmul.f32 %v2633, %v2638
    %v2640 = vld [vmem:[%s1359 + $0x20] sm:$0xff]
    %v2641 = vld [vmem:[%s1359 + $0x28] sm:$0xff]
    %v2642 = vld [vmem:[%s1359 + $0x30] sm:$0xff]
    %v2643 = vld [vmem:[%s1359 + $0x38] sm:$0xff]
    %v2644 = vpack.c.bf16 %v2524, %v2524
    %2645 = vmatprep.subr.bf16.mxu0 %v1184
    %2646 = vmatpush1.bf16.msra.mxu0 %v1183
    %2647 = vmatprep.subr.bf16.mxu0 %v1188
    %2648 = vmatpush1.bf16.msra.mxu0 %v1187
    %2649 = vmatprep.subr.bf16.mxu0 %v1192
    %2650 = vmatpush1.bf16.msra.mxu0 %v1191
    %2651 = vmatprep.subr.bf16.mxu0 %v1196
    %2652 = vmatpush1.bf16.msra.mxu0 %v1195
    %2653 = vmatprep.subr.bf16.mxu0 %v1200
    %2654 = vmatpush1.bf16.msra.mxu0 %v1199
    %2655 = vmatprep.subr.bf16.mxu0 %v1204
    %2656 = vmatpush1.bf16.msra.mxu0 %v1203
    %2657 = vmatprep.subr.bf16.mxu0 %v1208
    %2658 = vmatpush1.bf16.msra.mxu0 %v1207
    %2659 = vmatprep.subr.bf16.mxu0 %v1212
    %2660 = vmatpush1.bf16.msra.mxu0 %v1211
    %2661 = vmatprep.subr.bf16.mxu0 0
    %2662 = vmatpush1.bf16.msra.mxu0 0
    %2663 = vmatprep.subr.bf16.mxu0 0
    %2664 = vmatpush1.bf16.msra.mxu0 0
    %2665 = vmatprep.subr.bf16.mxu0 0
    %2666 = vmatpush1.bf16.msra.mxu0 0
    %2667 = vmatprep.subr.bf16.mxu0 0
    %2668 = vmatpush1.bf16.msra.mxu0 0
    %2669 = vmatprep.subr.bf16.mxu0 0
    %2670 = vmatpush1.bf16.msra.mxu0 0
    %2671 = vmatprep.subr.bf16.mxu0 0
    %2672 = vmatpush1.bf16.msra.mxu0 0
    %2673 = vmatprep.subr.bf16.mxu0 0
    %2674 = vmatpush1.bf16.msra.mxu0 0
    %2675 = vmatprep.subr.bf16.mxu0 0
    %2676 = vmatpush1.bf16.msra.mxu0 0
    %2677 = vmatprep.mubr.bf16.mxu0 0
    %2678 = vmatmul.mubr.bf16.gmra.mrb[0].mxu0 %v2644
    %v2679 = vpop.f32.mrb[0].mxu0
    %v2680 = vadd.f32 0.0, %v2679
    %v2681 = vpop.f32.mrb[0].mxu0
    %v2682 = vadd.f32 0.0, %v2681
    %v2683 = vpop.f32.mrb[0].mxu0
    %v2684 = vpop.f32.mrb[0].mxu0
    %2685 = vdwg.mxu0
    %2686 = vmatprep.subr.bf16.mxu0 %v1186
    %2687 = vmatpush1.bf16.msra.mxu0 %v1185
    %2688 = vmatprep.subr.bf16.mxu0 %v1190
    %2689 = vmatpush1.bf16.msra.mxu0 %v1189
    %2690 = vmatprep.subr.bf16.mxu0 %v1194
    %2691 = vmatpush1.bf16.msra.mxu0 %v1193
    %2692 = vmatprep.subr.bf16.mxu0 %v1198
    %2693 = vmatpush1.bf16.msra.mxu0 %v1197
    %2694 = vmatprep.subr.bf16.mxu0 %v1202
    %2695 = vmatpush1.bf16.msra.mxu0 %v1201
    %2696 = vmatprep.subr.bf16.mxu0 %v1206
    %2697 = vmatpush1.bf16.msra.mxu0 %v1205
    %2698 = vmatprep.subr.bf16.mxu0 %v1210
    %2699 = vmatpush1.bf16.msra.mxu0 %v1209
    %2700 = vmatprep.subr.bf16.mxu0 %v1214
    %2701 = vmatpush1.bf16.msra.mxu0 %v1213
    %2702 = vmatprep.subr.bf16.mxu0 0
    %2703 = vmatpush1.bf16.msra.mxu0 0
    %2704 = vmatprep.subr.bf16.mxu0 0
    %2705 = vmatpush1.bf16.msra.mxu0 0
    %2706 = vmatprep.subr.bf16.mxu0 0
    %2707 = vmatpush1.bf16.msra.mxu0 0
    %2708 = vmatprep.subr.bf16.mxu0 0
    %2709 = vmatpush1.bf16.msra.mxu0 0
    %2710 = vmatprep.subr.bf16.mxu0 0
    %2711 = vmatpush1.bf16.msra.mxu0 0
    %2712 = vmatprep.subr.bf16.mxu0 0
    %2713 = vmatpush1.bf16.msra.mxu0 0
    %2714 = vmatprep.subr.bf16.mxu0 0
    %2715 = vmatpush1.bf16.msra.mxu0 0
    %2716 = vmatprep.subr.bf16.mxu0 0
    %2717 = vmatpush1.bf16.msra.mxu0 0
    %2718 = vmatprep.mubr.bf16.mxu0 0
    %2719 = vmatmul.mubr.bf16.gmra.mrb[0].mxu0 %v2644
    %v2720 = vpop.f32.mrb[0].mxu0
    %v2721 = vadd.f32 0.0, %v2720
    %v2722 = vpop.f32.mrb[0].mxu0
    %v2723 = vadd.f32 0.0, %v2722
    %v2724 = vpop.f32.mrb[0].mxu0
    %v2725 = vpop.f32.mrb[0].mxu0
    %2726 = vdwg.mxu0
    %v2727 = vadd.f32 %v2640, %v2680
    %v2728 = vadd.f32 %v2641, %v2682
    %v2729 = vadd.f32 %v2642, %v2721
    %v2730 = vadd.f32 %v2643, %v2723
    %v2731 = vxor.u32 %v2727, 2147483648
    %v2732 = vxor.u32 %v2728, 2147483648
    %v2733 = vxor.u32 %v2729, 2147483648
    %v2734 = vmul.f32 %v2731, 1.442695
    %v2735 = vpow.pop %v2734
    %v2736 = vmul.f32 %v2732, 1.442695
    %v2737 = vpow.pop %v2736
    %v2738 = vmul.f32 %v2733, 1.442695
    %v2739 = vpow.pop %v2738
    %v2740 = vadd.f32 %v2735, 1.0
    %v2741 = vadd.f32 %v2737, 1.0
    %v2742 = vadd.f32 %v2739, 1.0
    %v2743 = vrcp.pop %v2740
    %v2744 = vmul.f32 1.0, %v2743
    %v2745 = vrcp.pop %v2741
    %v2746 = vmul.f32 1.0, %v2745
    %v2747 = vrcp.pop %v2742
    %v2748 = vmul.f32 1.0, %v2747
    %v2749 = vtanh.pop %v2730
    %v2750 = vmul.f32 %v2746, %v2522
    %v2751 = vmul.f32 %v2744, %v2749
    %v2752 = vadd.f32 %v2750, %v2751
    %v2753 = vtanh.pop %v2752
    %v2754 = vmul.f32 %v2748, %v2753
    %v2755 = vld [vmem:[%s1082] sm:$0xff]
    %v2756 = vld [vmem:[%s1082 + $0x8] sm:$0xff]
    %v2757 = vld [vmem:[%s1082 + $0x10] sm:$0xff]
    %v2758 = vld [vmem:[%s1082 + $0x18] sm:$0xff]
    %v2759 = vpack.c.bf16 %v2639, %v2639
    %2760 = vmatprep.subr.bf16.mxu0 %v907
    %2761 = vmatpush1.bf16.msra.mxu0 %v906
    %2762 = vmatprep.subr.bf16.mxu0 %v911
    %2763 = vmatpush1.bf16.msra.mxu0 %v910
    %2764 = vmatprep.subr.bf16.mxu0 %v915
    %2765 = vmatpush1.bf16.msra.mxu0 %v914
    %2766 = vmatprep.subr.bf16.mxu0 %v919
    %2767 = vmatpush1.bf16.msra.mxu0 %v918
    %2768 = vmatprep.subr.bf16.mxu0 %v923
    %2769 = vmatpush1.bf16.msra.mxu0 %v922
    %2770 = vmatprep.subr.bf16.mxu0 %v927
    %2771 = vmatpush1.bf16.msra.mxu0 %v926
    %2772 = vmatprep.subr.bf16.mxu0 %v931
    %2773 = vmatpush1.bf16.msra.mxu0 %v930
    %2774 = vmatprep.subr.bf16.mxu0 %v935
    %2775 = vmatpush1.bf16.msra.mxu0 %v934
    %2776 = vmatprep.subr.bf16.mxu0 0
    %2777 = vmatpush1.bf16.msra.mxu0 0
    %2778 = vmatprep.subr.bf16.mxu0 0
    %2779 = vmatpush1.bf16.msra.mxu0 0
    %2780 = vmatprep.subr.bf16.mxu0 0
    %2781 = vmatpush1.bf16.msra.mxu0 0
    %2782 = vmatprep.subr.bf16.mxu0 0
    %2783 = vmatpush1.bf16.msra.mxu0 0
    %2784 = vmatprep.subr.bf16.mxu0 0
    %2785 = vmatpush1.bf16.msra.mxu0 0
    %2786 = vmatprep.subr.bf16.mxu0 0
    %2787 = vmatpush1.bf16.msra.mxu0 0
    %2788 = vmatprep.subr.bf16.mxu0 0
    %2789 = vmatpush1.bf16.msra.mxu0 0
    %2790 = vmatprep.subr.bf16.mxu0 0
    %2791 = vmatpush1.bf16.msra.mxu0 0
    %2792 = vmatprep.mubr.bf16.mxu0 0
    %2793 = vmatmul.mubr.bf16.gmra.mrb[0].mxu0 %v2759
    %v2794 = vpop.f32.mrb[0].mxu0
    %v2795 = vadd.f32 0.0, %v2794
    %v2796 = vpop.f32.mrb[0].mxu0
    %v2797 = vadd.f32 0.0, %v2796
    %v2798 = vpop.f32.mrb[0].mxu0
    %v2799 = vpop.f32.mrb[0].mxu0
    %2800 = vdwg.mxu0
    %2801 = vmatprep.subr.bf16.mxu0 %v909
    %2802 = vmatpush1.bf16.msra.mxu0 %v908
    %2803 = vmatprep.subr.bf16.mxu0 %v913
    %2804 = vmatpush1.bf16.msra.mxu0 %v912
    %2805 = vmatprep.subr.bf16.mxu0 %v917
    %2806 = vmatpush1.bf16.msra.mxu0 %v916
    %2807 = vmatprep.subr.bf16.mxu0 %v921
    %2808 = vmatpush1.bf16.msra.mxu0 %v920
    %2809 = vmatprep.subr.bf16.mxu0 %v925
    %2810 = vmatpush1.bf16.msra.mxu0 %v924
    %2811 = vmatprep.subr.bf16.mxu0 %v929
    %2812 = vmatpush1.bf16.msra.mxu0 %v928
    %2813 = vmatprep.subr.bf16.mxu0 %v933
    %2814 = vmatpush1.bf16.msra.mxu0 %v932
    %2815 = vmatprep.subr.bf16.mxu0 %v937
    %2816 = vmatpush1.bf16.msra.mxu0 %v936
    %2817 = vmatprep.subr.bf16.mxu0 0
    %2818 = vmatpush1.bf16.msra.mxu0 0
    %2819 = vmatprep.subr.bf16.mxu0 0
    %2820 = vmatpush1.bf16.msra.mxu0 0
    %2821 = vmatprep.subr.bf16.mxu0 0
    %2822 = vmatpush1.bf16.msra.mxu0 0
    %2823 = vmatprep.subr.bf16.mxu0 0
    %2824 = vmatpush1.bf16.msra.mxu0 0
    %2825 = vmatprep.subr.bf16.mxu0 0
    %2826 = vmatpush1.bf16.msra.mxu0 0
    %2827 = vmatprep.subr.bf16.mxu0 0
    %2828 = vmatpush1.bf16.msra.mxu0 0
    %2829 = vmatprep.subr.bf16.mxu0 0
    %2830 = vmatpush1.bf16.msra.mxu0 0
    %2831 = vmatprep.subr.bf16.mxu0 0
    %2832 = vmatpush1.bf16.msra.mxu0 0
    %2833 = vmatprep.mubr.bf16.mxu0 0
    %2834 = vmatmul.mubr.bf16.gmra.mrb[0].mxu0 %v2759
    %v2835 = vpop.f32.mrb[0].mxu0
    %v2836 = vadd.f32 0.0, %v2835
    %v2837 = vpop.f32.mrb[0].mxu0
    %v2838 = vadd.f32 0.0, %v2837
    %v2839 = vpop.f32.mrb[0].mxu0
    %v2840 = vpop.f32.mrb[0].mxu0
    %2841 = vdwg.mxu0
    %v2842 = vadd.f32 %v2755, %v2795
    %v2843 = vadd.f32 %v2756, %v2797
    %v2844 = vadd.f32 %v2757, %v2836
    %v2845 = vadd.f32 %v2758, %v2838
    %v2846 = vxor.u32 %v2842, 2147483648
    %v2847 = vxor.u32 %v2843, 2147483648
    %v2848 = vxor.u32 %v2844, 2147483648
    %v2849 = vmul.f32 %v2846, 1.442695
    %v2850 = vpow.pop %v2849
    %v2851 = vmul.f32 %v2847, 1.442695
    %v2852 = vpow.pop %v2851
    %v2853 = vmul.f32 %v2848, 1.442695
    %v2854 = vpow.pop %v2853
    %v2855 = vadd.f32 %v2850, 1.0
    %v2856 = vadd.f32 %v2852, 1.0
    %v2857 = vadd.f32 %v2854, 1.0
    %v2858 = vrcp.pop %v2855
    %v2859 = vmul.f32 1.0, %v2858
    %v2860 = vrcp.pop %v2856
    %v2861 = vmul.f32 1.0, %v2860
    %v2862 = vrcp.pop %v2857
    %v2863 = vmul.f32 1.0, %v2862
    %v2864 = vtanh.pop %v2845
    %v2865 = vmul.f32 %v2861, %v2637
    %v2866 = vmul.f32 %v2859, %v2864
    %v2867 = vadd.f32 %v2865, %v2866
    %v2868 = vtanh.pop %v2867
    %v2869 = vmul.f32 %v2863, %v2868
    %v2870 = vld [vmem:[%s805 + $0x20] sm:$0xff]
    %v2871 = vld [vmem:[%s805 + $0x28] sm:$0xff]
    %v2872 = vld [vmem:[%s805 + $0x30] sm:$0xff]
    %v2873 = vld [vmem:[%s805 + $0x38] sm:$0xff]
    %v2874 = vpack.c.bf16 %v2754, %v2754
    %2875 = vmatprep.subr.bf16.mxu0 %v1184
    %2876 = vmatpush1.bf16.msra.mxu0 %v1183
    %2877 = vmatprep.subr.bf16.mxu0 %v1188
    %2878 = vmatpush1.bf16.msra.mxu0 %v1187
    %2879 = vmatprep.subr.bf16.mxu0 %v1192
    %2880 = vmatpush1.bf16.msra.mxu0 %v1191
    %2881 = vmatprep.subr.bf16.mxu0 %v1196
    %2882 = vmatpush1.bf16.msra.mxu0 %v1195
    %2883 = vmatprep.subr.bf16.mxu0 %v1200
    %2884 = vmatpush1.bf16.msra.mxu0 %v1199
    %2885 = vmatprep.subr.bf16.mxu0 %v1204
    %2886 = vmatpush1.bf16.msra.mxu0 %v1203
    %2887 = vmatprep.subr.bf16.mxu0 %v1208
    %2888 = vmatpush1.bf16.msra.mxu0 %v1207
    %2889 = vmatprep.subr.bf16.mxu0 %v1212
    %2890 = vmatpush1.bf16.msra.mxu0 %v1211
    %2891 = vmatprep.subr.bf16.mxu0 0
    %2892 = vmatpush1.bf16.msra.mxu0 0
    %2893 = vmatprep.subr.bf16.mxu0 0
    %2894 = vmatpush1.bf16.msra.mxu0 0
    %2895 = vmatprep.subr.bf16.mxu0 0
    %2896 = vmatpush1.bf16.msra.mxu0 0
    %2897 = vmatprep.subr.bf16.mxu0 0
    %2898 = vmatpush1.bf16.msra.mxu0 0
    %2899 = vmatprep.subr.bf16.mxu0 0
    %2900 = vmatpush1.bf16.msra.mxu0 0
    %2901 = vmatprep.subr.bf16.mxu0 0
    %2902 = vmatpush1.bf16.msra.mxu0 0
    %2903 = vmatprep.subr.bf16.mxu0 0
    %2904 = vmatpush1.bf16.msra.mxu0 0
    %2905 = vmatprep.subr.bf16.mxu0 0
    %2906 = vmatpush1.bf16.msra.mxu0 0
    %2907 = vmatprep.mubr.bf16.mxu0 0
    %2908 = vmatmul.mubr.bf16.gmra.mrb[0].mxu0 %v2874
    %v2909 = vpop.f32.mrb[0].mxu0
    %v2910 = vadd.f32 0.0, %v2909
    %v2911 = vpop.f32.mrb[0].mxu0
    %v2912 = vadd.f32 0.0, %v2911
    %v2913 = vpop.f32.mrb[0].mxu0
    %v2914 = vpop.f32.mrb[0].mxu0
    %2915 = vdwg.mxu0
    %2916 = vmatprep.subr.bf16.mxu0 %v1186
    %2917 = vmatpush1.bf16.msra.mxu0 %v1185
    %2918 = vmatprep.subr.bf16.mxu0 %v1190
    %2919 = vmatpush1.bf16.msra.mxu0 %v1189
    %2920 = vmatprep.subr.bf16.mxu0 %v1194
    %2921 = vmatpush1.bf16.msra.mxu0 %v1193
    %2922 = vmatprep.subr.bf16.mxu0 %v1198
    %2923 = vmatpush1.bf16.msra.mxu0 %v1197
    %2924 = vmatprep.subr.bf16.mxu0 %v1202
    %2925 = vmatpush1.bf16.msra.mxu0 %v1201
    %2926 = vmatprep.subr.bf16.mxu0 %v1206
    %2927 = vmatpush1.bf16.msra.mxu0 %v1205
    %2928 = vmatprep.subr.bf16.mxu0 %v1210
    %2929 = vmatpush1.bf16.msra.mxu0 %v1209
    %2930 = vmatprep.subr.bf16.mxu0 %v1214
    %2931 = vmatpush1.bf16.msra.mxu0 %v1213
    %2932 = vmatprep.subr.bf16.mxu0 0
    %2933 = vmatpush1.bf16.msra.mxu0 0
    %2934 = vmatprep.subr.bf16.mxu0 0
    %2935 = vmatpush1.bf16.msra.mxu0 0
    %2936 = vmatprep.subr.bf16.mxu0 0
    %2937 = vmatpush1.bf16.msra.mxu0 0
    %2938 = vmatprep.subr.bf16.mxu0 0
    %2939 = vmatpush1.bf16.msra.mxu0 0
    %2940 = vmatprep.subr.bf16.mxu0 0
    %2941 = vmatpush1.bf16.msra.mxu0 0
    %2942 = vmatprep.subr.bf16.mxu0 0
    %2943 = vmatpush1.bf16.msra.mxu0 0
    %2944 = vmatprep.subr.bf16.mxu0 0
    %2945 = vmatpush1.bf16.msra.mxu0 0
    %2946 = vmatprep.subr.bf16.mxu0 0
    %2947 = vmatpush1.bf16.msra.mxu0 0
    %2948 = vmatprep.mubr.bf16.mxu0 0
    %2949 = vmatmul.mubr.bf16.gmra.mrb[0].mxu0 %v2874
    %v2950 = vpop.f32.mrb[0].mxu0
    %v2951 = vadd.f32 0.0, %v2950
    %v2952 = vpop.f32.mrb[0].mxu0
    %v2953 = vadd.f32 0.0, %v2952
    %v2954 = vpop.f32.mrb[0].mxu0
    %v2955 = vpop.f32.mrb[0].mxu0
    %2956 = vdwg.mxu0
    %v2957 = vadd.f32 %v2870, %v2910
    %v2958 = vadd.f32 %v2871, %v2912
    %v2959 = vadd.f32 %v2872, %v2951
    %v2960 = vadd.f32 %v2873, %v2953
    %v2961 = vxor.u32 %v2957, 2147483648
    %v2962 = vxor.u32 %v2958, 2147483648
    %v2963 = vxor.u32 %v2959, 2147483648
    %v2964 = vmul.f32 %v2961, 1.442695
    %v2965 = vpow.pop %v2964
    %v2966 = vmul.f32 %v2962, 1.442695
    %v2967 = vpow.pop %v2966
    %v2968 = vmul.f32 %v2963, 1.442695
    %v2969 = vpow.pop %v2968
    %v2970 = vadd.f32 %v2965, 1.0
    %v2971 = vadd.f32 %v2967, 1.0
    %v2972 = vadd.f32 %v2969, 1.0
    %v2973 = vrcp.pop %v2970
    %v2974 = vmul.f32 1.0, %v2973
    %v2975 = vrcp.pop %v2971
    %v2976 = vmul.f32 1.0, %v2975
    %v2977 = vrcp.pop %v2972
    %v2978 = vmul.f32 1.0, %v2977
    %v2979 = vtanh.pop %v2960
    %v2980 = vmul.f32 %v2976, %v2752
    %v2981 = vmul.f32 %v2974, %v2979
    %v2982 = vadd.f32 %v2980, %v2981
    %v2983 = vtanh.pop %v2982
    %v2984 = vmul.f32 %v2978, %v2983
    %v2985 = vpack.c.bf16 %v2869, %v2869
    %v2986 = vld [vmem:[#allocation12] sm:$0xf]
    %v2987 = vld [vmem:[#allocation12 + $0x4] sm:$0xf]
    %v2988 = vld [vmem:[#allocation12 + $0x8] sm:$0xf]
    %v2989 = vld [vmem:[#allocation12 + $0xc] sm:$0xf]
    %v2990 = vld [vmem:[#allocation12 + $0x10] sm:$0xf]
    %v2991 = vld [vmem:[#allocation12 + $0x14] sm:$0xf]
    %v2992 = vld [vmem:[#allocation12 + $0x18] sm:$0xf]
    %v2993 = vld [vmem:[#allocation12 + $0x1c] sm:$0xf]
    %v2994 = vld [vmem:[#allocation12 + $0x20] sm:$0xf]
    %v2995 = vld [vmem:[#allocation12 + $0x24] sm:$0xf]
    %v2996 = vld [vmem:[#allocation12 + $0x28] sm:$0xf]
    %v2997 = vld [vmem:[#allocation12 + $0x2c] sm:$0xf]
    %v2998 = vld [vmem:[#allocation12 + $0x30] sm:$0xf]
    %v2999 = vld [vmem:[#allocation12 + $0x34] sm:$0xf]
    %v3000 = vld [vmem:[#allocation12 + $0x38] sm:$0xf]
    %v3001 = vld [vmem:[#allocation12 + $0x3c] sm:$0xf]
    %v3002 = vpack.c.bf16 %v2984, %v2984
    %v3003 = vld [vmem:[#allocation12 + $0x40] sm:$0xf]
    %v3004 = vld [vmem:[#allocation12 + $0x44] sm:$0xf]
    %v3005 = vld [vmem:[#allocation12 + $0x48] sm:$0xf]
    %v3006 = vld [vmem:[#allocation12 + $0x4c] sm:$0xf]
    %v3007 = vld [vmem:[#allocation12 + $0x50] sm:$0xf]
    %v3008 = vld [vmem:[#allocation12 + $0x54] sm:$0xf]
    %v3009 = vld [vmem:[#allocation12 + $0x58] sm:$0xf]
    %v3010 = vld [vmem:[#allocation12 + $0x5c] sm:$0xf]
    %v3011 = vld [vmem:[#allocation12 + $0x60] sm:$0xf]
    %v3012 = vld [vmem:[#allocation12 + $0x64] sm:$0xf]
    %v3013 = vld [vmem:[#allocation12 + $0x68] sm:$0xf]
    %v3014 = vld [vmem:[#allocation12 + $0x6c] sm:$0xf]
    %v3015 = vld [vmem:[#allocation12 + $0x70] sm:$0xf]
    %v3016 = vld [vmem:[#allocation12 + $0x74] sm:$0xf]
    %v3017 = vld [vmem:[#allocation12 + $0x78] sm:$0xf]
    %v3018 = vld [vmem:[#allocation12 + $0x7c] sm:$0xf]
    %v3035 = vunpack.c.l.b16 %v3003
    %v3036 = vunpack.c.l.b16 %v3004
    %v3037 = vunpack.c.l.b16 %v3005
    %v3038 = vunpack.c.l.b16 %v3006
    %v3039 = vunpack.c.l.b16 %v3007
    %v3040 = vunpack.c.l.b16 %v3008
    %v3041 = vunpack.c.l.b16 %v3009
    %v3042 = vunpack.c.l.b16 %v3010
    %v3043 = vunpack.c.l.b16 %v3011
    %v3044 = vunpack.c.l.b16 %v3012
    %v3045 = vunpack.c.l.b16 %v3013
    %v3046 = vunpack.c.l.b16 %v3014
    %v3047 = vunpack.c.l.b16 %v3015
    %v3048 = vunpack.c.l.b16 %v3016
    %v3049 = vunpack.c.l.b16 %v3017
    %v3050 = vunpack.c.l.b16 %v3018
    %v3051 = vpack.c.b16 %v3036, %v3035
    %v3052 = vpack.c.b16 %v3038, %v3037
    %v3053 = vpack.c.b16 %v3040, %v3039
    %v3054 = vpack.c.b16 %v3042, %v3041
    %v3055 = vpack.c.b16 %v3044, %v3043
    %v3056 = vpack.c.b16 %v3046, %v3045
    %v3057 = vpack.c.b16 %v3048, %v3047
    %v3058 = vpack.c.b16 %v3050, %v3049
    %3067 = vmatprep.subr.bf16.mxu0 0
    %3068 = vmatpush1.bf16.msra.mxu0 %v3051
    %3069 = vmatprep.subr.bf16.mxu0 0
    %3070 = vmatpush1.bf16.msra.mxu0 %v3052
    %3071 = vmatprep.subr.bf16.mxu0 0
    %3072 = vmatpush1.bf16.msra.mxu0 %v3053
    %3073 = vmatprep.subr.bf16.mxu0 0
    %3074 = vmatpush1.bf16.msra.mxu0 %v3054
    %3075 = vmatprep.subr.bf16.mxu0 0
    %3076 = vmatpush1.bf16.msra.mxu0 %v3055
    %3077 = vmatprep.subr.bf16.mxu0 0
    %3078 = vmatpush1.bf16.msra.mxu0 %v3056
    %3079 = vmatprep.subr.bf16.mxu0 0
    %3080 = vmatpush1.bf16.msra.mxu0 %v3057
    %3081 = vmatprep.subr.bf16.mxu0 0
    %3082 = vmatpush1.bf16.msra.mxu0 %v3058
    %3083 = vmatprep.subr.bf16.mxu0 0
    %3084 = vmatpush1.bf16.msra.mxu0 0
    %3085 = vmatprep.subr.bf16.mxu0 0
    %3086 = vmatpush1.bf16.msra.mxu0 0
    %3087 = vmatprep.subr.bf16.mxu0 0
    %3088 = vmatpush1.bf16.msra.mxu0 0
    %3089 = vmatprep.subr.bf16.mxu0 0
    %3090 = vmatpush1.bf16.msra.mxu0 0
    %3091 = vmatprep.subr.bf16.mxu0 0
    %3092 = vmatpush1.bf16.msra.mxu0 0
    %3093 = vmatprep.subr.bf16.mxu0 0
    %3094 = vmatpush1.bf16.msra.mxu0 0
    %3095 = vmatprep.subr.bf16.mxu0 0
    %3096 = vmatpush1.bf16.msra.mxu0 0
    %3097 = vmatprep.subr.bf16.mxu0 0
    %3098 = vmatpush1.bf16.msra.mxu0 0
    %3099 = vmatprep.mubr.bf16.mxu0 0
    %3100 = vmatmul.mubr.bf16.gmra.mrb[0].mxu0 %v3002
    %v3101 = vpop.f32.mrb[0].mxu0
    %v3102 = vadd.f32 0.0, %v3101
    %v3103 = vpop.f32.mrb[0].mxu0
    %v3104 = vpop.f32.mrb[0].mxu0
    %v3105 = vpop.f32.mrb[0].mxu0
    %3106 = vdwg.mxu0
    %v3123 = vunpack.c.l.b16 %v2986
    %v3124 = vunpack.c.l.b16 %v2987
    %v3125 = vunpack.c.l.b16 %v2988
    %v3126 = vunpack.c.l.b16 %v2989
    %v3127 = vunpack.c.l.b16 %v2990
    %v3128 = vunpack.c.l.b16 %v2991
    %v3129 = vunpack.c.l.b16 %v2992
    %v3130 = vunpack.c.l.b16 %v2993
    %v3131 = vunpack.c.l.b16 %v2994
    %v3132 = vunpack.c.l.b16 %v2995
    %v3133 = vunpack.c.l.b16 %v2996
    %v3134 = vunpack.c.l.b16 %v2997
    %v3135 = vunpack.c.l.b16 %v2998
    %v3136 = vunpack.c.l.b16 %v2999
    %v3137 = vunpack.c.l.b16 %v3000
    %v3138 = vunpack.c.l.b16 %v3001
    %v3139 = vpack.c.b16 %v3124, %v3123
    %v3140 = vpack.c.b16 %v3126, %v3125
    %v3141 = vpack.c.b16 %v3128, %v3127
    %v3142 = vpack.c.b16 %v3130, %v3129
    %v3143 = vpack.c.b16 %v3132, %v3131
    %v3144 = vpack.c.b16 %v3134, %v3133
    %v3145 = vpack.c.b16 %v3136, %v3135
    %v3146 = vpack.c.b16 %v3138, %v3137
    %3155 = vmatprep.subr.bf16.mxu0 0
    %3156 = vmatpush1.bf16.msra.mxu0 %v3139
    %3157 = vmatprep.subr.bf16.mxu0 0
    %3158 = vmatpush1.bf16.msra.mxu0 %v3140
    %3159 = vmatprep.subr.bf16.mxu0 0
    %3160 = vmatpush1.bf16.msra.mxu0 %v3141
    %3161 = vmatprep.subr.bf16.mxu0 0
    %3162 = vmatpush1.bf16.msra.mxu0 %v3142
    %3163 = vmatprep.subr.bf16.mxu0 0
    %3164 = vmatpush1.bf16.msra.mxu0 %v3143
    %3165 = vmatprep.subr.bf16.mxu0 0
    %3166 = vmatpush1.bf16.msra.mxu0 %v3144
    %3167 = vmatprep.subr.bf16.mxu0 0
    %3168 = vmatpush1.bf16.msra.mxu0 %v3145
    %3169 = vmatprep.subr.bf16.mxu0 0
    %3170 = vmatpush1.bf16.msra.mxu0 %v3146
    %3171 = vmatprep.subr.bf16.mxu0 0
    %3172 = vmatpush1.bf16.msra.mxu0 0
    %3173 = vmatprep.subr.bf16.mxu0 0
    %3174 = vmatpush1.bf16.msra.mxu0 0
    %3175 = vmatprep.subr.bf16.mxu0 0
    %3176 = vmatpush1.bf16.msra.mxu0 0
    %3177 = vmatprep.subr.bf16.mxu0 0
    %3178 = vmatpush1.bf16.msra.mxu0 0
    %3179 = vmatprep.subr.bf16.mxu0 0
    %3180 = vmatpush1.bf16.msra.mxu0 0
    %3181 = vmatprep.subr.bf16.mxu0 0
    %3182 = vmatpush1.bf16.msra.mxu0 0
    %3183 = vmatprep.subr.bf16.mxu0 0
    %3184 = vmatpush1.bf16.msra.mxu0 0
    %3185 = vmatprep.subr.bf16.mxu0 0
    %3186 = vmatpush1.bf16.msra.mxu0 0
    %3187 = vmatprep.mubr.bf16.mxu0 0
    %3188 = vmatmul.mubr.bf16.gmra.mrb[0].mxu0 %v2985
    %v3189 = vpop.f32.mrb[0].mxu0
    %v3190 = vadd.f32 %v3102, %v3189
    %v3191 = vpop.f32.mrb[0].mxu0
    %v3192 = vpop.f32.mrb[0].mxu0
    %v3193 = vpop.f32.mrb[0].mxu0
    %3194 = vdwg.mxu0
    %v3195 = vld [vmem:[%s6] sm:$0x1]
    %v3197 = vlaneseq
    %v3198 = vshrl.u32 %v3197, 7
    %v3199 = vsub.s32 0, %v3198
    %v3200 = vrot.slane %v3195, %v3199
    %v3202 = vadd.f32 %v3190, %v3200
    %3203 = vmax.xlane.f32.xlu0 %v3202
    %v3204 = vpop.xlane.xlu0 %3203
    %v3205 = vsub.f32 %v3202, %v3204
    %v3206 = vmul.f32 %v3205, 1.442695
    %v3207 = vpow.pop %v3206
    %3208 = vadd.xlane.f32.xlu0 %v3207
    %v3209 = vpop.xlane.xlu0 %3208
    %v3210 = vrcp.pop %v3209
    %v3211 = vmul.f32 %v3207, %v3210
    %3212 = vst [vmem:[#allocation14] sm:$0xff] %v3211
    // Predicated region
    $region54: #{tpu_custom_call.1} parent=1 // pred_check
      _
    $region55: #{tpu_custom_call.1} parent=1 // pred_check_branch
      %3214 = sbr.rel (0) target = $region57
    $region56: #{tpu_custom_call.1} parent=1 // pred_region
      %s3216 = ssub.s32 128, 128
      %3217 = vsyncadd [#allocation5], %s3216
      %s3219 = sshll.u32 [#allocation14], 4
      %s3220 = int_to_ptr.vmem [resolvable:$true] %s3219
      %3222 = dma.vmem_to_hbm [thread:$0]  %s3220, 128, %s7, [#allocation5]
    $region57: #{tpu_custom_call.1} parent=1 // pred_fallthru
      _
    // Predicated region
    $region58: #{tpu_custom_call.1} parent=1 // pred_check
      _
    $region59: #{tpu_custom_call.1} parent=1 // pred_check_branch
      %3224 = sbr.rel (0) target = $region61
    $region60: #{tpu_custom_call.1} parent=1 // pred_region
      %3225 = dma.done [#allocation5], 128
    $region61: #{tpu_custom_call.1} parent=1 // pred_fallthru
      _
    %3226 = vsyncpa [#allocation4], 1
    %3227 = vsyncpa [#allocation7], 1
    %3228 = vsyncpa [#allocation10], 1
    %3229 = vsyncpa [#allocation13], 1
    %3230 = vsyncpa [#allocation5], 1

</llo_original>
